<compile_context>
chip_gen: v6e
topology: v6e:2x2x1
jax: 0.10.0
libtpu: 0.0.40
codegen_flags: <defaults>
</compile_context>

<pallas_src>
import functools

import jax
import jax.numpy as jnp
from jax.experimental import pallas as pl
from jax.experimental.pallas import tpu as pltpu

LANE = 128
_EPS = 1e-5

# Works on v5e/v6e (128 MiB VMEM) and leaves headroom on v7x (64 MiB).
_CPARAMS = pltpu.CompilerParams(
    dimension_semantics=("parallel",),
    vmem_limit_bytes=48 * 1024 * 1024,
)


def _round_up(x, m):
    return (x + m - 1) // m * m


def _pick_tm(M, K, C, budget_bytes=36 << 20, cap=1024):
    """Largest M-tile (multiple of 8) whose double-buffered working set fits VMEM."""
    tm = min(cap, _round_up(M, 8))

    def need(t):
        return (2 * t * K * 2       # bf16 patches tile, double buffered
                + 2 * K * C * 2     # bf16 weight block
                + 2 * t * C * 4     # output tile (f32 worst case), double buffered
                + t * C * 4         # f32 accumulator headroom
                + (2 << 20))        # misc slack

    while tm > 8 and need(tm) > budget_bytes:
        tm = _round_up(tm // 2, 8)
    return max(tm, 8)


# ----------------------------------------------------------------------------
# Pallas kernels
# ----------------------------------------------------------------------------
def _gemm_bias_act_kernel(x_ref, w_ref, b_ref, o_ref, *, activation):
    # x: (TM, K) bf16, w: (K, C) bf16, b: (1, C) f32, o: (TM, C)
    z = jnp.dot(x_ref[...], w_ref[...], preferred_element_type=jnp.float32)
    z = z + b_ref[...]
    if activation == "leaky":
        z = jnp.where(z > 0, z, 0.2 * z)
    elif activation == "sigmoid":
        # Numerically stable sigmoid.
        e = jnp.exp(-jnp.abs(z))
        z = jnp.where(z >= 0, 1.0 / (1.0 + e), e / (1.0 + e))
    o_ref[...] = z.astype(o_ref.dtype)


def _gemm_stats_kernel(x_ref, w_ref, z_ref, s_ref):
    # Conv-as-GEMM tile for BN layers.  The conv bias is intentionally skipped:
    # it cancels exactly under training-mode BatchNorm (mean subtraction).
    z = jnp.dot(x_ref[...], w_ref[...], preferred_element_type=jnp.float32)
    z_ref[...] = z.astype(z_ref.dtype)
    s = jnp.sum(z, axis=0, keepdims=True)
    ss = jnp.sum(z * z, axis=0, keepdims=True)
    s_ref[...] = jnp.concatenate([s, ss], axis=0).reshape(s_ref.shape)


def _bn_act_kernel(z_ref, scale_ref, shift_ref, o_ref):
    # z: (TM, C) bf16, scale/shift: (1, C) f32
    y = z_ref[...].astype(jnp.float32) * scale_ref[...] + shift_ref[...]
    y = jnp.where(y > 0, y, 0.2 * y)          # LeakyReLU(0.2)
    o_ref[...] = y.astype(o_ref.dtype)


# ----------------------------------------------------------------------------
# Pallas drivers (M-tiled GEMM passes)
# ----------------------------------------------------------------------------
def _gemm_bias_act(patches, w_mat, bias, *, activation, out_dtype):
    M, K = patches.shape
    C = w_mat.shape[1]
    tm = _pick_tm(M, K, C)
    mp = _round_up(M, tm)
    patches = jnp.pad(patches, ((0, mp - M), (0, 0)))
    gm = mp // tm

    out = pl.pallas_call(
        functools.partial(_gemm_bias_act_kernel, activation=activation),
        out_shape=jax.ShapeDtypeStruct((mp, C), out_dtype),
        grid=(gm,),
        in_specs=[
            pl.BlockSpec((tm, K), lambda i: (i, 0)),
            pl.BlockSpec((K, C), lambda i: (0, 0)),
            pl.BlockSpec((1, C), lambda i: (0, 0)),
        ],
        out_specs=pl.BlockSpec((tm, C), lambda i: (i, 0)),
        compiler_params=_CPARAMS,
    )(patches, w_mat, bias.reshape(1, C).astype(jnp.float32))
    return out[:M]


def _gemm_bn_act(patches, w_mat, gamma, beta, *, out_dtype):
    M, K = patches.shape
    C = w_mat.shape[1]
    tm = _pick_tm(M, K, C)
    mp = _round_up(M, tm)
    # Zero-padded rows produce exactly-zero GEMM rows, so they contribute
    # nothing to sum / sum-of-squares; statistics divide by the true M.
    patches = jnp.pad(patches, ((0, mp - M), (0, 0)))
    gm = mp // tm

    # Pass 1: GEMM per M-tile + per-tile channel partial sums.
    z, part = pl.pallas_call(
        _gemm_stats_kernel,
        out_shape=(jax.ShapeDtypeStruct((mp, C), jnp.bfloat16),
                   jax.ShapeDtypeStruct((gm, 2, C), jnp.float32)),
        grid=(gm,),
        in_specs=[
            pl.BlockSpec((tm, K), lambda i: (i, 0)),
            pl.BlockSpec((K, C), lambda i: (0, 0)),
        ],
        out_specs=(
            pl.BlockSpec((tm, C), lambda i: (i, 0)),
            pl.BlockSpec((1, 2, C), lambda i: (i, 0, 0)),
        ),
        compiler_params=_CPARAMS,
    )(patches, w_mat)

    # Tiny cross-tile reduction + affine folding (plain JAX, negligible cost).
    sums = jnp.sum(part, axis=0)                         # (2, C)
    mean = sums[0] / M
    var = jnp.maximum(sums[1] / M - mean * mean, 0.0)    # biased variance (train mode)
    scale = gamma.astype(jnp.float32) * jax.lax.rsqrt(var + _EPS)
    shift = beta.astype(jnp.float32) - mean * scale

    # Pass 2: normalize + LeakyReLU, trivially parallel over M tiles.
    out = pl.pallas_call(
        _bn_act_kernel,
        out_shape=jax.ShapeDtypeStruct((mp, C), out_dtype),
        grid=(gm,),
        in_specs=[
            pl.BlockSpec((tm, C), lambda i: (i, 0)),
            pl.BlockSpec((1, C), lambda i: (0, 0)),
            pl.BlockSpec((1, C), lambda i: (0, 0)),
        ],
        out_specs=pl.BlockSpec((tm, C), lambda i: (i, 0)),
        compiler_params=_CPARAMS,
    )(z, scale.reshape(1, C), shift.reshape(1, C))
    return out[:M]


# ----------------------------------------------------------------------------
# One Conv(+BN)(+activation) layer.  weight is PyTorch (Cout, Cin, kH, kW).
# ----------------------------------------------------------------------------
def conv_layer(x_nhwc, weight, bias, gamma, beta, *, stride, padding,
               use_bn, activation="leaky", lane_pad=None, out_dtype=jnp.bfloat16):
    N, H, W, C_in = x_nhwc.shape
    C_out, _, kH, kW = weight.shape
    Hout = (H + 2 * padding - kH) // stride + 1
    Wout = (W + 2 * padding - kW) // stride + 1

    # im2col glue (bf16, plain JAX).
    # TODO(synk): replace this HBM patch materialization with an in-kernel
    # accumulation over kH*kW shifted matmuls (stride-parity plane split) to
    # cut HBM traffic ~4x; kept as XLA glue here for robustness.
    xp = jnp.pad(x_nhwc, ((0, 0), (padding, padding), (padding, padding), (0, 0)))
    cols = []
    for i in range(kH):
        for j in range(kW):
            cols.append(xp[:, i:i + stride * Hout:stride,
                           j:j + stride * Wout:stride, :])
    patches = (jnp.stack(cols, axis=3)
               .reshape(N * Hout * Wout, kH * kW * C_in)
               .astype(jnp.bfloat16))
    # weight (Cout, Cin, kH, kW) -> (kH, kW, Cin, Cout) -> (K, Cout)
    w_mat = (jnp.transpose(weight, (2, 3, 1, 0))
             .reshape(kH * kW * C_in, C_out)
             .astype(jnp.bfloat16))

    c_eff = C_out
    if lane_pad is not None and C_out < lane_pad:
        # Keep the Pallas output lane-dense (avoid masked narrow stores).
        w_mat = jnp.pad(w_mat, ((0, 0), (0, lane_pad - C_out)))
        if bias is not None:
            bias = jnp.pad(bias, (0, lane_pad - C_out))
        c_eff = lane_pad

    if use_bn:
        out = _gemm_bn_act(patches, w_mat, gamma, beta, out_dtype=out_dtype)
    else:
        out = _gemm_bias_act(patches, w_mat, bias,
                             activation=activation, out_dtype=out_dtype)
    if c_eff != C_out:
        out = out[:, :C_out]
    return out.reshape(N, Hout, Wout, C_out)


# ----------------------------------------------------------------------------
# Parameter construction (deterministic, DCGAN-style init: W~N(0,0.02), b=0,
# BN gamma~N(1,0.02), BN beta=0).
# ----------------------------------------------------------------------------
def init_netD_params(key, nc, ndf, fineSize):
    def conv_w(k, cout, cin, kh, kw):
        return 0.02 * jax.random.normal(k, (cout, cin, kh, kw), jnp.float32)

    def bn_g(k, c):
        return 1.0 + 0.02 * jax.random.normal(k, (c,), jnp.float32)

    keys = jax.random.split(key, 16)
    p = {}
    # midNet
    p["w_mid0"] = conv_w(keys[0], ndf, nc, 4, 4)
    p["b_mid0"] = jnp.zeros((ndf,), jnp.float32)
    if fineSize == 128:
        p["w_mid1"] = conv_w(keys[1], ndf, ndf, 4, 4)
        p["b_mid1"] = jnp.zeros((ndf,), jnp.float32)   # cancels under train-mode BN
        p["g_mid1"] = bn_g(keys[2], ndf)
        p["be_mid1"] = jnp.zeros((ndf,), jnp.float32)
    # tailNet
    chans = [(ndf, ndf * 2), (ndf * 2, ndf * 4), (ndf * 4, ndf * 8)]
    for li, (cin, cout) in enumerate(chans):
        p[f"w_t{li}"] = conv_w(keys[3 + 2 * li], cout, cin, 4, 4)
        p[f"b_t{li}"] = jnp.zeros((cout,), jnp.float32)  # cancels under train-mode BN
        p[f"g_t{li}"] = bn_g(keys[4 + 2 * li], cout)
        p[f"be_t{li}"] = jnp.zeros((cout,), jnp.float32)
    p["w_t3"] = conv_w(keys[10], 1, ndf * 8, 4, 4)
    p["b_t3"] = jnp.zeros((1,), jnp.float32)
    return p


# ----------------------------------------------------------------------------
# Forward pass of _netD (conditionAdv=False)
# ----------------------------------------------------------------------------
def netD_forward(params, x_nchw, *, fineSize, ndf, batchSize):
    x = jnp.transpose(x_nchw, (0, 2, 3, 1)).astype(jnp.bfloat16)  # NCHW -> NHWC

    # midNet
    x = conv_layer(x, params["w_mid0"], params["b_mid0"], None, None,
                   stride=2, padding=1, use_bn=False, activation="leaky")
    if fineSize == 128:
        x = conv_layer(x, params["w_mid1"], None,
                       params["g_mid1"], params["be_mid1"],
                       stride=2, padding=1, use_bn=True)

    # tailNet
    for li in range(3):
        x = conv_layer(x, params[f"w_t{li}"], None,
                       params[f"g_t{li}"], params[f"be_t{li}"],
                       stride=2, padding=1, use_bn=True)
    y = conv_layer(x, params["w_t3"], params["b_t3"], None, None,
                   stride=4, padding=0, use_bn=False, activation="sigmoid",
                   lane_pad=LANE, out_dtype=jnp.float32)

    return y.reshape(batchSize)  # == output.view(batchSize)


# TODO(synk): conditionAdv=True branch exits in the reference module itself
# ("conditional adv not implemented"), so it is intentionally not translated.
# nn.DataParallel is a single-device no-op here.  BatchNorm uses training-mode
# batch statistics (biased variance), matching nn.BatchNorm2d in train mode.

if __name__ == "__main__":
    # Small but shape-consistent config: fineSize=64 so the spatial chain
    # 64 -> 32 -> 16 -> 8 -> 4 -> 1 reaches the final 4x4/stride-4 conv.
    batchSize, nc, ndf, fineSize = 2, 3, 8, 64

    key = jax.random.PRNGKey(0)
    k_x, k_p = jax.random.split(key)
    x = jax.random.normal(k_x, (batchSize, nc, fineSize, fineSize), jnp.float32)
    params = init_netD_params(k_p, nc, ndf, fineSize)

    fwd = jax.jit(functools.partial(netD_forward, fineSize=fineSize,
                                    ndf=ndf, batchSize=batchSize))
    out = fwd(params, x)
    out = jax.block_until_ready(out)

    assert out.shape == (batchSize,)
    assert bool(jnp.all(jnp.isfinite(out)))
    assert bool(jnp.all((out >= 0.0) & (out <= 1.0)))  # sigmoid output
    print("KERNEL_OK")
</pallas_src>

<mosaic_0001>
module attributes {stable_mosaic.version = 11 : i64} {
  func.func @_gemm_bias_act_kernel(%arg0: i32, %arg1: memref<1024x48xbf16, #tpu.memory_space<vmem>>, %arg2: memref<48x8xbf16, #tpu.memory_space<vmem>>, %arg3: memref<1x8xf32, #tpu.memory_space<vmem>>, %arg4: memref<1024x8xbf16, #tpu.memory_space<vmem>>) attributes {dimension_semantics = [#tpu.dimension_semantics<parallel>], iteration_bounds = array<i64: 2>, scalar_prefetch = 0 : i64, scratch_operands = 0 : i64, tpu.core_type = #tpu.core_type<tc>, window_params = [{transform_indices = @transform_0, window_bounds = array<i64: 1024, 48>}, {pipeline_mode = #tpu.pipeline_mode<synchronous>, transform_indices = @transform_1, window_bounds = array<i64: 48, 8>}, {pipeline_mode = #tpu.pipeline_mode<synchronous>, transform_indices = @transform_2, window_bounds = array<i64: 1, 8>}, {transform_indices = @transform_3, window_bounds = array<i64: 1024, 8>}]} {
    %c0 = arith.constant 0 : index
    %c0_0 = arith.constant 0 : index
    %0 = vector.load %arg1[%c0, %c0_0] : memref<1024x48xbf16, #tpu.memory_space<vmem>>, vector<1024x48xbf16>
    %c0_1 = arith.constant 0 : index
    %c0_2 = arith.constant 0 : index
    %1 = vector.load %arg2[%c0_1, %c0_2] : memref<48x8xbf16, #tpu.memory_space<vmem>>, vector<48x8xbf16>
    %cst = arith.constant dense<0.000000e+00> : vector<1024x8xf32>
    %2 = tpu.matmul %0, %1, %cst {dimension_numbers = #tpu.dot_dimension_numbers<[1], [0], [0], [1], [0, 0, 1, 1], [], []>} : vector<1024x48xbf16>, vector<48x8xbf16>, vector<1024x8xf32> -> vector<1024x8xf32>
    %c0_3 = arith.constant 0 : index
    %c0_4 = arith.constant 0 : index
    %3 = vector.load %arg3[%c0_3, %c0_4] : memref<1x8xf32, #tpu.memory_space<vmem>>, vector<1x8xf32>
    %4 = vector.broadcast %3 : vector<1x8xf32> to vector<1024x8xf32>
    %5 = arith.addf %2, %4 : vector<1024x8xf32>
    %cst_5 = arith.constant 0.000000e+00 : f32
    %6 = vector.broadcast %cst_5 : f32 to vector<1024x8xf32>
    %7 = arith.cmpf ogt, %5, %6 : vector<1024x8xf32>
    %cst_6 = arith.constant 2.000000e-01 : f32
    %8 = vector.broadcast %cst_6 : f32 to vector<1024x8xf32>
    %9 = arith.mulf %8, %5 : vector<1024x8xf32>
    %10 = arith.select %7, %5, %9 : vector<1024x8xi1>, vector<1024x8xf32>
    %11 = arith.truncf %10 : vector<1024x8xf32> to vector<1024x8xbf16>
    %c0_7 = arith.constant 0 : index
    %c0_8 = arith.constant 0 : index
    %12 = vector.load %arg4[%c0_7, %c0_8] : memref<1024x8xbf16, #tpu.memory_space<vmem>>, vector<1024x8xbf16>
    tpu.vector_store %arg4[%c0_7, %c0_8], %11 {strides = array<i32>} : memref<1024x8xbf16, #tpu.memory_space<vmem>>, vector<1024x8xbf16>,
    return
  }
  func.func @transform_0(%arg0: i32) -> (i32, i32) {
    %c0_i32 = arith.constant 0 : i32
    %c0_i32_0 = arith.constant 0 : i32
    return %arg0, %c0_i32 : i32, i32
  }
  func.func @transform_1(%arg0: i32) -> (i32, i32) {
    %c0_i32 = arith.constant 0 : i32
    %c0_i32_0 = arith.constant 0 : i32
    %c0_i32_1 = arith.constant 0 : i32
    return %c0_i32, %c0_i32_0 : i32, i32
  }
  func.func @transform_2(%arg0: i32) -> (i32, i32) {
    %c0_i32 = arith.constant 0 : i32
    %c0_i32_0 = arith.constant 0 : i32
    %c0_i32_1 = arith.constant 0 : i32
    return %c0_i32, %c0_i32_0 : i32, i32
  }
  func.func @transform_3(%arg0: i32) -> (i32, i32) {
    %c0_i32 = arith.constant 0 : i32
    %c0_i32_0 = arith.constant 0 : i32
    return %arg0, %c0_i32 : i32, i32
  }
}

module attributes {stable_mosaic.version = 11 : i64} {
  func.func @_gemm_stats_kernel(%arg0: i32, %arg1: memref<512x128xbf16, #tpu.memory_space<vmem>>, %arg2: memref<128x16xbf16, #tpu.memory_space<vmem>>, %arg3: memref<512x16xbf16, #tpu.memory_space<vmem>>, %arg4: memref<1x2x16xf32, #tpu.memory_space<vmem>>) attributes {dimension_semantics = [#tpu.dimension_semantics<parallel>], iteration_bounds = array<i64: 1>, scalar_prefetch = 0 : i64, scratch_operands = 0 : i64, tpu.core_type = #tpu.core_type<tc>, window_params = [{transform_indices = @transform_0, window_bounds = array<i64: 512, 128>}, {pipeline_mode = #tpu.pipeline_mode<synchronous>, transform_indices = @transform_1, window_bounds = array<i64: 128, 16>}, {transform_indices = @transform_2, window_bounds = array<i64: 512, 16>}, {transform_indices = @transform_3, window_bounds = array<i64: 1, 2, 16>}]} {
    %c0 = arith.constant 0 : index
    %c0_0 = arith.constant 0 : index
    %0 = vector.load %arg1[%c0, %c0_0] : memref<512x128xbf16, #tpu.memory_space<vmem>>, vector<512x128xbf16>
    %c0_1 = arith.constant 0 : index
    %c0_2 = arith.constant 0 : index
    %1 = vector.load %arg2[%c0_1, %c0_2] : memref<128x16xbf16, #tpu.memory_space<vmem>>, vector<128x16xbf16>
    %cst = arith.constant dense<0.000000e+00> : vector<512x16xf32>
    %2 = tpu.matmul %0, %1, %cst {dimension_numbers = #tpu.dot_dimension_numbers<[1], [0], [0], [1], [0, 0, 1, 1], [], []>} : vector<512x128xbf16>, vector<128x16xbf16>, vector<512x16xf32> -> vector<512x16xf32>
    %3 = arith.truncf %2 : vector<512x16xf32> to vector<512x16xbf16>
    %c0_3 = arith.constant 0 : index
    %c0_4 = arith.constant 0 : index
    %4 = vector.load %arg3[%c0_3, %c0_4] : memref<512x16xbf16, #tpu.memory_space<vmem>>, vector<512x16xbf16>
    tpu.vector_store %arg3[%c0_3, %c0_4], %3 {strides = array<i32>} : memref<512x16xbf16, #tpu.memory_space<vmem>>, vector<512x16xbf16>,
    %cst_5 = arith.constant dense<0.000000e+00> : vector<16xf32>
    %5 = vector.multi_reduction <add>, %2, %cst_5 [0] : vector<512x16xf32> to vector<16xf32>
    %6 = vector.shape_cast %5 : vector<16xf32> to vector<1x16xf32>
    %7 = arith.mulf %2, %2 : vector<512x16xf32>
    %cst_6 = arith.constant dense<0.000000e+00> : vector<16xf32>
    %8 = vector.multi_reduction <add>, %7, %cst_6 [0] : vector<512x16xf32> to vector<16xf32>
    %9 = vector.shape_cast %8 : vector<16xf32> to vector<1x16xf32>
    %10 = tpu.concatenate %6, %9 in 0 : vector<1x16xf32>, vector<1x16xf32> -> vector<2x16xf32>
    %11 = vector.shape_cast %10 : vector<2x16xf32> to vector<1x2x16xf32>
    %c0_7 = arith.constant 0 : index
    %c0_8 = arith.constant 0 : index
    %c0_9 = arith.constant 0 : index
    %12 = vector.load %arg4[%c0_7, %c0_8, %c0_9] : memref<1x2x16xf32, #tpu.memory_space<vmem>>, vector<1x2x16xf32>
    tpu.vector_store %arg4[%c0_7, %c0_8, %c0_9], %11 {strides = array<i32>} : memref<1x2x16xf32, #tpu.memory_space<vmem>>, vector<1x2x16xf32>,
    return
  }
  func.func @transform_0(%arg0: i32) -> (i32, i32) {
    %c0_i32 = arith.constant 0 : i32
    %c0_i32_0 = arith.constant 0 : i32
    return %arg0, %c0_i32 : i32, i32
  }
  func.func @transform_1(%arg0: i32) -> (i32, i32) {
    %c0_i32 = arith.constant 0 : i32
    %c0_i32_0 = arith.constant 0 : i32
    %c0_i32_1 = arith.constant 0 : i32
    return %c0_i32, %c0_i32_0 : i32, i32
  }
  func.func @transform_2(%arg0: i32) -> (i32, i32) {
    %c0_i32 = arith.constant 0 : i32
    %c0_i32_0 = arith.constant 0 : i32
    return %arg0, %c0_i32 : i32, i32
  }
  func.func @transform_3(%arg0: i32) -> (i32, i32, i32) {
    %c0_i32 = arith.constant 0 : i32
    %c0_i32_0 = arith.constant 0 : i32
    %c0_i32_1 = arith.constant 0 : i32
    return %arg0, %c0_i32, %c0_i32_0 : i32, i32, i32
  }
}

module attributes {stable_mosaic.version = 11 : i64} {
  func.func @_bn_act_kernel(%arg0: i32, %arg1: memref<512x16xbf16, #tpu.memory_space<vmem>>, %arg2: memref<1x16xf32, #tpu.memory_space<vmem>>, %arg3: memref<1x16xf32, #tpu.memory_space<vmem>>, %arg4: memref<512x16xbf16, #tpu.memory_space<vmem>>) attributes {dimension_semantics = [#tpu.dimension_semantics<parallel>], iteration_bounds = array<i64: 1>, scalar_prefetch = 0 : i64, scratch_operands = 0 : i64, tpu.core_type = #tpu.core_type<tc>, window_params = [{transform_indices = @transform_0, window_bounds = array<i64: 512, 16>}, {pipeline_mode = #tpu.pipeline_mode<synchronous>, transform_indices = @transform_1, window_bounds = array<i64: 1, 16>}, {pipeline_mode = #tpu.pipeline_mode<synchronous>, transform_indices = @transform_2, window_bounds = array<i64: 1, 16>}, {transform_indices = @transform_3, window_bounds = array<i64: 512, 16>}]} {
    %c0 = arith.constant 0 : index
    %c0_0 = arith.constant 0 : index
    %0 = vector.load %arg1[%c0, %c0_0] : memref<512x16xbf16, #tpu.memory_space<vmem>>, vector<512x16xbf16>
    %1 = arith.extf %0 : vector<512x16xbf16> to vector<512x16xf32>
    %c0_1 = arith.constant 0 : index
    %c0_2 = arith.constant 0 : index
    %2 = vector.load %arg2[%c0_1, %c0_2] : memref<1x16xf32, #tpu.memory_space<vmem>>, vector<1x16xf32>
    %3 = vector.broadcast %2 : vector<1x16xf32> to vector<512x16xf32>
    %4 = arith.mulf %1, %3 : vector<512x16xf32>
    %c0_3 = arith.constant 0 : index
    %c0_4 = arith.constant 0 : index
    %5 = vector.load %arg3[%c0_3, %c0_4] : memref<1x16xf32, #tpu.memory_space<vmem>>, vector<1x16xf32>
    %6 = vector.broadcast %5 : vector<1x16xf32> to vector<512x16xf32>
    %7 = arith.addf %4, %6 : vector<512x16xf32>
    %cst = arith.constant 0.000000e+00 : f32
    %8 = vector.broadcast %cst : f32 to vector<512x16xf32>
    %9 = arith.cmpf ogt, %7, %8 : vector<512x16xf32>
    %cst_5 = arith.constant 2.000000e-01 : f32
    %10 = vector.broadcast %cst_5 : f32 to vector<512x16xf32>
    %11 = arith.mulf %10, %7 : vector<512x16xf32>
    %12 = arith.select %9, %7, %11 : vector<512x16xi1>, vector<512x16xf32>
    %13 = arith.truncf %12 : vector<512x16xf32> to vector<512x16xbf16>
    %c0_6 = arith.constant 0 : index
    %c0_7 = arith.constant 0 : index
    %14 = vector.load %arg4[%c0_6, %c0_7] : memref<512x16xbf16, #tpu.memory_space<vmem>>, vector<512x16xbf16>
    tpu.vector_store %arg4[%c0_6, %c0_7], %13 {strides = array<i32>} : memref<512x16xbf16, #tpu.memory_space<vmem>>, vector<512x16xbf16>,
    return
  }
  func.func @transform_0(%arg0: i32) -> (i32, i32) {
    %c0_i32 = arith.constant 0 : i32
    %c0_i32_0 = arith.constant 0 : i32
    return %arg0, %c0_i32 : i32, i32
  }
  func.func @transform_1(%arg0: i32) -> (i32, i32) {
    %c0_i32 = arith.constant 0 : i32
    %c0_i32_0 = arith.constant 0 : i32
    %c0_i32_1 = arith.constant 0 : i32
    return %c0_i32, %c0_i32_0 : i32, i32
  }
  func.func @transform_2(%arg0: i32) -> (i32, i32) {
    %c0_i32 = arith.constant 0 : i32
    %c0_i32_0 = arith.constant 0 : i32
    %c0_i32_1 = arith.constant 0 : i32
    return %c0_i32, %c0_i32_0 : i32, i32
  }
  func.func @transform_3(%arg0: i32) -> (i32, i32) {
    %c0_i32 = arith.constant 0 : i32
    %c0_i32_0 = arith.constant 0 : i32
    return %arg0, %c0_i32 : i32, i32
  }
}

module attributes {stable_mosaic.version = 11 : i64} {
  func.func @_gemm_stats_kernel(%arg0: i32, %arg1: memref<128x256xbf16, #tpu.memory_space<vmem>>, %arg2: memref<256x32xbf16, #tpu.memory_space<vmem>>, %arg3: memref<128x32xbf16, #tpu.memory_space<vmem>>, %arg4: memref<1x2x32xf32, #tpu.memory_space<vmem>>) attributes {dimension_semantics = [#tpu.dimension_semantics<parallel>], iteration_bounds = array<i64: 1>, scalar_prefetch = 0 : i64, scratch_operands = 0 : i64, tpu.core_type = #tpu.core_type<tc>, window_params = [{transform_indices = @transform_0, window_bounds = array<i64: 128, 256>}, {pipeline_mode = #tpu.pipeline_mode<synchronous>, transform_indices = @transform_1, window_bounds = array<i64: 256, 32>}, {transform_indices = @transform_2, window_bounds = array<i64: 128, 32>}, {transform_indices = @transform_3, window_bounds = array<i64: 1, 2, 32>}]} {
    %c0 = arith.constant 0 : index
    %c0_0 = arith.constant 0 : index
    %0 = vector.load %arg1[%c0, %c0_0] : memref<128x256xbf16, #tpu.memory_space<vmem>>, vector<128x256xbf16>
    %c0_1 = arith.constant 0 : index
    %c0_2 = arith.constant 0 : index
    %1 = vector.load %arg2[%c0_1, %c0_2] : memref<256x32xbf16, #tpu.memory_space<vmem>>, vector<256x32xbf16>
    %cst = arith.constant dense<0.000000e+00> : vector<128x32xf32>
    %2 = tpu.matmul %0, %1, %cst {dimension_numbers = #tpu.dot_dimension_numbers<[1], [0], [0], [1], [0, 0, 1, 1], [], []>} : vector<128x256xbf16>, vector<256x32xbf16>, vector<128x32xf32> -> vector<128x32xf32>
    %3 = arith.truncf %2 : vector<128x32xf32> to vector<128x32xbf16>
    %c0_3 = arith.constant 0 : index
    %c0_4 = arith.constant 0 : index
    %4 = vector.load %arg3[%c0_3, %c0_4] : memref<128x32xbf16, #tpu.memory_space<vmem>>, vector<128x32xbf16>
    tpu.vector_store %arg3[%c0_3, %c0_4], %3 {strides = array<i32>} : memref<128x32xbf16, #tpu.memory_space<vmem>>, vector<128x32xbf16>,
    %cst_5 = arith.constant dense<0.000000e+00> : vector<32xf32>
    %5 = vector.multi_reduction <add>, %2, %cst_5 [0] : vector<128x32xf32> to vector<32xf32>
    %6 = vector.shape_cast %5 : vector<32xf32> to vector<1x32xf32>
    %7 = arith.mulf %2, %2 : vector<128x32xf32>
    %cst_6 = arith.constant dense<0.000000e+00> : vector<32xf32>
    %8 = vector.multi_reduction <add>, %7, %cst_6 [0] : vector<128x32xf32> to vector<32xf32>
    %9 = vector.shape_cast %8 : vector<32xf32> to vector<1x32xf32>
    %10 = tpu.concatenate %6, %9 in 0 : vector<1x32xf32>, vector<1x32xf32> -> vector<2x32xf32>
    %11 = vector.shape_cast %10 : vector<2x32xf32> to vector<1x2x32xf32>
    %c0_7 = arith.constant 0 : index
    %c0_8 = arith.constant 0 : index
    %c0_9 = arith.constant 0 : index
    %12 = vector.load %arg4[%c0_7, %c0_8, %c0_9] : memref<1x2x32xf32, #tpu.memory_space<vmem>>, vector<1x2x32xf32>
    tpu.vector_store %arg4[%c0_7, %c0_8, %c0_9], %11 {strides = array<i32>} : memref<1x2x32xf32, #tpu.memory_space<vmem>>, vector<1x2x32xf32>,
    return
  }
  func.func @transform_0(%arg0: i32) -> (i32, i32) {
    %c0_i32 = arith.constant 0 : i32
    %c0_i32_0 = arith.constant 0 : i32
    return %arg0, %c0_i32 : i32, i32
  }
  func.func @transform_1(%arg0: i32) -> (i32, i32) {
    %c0_i32 = arith.constant 0 : i32
    %c0_i32_0 = arith.constant 0 : i32
    %c0_i32_1 = arith.constant 0 : i32
    return %c0_i32, %c0_i32_0 : i32, i32
  }
  func.func @transform_2(%arg0: i32) -> (i32, i32) {
    %c0_i32 = arith.constant 0 : i32
    %c0_i32_0 = arith.constant 0 : i32
    return %arg0, %c0_i32 : i32, i32
  }
  func.func @transform_3(%arg0: i32) -> (i32, i32, i32) {
    %c0_i32 = arith.constant 0 : i32
    %c0_i32_0 = arith.constant 0 : i32
    %c0_i32_1 = arith.constant 0 : i32
    return %arg0, %c0_i32, %c0_i32_0 : i32, i32, i32
  }
}

module attributes {stable_mosaic.version = 11 : i64} {
  func.func @_bn_act_kernel(%arg0: i32, %arg1: memref<128x32xbf16, #tpu.memory_space<vmem>>, %arg2: memref<1x32xf32, #tpu.memory_space<vmem>>, %arg3: memref<1x32xf32, #tpu.memory_space<vmem>>, %arg4: memref<128x32xbf16, #tpu.memory_space<vmem>>) attributes {dimension_semantics = [#tpu.dimension_semantics<parallel>], iteration_bounds = array<i64: 1>, scalar_prefetch = 0 : i64, scratch_operands = 0 : i64, tpu.core_type = #tpu.core_type<tc>, window_params = [{transform_indices = @transform_0, window_bounds = array<i64: 128, 32>}, {pipeline_mode = #tpu.pipeline_mode<synchronous>, transform_indices = @transform_1, window_bounds = array<i64: 1, 32>}, {pipeline_mode = #tpu.pipeline_mode<synchronous>, transform_indices = @transform_2, window_bounds = array<i64: 1, 32>}, {transform_indices = @transform_3, window_bounds = array<i64: 128, 32>}]} {
    %c0 = arith.constant 0 : index
    %c0_0 = arith.constant 0 : index
    %0 = vector.load %arg1[%c0, %c0_0] : memref<128x32xbf16, #tpu.memory_space<vmem>>, vector<128x32xbf16>
    %1 = arith.extf %0 : vector<128x32xbf16> to vector<128x32xf32>
    %c0_1 = arith.constant 0 : index
    %c0_2 = arith.constant 0 : index
    %2 = vector.load %arg2[%c0_1, %c0_2] : memref<1x32xf32, #tpu.memory_space<vmem>>, vector<1x32xf32>
    %3 = vector.broadcast %2 : vector<1x32xf32> to vector<128x32xf32>
    %4 = arith.mulf %1, %3 : vector<128x32xf32>
    %c0_3 = arith.constant 0 : index
    %c0_4 = arith.constant 0 : index
    %5 = vector.load %arg3[%c0_3, %c0_4] : memref<1x32xf32, #tpu.memory_space<vmem>>, vector<1x32xf32>
    %6 = vector.broadcast %5 : vector<1x32xf32> to vector<128x32xf32>
    %7 = arith.addf %4, %6 : vector<128x32xf32>
    %cst = arith.constant 0.000000e+00 : f32
    %8 = vector.broadcast %cst : f32 to vector<128x32xf32>
    %9 = arith.cmpf ogt, %7, %8 : vector<128x32xf32>
    %cst_5 = arith.constant 2.000000e-01 : f32
    %10 = vector.broadcast %cst_5 : f32 to vector<128x32xf32>
    %11 = arith.mulf %10, %7 : vector<128x32xf32>
    %12 = arith.select %9, %7, %11 : vector<128x32xi1>, vector<128x32xf32>
    %13 = arith.truncf %12 : vector<128x32xf32> to vector<128x32xbf16>
    %c0_6 = arith.constant 0 : index
    %c0_7 = arith.constant 0 : index
    %14 = vector.load %arg4[%c0_6, %c0_7] : memref<128x32xbf16, #tpu.memory_space<vmem>>, vector<128x32xbf16>
    tpu.vector_store %arg4[%c0_6, %c0_7], %13 {strides = array<i32>} : memref<128x32xbf16, #tpu.memory_space<vmem>>, vector<128x32xbf16>,
    return
  }
  func.func @transform_0(%arg0: i32) -> (i32, i32) {
    %c0_i32 = arith.constant 0 : i32
    %c0_i32_0 = arith.constant 0 : i32
    return %arg0, %c0_i32 : i32, i32
  }
  func.func @transform_1(%arg0: i32) -> (i32, i32) {
    %c0_i32 = arith.constant 0 : i32
    %c0_i32_0 = arith.constant 0 : i32
    %c0_i32_1 = arith.constant 0 : i32
    return %c0_i32, %c0_i32_0 : i32, i32
  }
  func.func @transform_2(%arg0: i32) -> (i32, i32) {
    %c0_i32 = arith.constant 0 : i32
    %c0_i32_0 = arith.constant 0 : i32
    %c0_i32_1 = arith.constant 0 : i32
    return %c0_i32, %c0_i32_0 : i32, i32
  }
  func.func @transform_3(%arg0: i32) -> (i32, i32) {
    %c0_i32 = arith.constant 0 : i32
    %c0_i32_0 = arith.constant 0 : i32
    return %arg0, %c0_i32 : i32, i32
  }
}

module attributes {stable_mosaic.version = 11 : i64} {
  func.func @_gemm_stats_kernel(%arg0: i32, %arg1: memref<32x512xbf16, #tpu.memory_space<vmem>>, %arg2: memref<512x64xbf16, #tpu.memory_space<vmem>>, %arg3: memref<32x64xbf16, #tpu.memory_space<vmem>>, %arg4: memref<1x2x64xf32, #tpu.memory_space<vmem>>) attributes {dimension_semantics = [#tpu.dimension_semantics<parallel>], iteration_bounds = array<i64: 1>, scalar_prefetch = 0 : i64, scratch_operands = 0 : i64, tpu.core_type = #tpu.core_type<tc>, window_params = [{transform_indices = @transform_0, window_bounds = array<i64: 32, 512>}, {pipeline_mode = #tpu.pipeline_mode<synchronous>, transform_indices = @transform_1, window_bounds = array<i64: 512, 64>}, {transform_indices = @transform_2, window_bounds = array<i64: 32, 64>}, {transform_indices = @transform_3, window_bounds = array<i64: 1, 2, 64>}]} {
    %c0 = arith.constant 0 : index
    %c0_0 = arith.constant 0 : index
    %0 = vector.load %arg1[%c0, %c0_0] : memref<32x512xbf16, #tpu.memory_space<vmem>>, vector<32x512xbf16>
    %c0_1 = arith.constant 0 : index
    %c0_2 = arith.constant 0 : index
    %1 = vector.load %arg2[%c0_1, %c0_2] : memref<512x64xbf16, #tpu.memory_space<vmem>>, vector<512x64xbf16>
    %cst = arith.constant dense<0.000000e+00> : vector<32x64xf32>
    %2 = tpu.matmul %0, %1, %cst {dimension_numbers = #tpu.dot_dimension_numbers<[1], [0], [0], [1], [0, 0, 1, 1], [], []>} : vector<32x512xbf16>, vector<512x64xbf16>, vector<32x64xf32> -> vector<32x64xf32>
    %3 = arith.truncf %2 : vector<32x64xf32> to vector<32x64xbf16>
    %c0_3 = arith.constant 0 : index
    %c0_4 = arith.constant 0 : index
    %4 = vector.load %arg3[%c0_3, %c0_4] : memref<32x64xbf16, #tpu.memory_space<vmem>>, vector<32x64xbf16>
    tpu.vector_store %arg3[%c0_3, %c0_4], %3 {strides = array<i32>} : memref<32x64xbf16, #tpu.memory_space<vmem>>, vector<32x64xbf16>,
    %cst_5 = arith.constant dense<0.000000e+00> : vector<64xf32>
    %5 = vector.multi_reduction <add>, %2, %cst_5 [0] : vector<32x64xf32> to vector<64xf32>
    %6 = vector.shape_cast %5 : vector<64xf32> to vector<1x64xf32>
    %7 = arith.mulf %2, %2 : vector<32x64xf32>
    %cst_6 = arith.constant dense<0.000000e+00> : vector<64xf32>
    %8 = vector.multi_reduction <add>, %7, %cst_6 [0] : vector<32x64xf32> to vector<64xf32>
    %9 = vector.shape_cast %8 : vector<64xf32> to vector<1x64xf32>
    %10 = tpu.concatenate %6, %9 in 0 : vector<1x64xf32>, vector<1x64xf32> -> vector<2x64xf32>
    %11 = vector.shape_cast %10 : vector<2x64xf32> to vector<1x2x64xf32>
    %c0_7 = arith.constant 0 : index
    %c0_8 = arith.constant 0 : index
    %c0_9 = arith.constant 0 : index
    %12 = vector.load %arg4[%c0_7, %c0_8, %c0_9] : memref<1x2x64xf32, #tpu.memory_space<vmem>>, vector<1x2x64xf32>
    tpu.vector_store %arg4[%c0_7, %c0_8, %c0_9], %11 {strides = array<i32>} : memref<1x2x64xf32, #tpu.memory_space<vmem>>, vector<1x2x64xf32>,
    return
  }
  func.func @transform_0(%arg0: i32) -> (i32, i32) {
    %c0_i32 = arith.constant 0 : i32
    %c0_i32_0 = arith.constant 0 : i32
    return %arg0, %c0_i32 : i32, i32
  }
  func.func @transform_1(%arg0: i32) -> (i32, i32) {
    %c0_i32 = arith.constant 0 : i32
    %c0_i32_0 = arith.constant 0 : i32
    %c0_i32_1 = arith.constant 0 : i32
    return %c0_i32, %c0_i32_0 : i32, i32
  }
  func.func @transform_2(%arg0: i32) -> (i32, i32) {
    %c0_i32 = arith.constant 0 : i32
    %c0_i32_0 = arith.constant 0 : i32
    return %arg0, %c0_i32 : i32, i32
  }
  func.func @transform_3(%arg0: i32) -> (i32, i32, i32) {
    %c0_i32 = arith.constant 0 : i32
    %c0_i32_0 = arith.constant 0 : i32
    %c0_i32_1 = arith.constant 0 : i32
    return %arg0, %c0_i32, %c0_i32_0 : i32, i32, i32
  }
}

module attributes {stable_mosaic.version = 11 : i64} {
  func.func @_bn_act_kernel(%arg0: i32, %arg1: memref<32x64xbf16, #tpu.memory_space<vmem>>, %arg2: memref<1x64xf32, #tpu.memory_space<vmem>>, %arg3: memref<1x64xf32, #tpu.memory_space<vmem>>, %arg4: memref<32x64xbf16, #tpu.memory_space<vmem>>) attributes {dimension_semantics = [#tpu.dimension_semantics<parallel>], iteration_bounds = array<i64: 1>, scalar_prefetch = 0 : i64, scratch_operands = 0 : i64, tpu.core_type = #tpu.core_type<tc>, window_params = [{transform_indices = @transform_0, window_bounds = array<i64: 32, 64>}, {pipeline_mode = #tpu.pipeline_mode<synchronous>, transform_indices = @transform_1, window_bounds = array<i64: 1, 64>}, {pipeline_mode = #tpu.pipeline_mode<synchronous>, transform_indices = @transform_2, window_bounds = array<i64: 1, 64>}, {transform_indices = @transform_3, window_bounds = array<i64: 32, 64>}]} {
    %c0 = arith.constant 0 : index
    %c0_0 = arith.constant 0 : index
    %0 = vector.load %arg1[%c0, %c0_0] : memref<32x64xbf16, #tpu.memory_space<vmem>>, vector<32x64xbf16>
    %1 = arith.extf %0 : vector<32x64xbf16> to vector<32x64xf32>
    %c0_1 = arith.constant 0 : index
    %c0_2 = arith.constant 0 : index
    %2 = vector.load %arg2[%c0_1, %c0_2] : memref<1x64xf32, #tpu.memory_space<vmem>>, vector<1x64xf32>
    %3 = vector.broadcast %2 : vector<1x64xf32> to vector<32x64xf32>
    %4 = arith.mulf %1, %3 : vector<32x64xf32>
    %c0_3 = arith.constant 0 : index
    %c0_4 = arith.constant 0 : index
    %5 = vector.load %arg3[%c0_3, %c0_4] : memref<1x64xf32, #tpu.memory_space<vmem>>, vector<1x64xf32>
    %6 = vector.broadcast %5 : vector<1x64xf32> to vector<32x64xf32>
    %7 = arith.addf %4, %6 : vector<32x64xf32>
    %cst = arith.constant 0.000000e+00 : f32
    %8 = vector.broadcast %cst : f32 to vector<32x64xf32>
    %9 = arith.cmpf ogt, %7, %8 : vector<32x64xf32>
    %cst_5 = arith.constant 2.000000e-01 : f32
    %10 = vector.broadcast %cst_5 : f32 to vector<32x64xf32>
    %11 = arith.mulf %10, %7 : vector<32x64xf32>
    %12 = arith.select %9, %7, %11 : vector<32x64xi1>, vector<32x64xf32>
    %13 = arith.truncf %12 : vector<32x64xf32> to vector<32x64xbf16>
    %c0_6 = arith.constant 0 : index
    %c0_7 = arith.constant 0 : index
    %14 = vector.load %arg4[%c0_6, %c0_7] : memref<32x64xbf16, #tpu.memory_space<vmem>>, vector<32x64xbf16>
    tpu.vector_store %arg4[%c0_6, %c0_7], %13 {strides = array<i32>} : memref<32x64xbf16, #tpu.memory_space<vmem>>, vector<32x64xbf16>,
    return
  }
  func.func @transform_0(%arg0: i32) -> (i32, i32) {
    %c0_i32 = arith.constant 0 : i32
    %c0_i32_0 = arith.constant 0 : i32
    return %arg0, %c0_i32 : i32, i32
  }
  func.func @transform_1(%arg0: i32) -> (i32, i32) {
    %c0_i32 = arith.constant 0 : i32
    %c0_i32_0 = arith.constant 0 : i32
    %c0_i32_1 = arith.constant 0 : i32
    return %c0_i32, %c0_i32_0 : i32, i32
  }
  func.func @transform_2(%arg0: i32) -> (i32, i32) {
    %c0_i32 = arith.constant 0 : i32
    %c0_i32_0 = arith.constant 0 : i32
    %c0_i32_1 = arith.constant 0 : i32
    return %c0_i32, %c0_i32_0 : i32, i32
  }
  func.func @transform_3(%arg0: i32) -> (i32, i32) {
    %c0_i32 = arith.constant 0 : i32
    %c0_i32_0 = arith.constant 0 : i32
    return %arg0, %c0_i32 : i32, i32
  }
}

module attributes {stable_mosaic.version = 11 : i64} {
  func.func @_gemm_bias_act_kernel(%arg0: i32, %arg1: memref<8x1024xbf16, #tpu.memory_space<vmem>>, %arg2: memref<1024x128xbf16, #tpu.memory_space<vmem>>, %arg3: memref<1x128xf32, #tpu.memory_space<vmem>>, %arg4: memref<8x128xf32, #tpu.memory_space<vmem>>) attributes {dimension_semantics = [#tpu.dimension_semantics<parallel>], iteration_bounds = array<i64: 1>, scalar_prefetch = 0 : i64, scratch_operands = 0 : i64, tpu.core_type = #tpu.core_type<tc>, window_params = [{transform_indices = @transform_0, window_bounds = array<i64: 8, 1024>}, {pipeline_mode = #tpu.pipeline_mode<synchronous>, transform_indices = @transform_1, window_bounds = array<i64: 1024, 128>}, {pipeline_mode = #tpu.pipeline_mode<synchronous>, transform_indices = @transform_2, window_bounds = array<i64: 1, 128>}, {transform_indices = @transform_3, window_bounds = array<i64: 8, 128>}]} {
    %c0 = arith.constant 0 : index
    %c0_0 = arith.constant 0 : index
    %0 = vector.load %arg1[%c0, %c0_0] : memref<8x1024xbf16, #tpu.memory_space<vmem>>, vector<8x1024xbf16>
    %c0_1 = arith.constant 0 : index
    %c0_2 = arith.constant 0 : index
    %1 = vector.load %arg2[%c0_1, %c0_2] : memref<1024x128xbf16, #tpu.memory_space<vmem>>, vector<1024x128xbf16>
    %cst = arith.constant dense<0.000000e+00> : vector<8x128xf32>
    %2 = tpu.matmul %0, %1, %cst {dimension_numbers = #tpu.dot_dimension_numbers<[1], [0], [0], [1], [0, 0, 1, 1], [], []>} : vector<8x1024xbf16>, vector<1024x128xbf16>, vector<8x128xf32> -> vector<8x128xf32>
    %c0_3 = arith.constant 0 : index
    %c0_4 = arith.constant 0 : index
    %3 = vector.load %arg3[%c0_3, %c0_4] : memref<1x128xf32, #tpu.memory_space<vmem>>, vector<1x128xf32>
    %4 = vector.broadcast %3 : vector<1x128xf32> to vector<8x128xf32>
    %5 = arith.addf %2, %4 : vector<8x128xf32>
    %6 = math.absf %5 : vector<8x128xf32>
    %cst_5 = arith.constant 0.000000e+00 : f32
    %7 = vector.broadcast %cst_5 : f32 to vector<8x128xf32>
    %8 = arith.subf %7, %6 : vector<8x128xf32>
    %9 = math.exp %8 : vector<8x128xf32>
    %cst_6 = arith.constant 0.000000e+00 : f32
    %10 = vector.broadcast %cst_6 : f32 to vector<8x128xf32>
    %11 = arith.cmpf oge, %5, %10 : vector<8x128xf32>
    %cst_7 = arith.constant 1.000000e+00 : f32
    %12 = vector.broadcast %cst_7 : f32 to vector<8x128xf32>
    %13 = arith.addf %12, %9 : vector<8x128xf32>
    %cst_8 = arith.constant 1.000000e+00 : f32
    %14 = vector.broadcast %cst_8 : f32 to vector<8x128xf32>
    %15 = arith.divf %14, %13 : vector<8x128xf32>
    %cst_9 = arith.constant 1.000000e+00 : f32
    %16 = vector.broadcast %cst_9 : f32 to vector<8x128xf32>
    %17 = arith.addf %16, %9 : vector<8x128xf32>
    %18 = arith.divf %9, %17 : vector<8x128xf32>
    %19 = arith.select %11, %15, %18 : vector<8x128xi1>, vector<8x128xf32>
    %c0_10 = arith.constant 0 : index
    %c0_11 = arith.constant 0 : index
    %20 = vector.load %arg4[%c0_10, %c0_11] : memref<8x128xf32, #tpu.memory_space<vmem>>, vector<8x128xf32>
    tpu.vector_store %arg4[%c0_10, %c0_11], %19 {strides = array<i32>} : memref<8x128xf32, #tpu.memory_space<vmem>>, vector<8x128xf32>,
    return
  }
  func.func @transform_0(%arg0: i32) -> (i32, i32) {
    %c0_i32 = arith.constant 0 : i32
    %c0_i32_0 = arith.constant 0 : i32
    return %arg0, %c0_i32 : i32, i32
  }
  func.func @transform_1(%arg0: i32) -> (i32, i32) {
    %c0_i32 = arith.constant 0 : i32
    %c0_i32_0 = arith.constant 0 : i32
    %c0_i32_1 = arith.constant 0 : i32
    return %c0_i32, %c0_i32_0 : i32, i32
  }
  func.func @transform_2(%arg0: i32) -> (i32, i32) {
    %c0_i32 = arith.constant 0 : i32
    %c0_i32_0 = arith.constant 0 : i32
    %c0_i32_1 = arith.constant 0 : i32
    return %c0_i32, %c0_i32_0 : i32, i32
  }
  func.func @transform_3(%arg0: i32) -> (i32, i32) {
    %c0_i32 = arith.constant 0 : i32
    %c0_i32_0 = arith.constant 0 : i32
    return %arg0, %c0_i32 : i32, i32
  }
}

</mosaic_0001>

<llo_original>
// kernel: netD_forward.8
$region0: #{netD_forward.8}
  #allocation0 [shape = 'u32[]', space=smem, size = 0x4, offset = 0x4, fixed_abs, tag = 'smem constant byte address 0x4 - core index']
  #allocation1 [shape = 'u32[144,128]{1,0:T(1,128)}', space=vmem, size = 0x12000, scoped, tag = 'internal scratch']
  %s0 = inlined_call_operand.vmem [shape: bf16[2048,48], index: 0, kind: input, shape index: {}]
  %s1 = inlined_call_operand.vmem [shape: bf16[48,8], index: 1, kind: input, shape index: {}]
  %s2 = inlined_call_operand.vmem [shape: f32[1,8], index: 2, kind: input, shape index: {}]
  %s3 = inlined_call_operand.vmem [shape: bf16[2048,8], index: 3, kind: output, shape index: {}]
  %s4 = sld [smem:[#allocation0]]
  $region45: #{netD_forward.8} parent=0
    _
  %s6 = ssub.s32 1, %s4
  %s7 = scalar_select 0, %s6, %s4
  loop: start=0, step=1, limit=4
  $region2: #{netD_forward.8} parent=0 // loop_pre_header
    _
  $region3: #{netD_forward.8} parent=0 // loop_header
    %s9 = sphi 0, %s13
    %p10 = scmp.ge.s32.totalorder %s9, 4
    %s19 = sphi 0, %s21
    %s22 = sphi 0, %s19
    %s23 = sphi 0, %s22
    %s39 = sphi 0, %s23
    %s43 = sphi 0, %s43
    %s45 = sphi 0, %s43
    %s46 = sphi 0, %s45
    %s60 = sphi 0, %s46
    %s64 = sphi 0, %s64
    %s66 = sphi 0, %s64
    %s67 = sphi 0, %s66
    %s81 = sphi 0, %s67
    %s87 = sphi 0, %s89
    %s90 = sphi 0, %s87
    %s91 = sphi 0, %s90
    %s107 = sphi 0, %s91
  $region4: #{netD_forward.8} parent=0 // loop_header_branch
    %12 = sbr.rel (%p10) target = $region8
  $region5: #{netD_forward.8} parent=0 // loop_body
    %s14 = ssub.s32 %s9, 1
    %s15 = ssub.s32 %s9, 2
    %s16 = sadd.s32 %s9, 1
    %s17 = ssub.s32 %s9, %s16
    %p18 = scmp.eq.s32.totalorder %s17, 0
    %s20 = sadd.s32 %s19, 1
    %s21 = scalar_select %p18, %s19, %s20
    %p24 = pneg %p18
    %p25 = scmp.eq.s32.totalorder %s9, 1
    %p26 = por %p24, %p25
    %p27 = scmp.ne.s32.totalorder %s19, %s22
    %p28 = scmp.eq.s32.totalorder %s9, 0
    %p29 = por %p27, %p28
    %p30 = scmp.ne.s32.totalorder %s19, %s22
    %p31 = scmp.eq.s32.totalorder %s14, 1
    %p32 = por %p30, %p31
    %p33 = scmp.ne.s32.totalorder %s22, %s23
    %p34 = scmp.eq.s32.totalorder %s14, 0
    %p35 = por %p33, %p34
    %p36 = scmp.ne.s32.totalorder %s22, %s23
    %p37 = scmp.eq.s32.totalorder %s15, 1
    %p38 = por %p36, %p37
    %p40 = scmp.ne.s32.totalorder %s23, %s39
    %p41 = scmp.eq.s32.totalorder %s15, 0
    %p42 = por %p40, %p41
    %s44 = sadd.s32 %s43, 1
    %p47 = scmp.eq.s32.totalorder %s9, 1
    %p48 = scmp.ne.s32.totalorder %s43, %s45
    %p49 = scmp.eq.s32.totalorder %s9, 0
    %p50 = por %p48, %p49
    %p51 = scmp.ne.s32.totalorder %s43, %s45
    %p52 = scmp.eq.s32.totalorder %s14, 1
    %p53 = por %p51, %p52
    %p54 = scmp.ne.s32.totalorder %s45, %s46
    %p55 = scmp.eq.s32.totalorder %s14, 0
    %p56 = por %p54, %p55
    %p57 = scmp.ne.s32.totalorder %s45, %s46
    %p58 = scmp.eq.s32.totalorder %s15, 1
    %p59 = por %p57, %p58
    %p61 = scmp.ne.s32.totalorder %s46, %s60
    %p62 = scmp.eq.s32.totalorder %s15, 0
    %p63 = por %p61, %p62
    %s65 = sadd.s32 %s64, 1
    %p68 = scmp.eq.s32.totalorder %s9, 1
    %p69 = scmp.ne.s32.totalorder %s64, %s66
    %p70 = scmp.eq.s32.totalorder %s9, 0
    %p71 = por %p69, %p70
    %p72 = scmp.ne.s32.totalorder %s64, %s66
    %p73 = scmp.eq.s32.totalorder %s14, 1
    %p74 = por %p72, %p73
    %p75 = scmp.ne.s32.totalorder %s66, %s67
    %p76 = scmp.eq.s32.totalorder %s14, 0
    %p77 = por %p75, %p76
    %p78 = scmp.ne.s32.totalorder %s66, %s67
    %p79 = scmp.eq.s32.totalorder %s15, 1
    %p80 = por %p78, %p79
    %p82 = scmp.ne.s32.totalorder %s67, %s81
    %p83 = scmp.eq.s32.totalorder %s15, 0
    %p84 = por %p82, %p83
    %s85 = ssub.s32 %s9, %s16
    %p86 = scmp.eq.s32.totalorder %s85, 0
    %s88 = sadd.s32 %s87, 1
    %s89 = scalar_select %p86, %s87, %s88
    %p92 = pneg %p86
    %p93 = scmp.eq.s32.totalorder %s9, 1
    %p94 = por %p92, %p93
    %p95 = scmp.ne.s32.totalorder %s87, %s90
    %p96 = scmp.eq.s32.totalorder %s9, 0
    %p97 = por %p95, %p96
    %p98 = scmp.ne.s32.totalorder %s87, %s90
    %p99 = scmp.eq.s32.totalorder %s14, 1
    %p100 = por %p98, %p99
    %p101 = scmp.ne.s32.totalorder %s90, %s91
    %p102 = scmp.eq.s32.totalorder %s14, 0
    %p103 = por %p101, %p102
    %p104 = scmp.ne.s32.totalorder %s90, %s91
    %p105 = scmp.eq.s32.totalorder %s15, 1
    %p106 = por %p104, %p105
    %p108 = scmp.ne.s32.totalorder %s91, %s107
    %p109 = scmp.eq.s32.totalorder %s15, 0
    %p110 = por %p108, %p109
    %p111 = scmp.le.s32.totalorder 1, %s9
    %p112 = scmp.lt.s32.totalorder %s9, 3
    %p113 = pnand %p111, %p112
    %p114 = pneg %p113
    // Predicated region
    $region9: #{netD_forward.8} parent=5 // pred_check
      _
    $region10: #{netD_forward.8} parent=5 // pred_check_branch
      %116 = sbr.rel (%p113) target = $region12
    $region11: #{netD_forward.8} parent=5 // pred_region
      %s117 = ssub.s32 %s9, 1
      // Predicated region
      $region13: #{netD_forward.8} parent=11 // pred_check
        %p118 = pneg %p56
      $region14: #{netD_forward.8} parent=11 // pred_check_branch
        %120 = sbr.rel (%p118) target = $region16
      $region15: #{netD_forward.8} parent=11 // pred_region
        _
      $region16: #{netD_forward.8} parent=11 // pred_fallthru
        _
      // Predicated region
      $region17: #{netD_forward.8} parent=11 // pred_check
        %p121 = pneg %p77
      $region18: #{netD_forward.8} parent=11 // pred_check_branch
        %123 = sbr.rel (%p121) target = $region20
      $region19: #{netD_forward.8} parent=11 // pred_region
        _
      $region20: #{netD_forward.8} parent=11 // pred_fallthru
        _
    $region12: #{netD_forward.8} parent=5 // pred_fallthru
      _
    %p124 = scmp.lt.s32.totalorder %s9, 2
    // Predicated region
    $region21: #{netD_forward.8} parent=5 // pred_check
      %p125 = pneg %p124
    $region22: #{netD_forward.8} parent=5 // pred_check_branch
      %127 = sbr.rel (%p125) target = $region24
    $region23: #{netD_forward.8} parent=5 // pred_region
      // Predicated region
      $region25: #{netD_forward.8} parent=23 // pred_check
        %p128 = pneg %p29
      $region26: #{netD_forward.8} parent=23 // pred_check_branch
        %130 = sbr.rel (%p128) target = $region28
      $region27: #{netD_forward.8} parent=23 // pred_region
        %s131 = smul.u32 128, %s9
        %p132 = scmp.lt.s32.totalorder %s131, 255
        %s133 = scalar_select %p132, %s131, 255
        %s134 = smul.addr %s133, 4
        %s135 = scalar_lea.vmem %s0, %s134
        %s136 = smul.u32 128, %s9
      $region28: #{netD_forward.8} parent=23 // pred_fallthru
        _
    $region24: #{netD_forward.8} parent=5 // pred_fallthru
      _
    %p137 = scmp.le.s32.totalorder 1, %s9
    %p138 = scmp.lt.s32.totalorder %s9, 3
    %p139 = pnand %p137, %p138
    %p140 = pneg %p139
    // Predicated region
    $region29: #{netD_forward.8} parent=5 // pred_check
      _
    $region30: #{netD_forward.8} parent=5 // pred_check_branch
      %142 = sbr.rel (%p139) target = $region32
    $region31: #{netD_forward.8} parent=5 // pred_region
      %s143 = ssub.s32 %s9, 1
      %s144 = smul.u32 128, %s14
      %p145 = scmp.lt.s32.totalorder %s144, 255
      %s146 = scalar_select %p145, %s144, 255
      %s147 = smul.addr %s146, 4
      %s148 = scalar_lea.vmem %s0, %s147
      %p149 = pneg %p35
      %p150 = pneg %p32
      %p151 = pneg %p56
      %p152 = pneg %p53
      %p153 = pneg %p77
      %p154 = pneg %p74
      %p155 = pneg %p103
      %p156 = pneg %p100
      %s157 = smul.u32 128, %s14
      %p158 = scmp.lt.s32.totalorder %s157, 255
      %s159 = scalar_select %p158, %s157, 255
      %s160 = smul.addr %s159, 4
      %s161 = scalar_lea.vmem %s3, %s160
      %s162 = smul.u32 128, %s14
      %p163 = scmp.lt.s32.totalorder %s162, 255
      %s164 = scalar_select %p163, %s162, 255
      %s165 = smul.addr %s164, 4
      %s166 = scalar_lea.vmem %s0, %s165
      %s167 = smul.u32 128, %s14
      %s168 = smul.u32 128, %s14
      %p169 = scmp.lt.s32.totalorder %s168, 255
      %s170 = scalar_select %p169, %s168, 255
      %s171 = smul.addr %s170, 4
      %s172 = scalar_lea.vmem %s3, %s171
      %s173 = smul.u32 128, %s14
      %v175 = vld [vmem:[%s166] sm:$0xf]
      %v176 = vld [vmem:[%s166 + $0x4] sm:$0xf]
      %v177 = vld [vmem:[%s166 + $0x8] sm:$0xf]
      %v178 = vld [vmem:[%s166 + $0xc] sm:$0xf]
      %v179 = vld [vmem:[%s166 + $0x10] sm:$0xf]
      %v180 = vld [vmem:[%s166 + $0x14] sm:$0xf]
      %v181 = vld [vmem:[%s166 + $0x18] sm:$0xf]
      %v182 = vld [vmem:[%s166 + $0x1c] sm:$0xf]
      %v183 = vld [vmem:[%s166 + $0x20] sm:$0xf]
      %v184 = vld [vmem:[%s166 + $0x24] sm:$0xf]
      %v185 = vld [vmem:[%s166 + $0x28] sm:$0xf]
      %v186 = vld [vmem:[%s166 + $0x2c] sm:$0xf]
      %v187 = vld [vmem:[%s166 + $0x30] sm:$0xf]
      %v188 = vld [vmem:[%s166 + $0x34] sm:$0xf]
      %v189 = vld [vmem:[%s166 + $0x38] sm:$0xf]
      %v190 = vld [vmem:[%s166 + $0x3c] sm:$0xf]
      %v191 = vld [vmem:[%s166 + $0x40] sm:$0xf]
      %v192 = vld [vmem:[%s166 + $0x44] sm:$0xf]
      %v193 = vld [vmem:[%s166 + $0x48] sm:$0xf]
      %v194 = vld [vmem:[%s166 + $0x4c] sm:$0xf]
      %v195 = vld [vmem:[%s166 + $0x50] sm:$0xf]
      %v196 = vld [vmem:[%s166 + $0x54] sm:$0xf]
      %v197 = vld [vmem:[%s166 + $0x58] sm:$0xf]
      %v198 = vld [vmem:[%s166 + $0x5c] sm:$0xf]
      %v199 = vld [vmem:[%s166 + $0x60] sm:$0xf]
      %v200 = vld [vmem:[%s166 + $0x64] sm:$0xf]
      %v201 = vld [vmem:[%s166 + $0x68] sm:$0xf]
      %v202 = vld [vmem:[%s166 + $0x6c] sm:$0xf]
      %v203 = vld [vmem:[%s166 + $0x70] sm:$0xf]
      %v204 = vld [vmem:[%s166 + $0x74] sm:$0xf]
      %v205 = vld [vmem:[%s166 + $0x78] sm:$0xf]
      %v206 = vld [vmem:[%s166 + $0x7c] sm:$0xf]
      %v207 = vld [vmem:[%s166 + $0x80] sm:$0xf]
      %v208 = vld [vmem:[%s166 + $0x84] sm:$0xf]
      %v209 = vld [vmem:[%s166 + $0x88] sm:$0xf]
      %v210 = vld [vmem:[%s166 + $0x8c] sm:$0xf]
      %v211 = vld [vmem:[%s166 + $0x90] sm:$0xf]
      %v212 = vld [vmem:[%s166 + $0x94] sm:$0xf]
      %v213 = vld [vmem:[%s166 + $0x98] sm:$0xf]
      %v214 = vld [vmem:[%s166 + $0x9c] sm:$0xf]
      %v215 = vld [vmem:[%s166 + $0xa0] sm:$0xf]
      %v216 = vld [vmem:[%s166 + $0xa4] sm:$0xf]
      %v217 = vld [vmem:[%s166 + $0xa8] sm:$0xf]
      %v218 = vld [vmem:[%s166 + $0xac] sm:$0xf]
      %v219 = vld [vmem:[%s166 + $0xb0] sm:$0xf]
      %v220 = vld [vmem:[%s166 + $0xb4] sm:$0xf]
      %v221 = vld [vmem:[%s166 + $0xb8] sm:$0xf]
      %v222 = vld [vmem:[%s166 + $0xbc] sm:$0xf]
      %v223 = vld [vmem:[%s166 + $0xc0] sm:$0xf]
      %v224 = vld [vmem:[%s166 + $0xc4] sm:$0xf]
      %v225 = vld [vmem:[%s166 + $0xc8] sm:$0xf]
      %v226 = vld [vmem:[%s166 + $0xcc] sm:$0xf]
      %v227 = vld [vmem:[%s166 + $0xd0] sm:$0xf]
      %v228 = vld [vmem:[%s166 + $0xd4] sm:$0xf]
      %v229 = vld [vmem:[%s166 + $0xd8] sm:$0xf]
      %v230 = vld [vmem:[%s166 + $0xdc] sm:$0xf]
      %v231 = vld [vmem:[%s166 + $0xe0] sm:$0xf]
      %v232 = vld [vmem:[%s166 + $0xe4] sm:$0xf]
      %v233 = vld [vmem:[%s166 + $0xe8] sm:$0xf]
      %v234 = vld [vmem:[%s166 + $0xec] sm:$0xf]
      %v235 = vld [vmem:[%s166 + $0xf0] sm:$0xf]
      %v236 = vld [vmem:[%s166 + $0xf4] sm:$0xf]
      %v237 = vld [vmem:[%s166 + $0xf8] sm:$0xf]
      %v238 = vld [vmem:[%s166 + $0xfc] sm:$0xf]
      %v239 = vld [vmem:[%s166 + $0x100] sm:$0xf]
      %v240 = vld [vmem:[%s166 + $0x104] sm:$0xf]
      %v241 = vld [vmem:[%s166 + $0x108] sm:$0xf]
      %v242 = vld [vmem:[%s166 + $0x10c] sm:$0xf]
      %v243 = vld [vmem:[%s166 + $0x110] sm:$0xf]
      %v244 = vld [vmem:[%s166 + $0x114] sm:$0xf]
      %v245 = vld [vmem:[%s166 + $0x118] sm:$0xf]
      %v246 = vld [vmem:[%s166 + $0x11c] sm:$0xf]
      %v247 = vld [vmem:[%s166 + $0x120] sm:$0xf]
      %v248 = vld [vmem:[%s166 + $0x124] sm:$0xf]
      %v249 = vld [vmem:[%s166 + $0x128] sm:$0xf]
      %v250 = vld [vmem:[%s166 + $0x12c] sm:$0xf]
      %v251 = vld [vmem:[%s166 + $0x130] sm:$0xf]
      %v252 = vld [vmem:[%s166 + $0x134] sm:$0xf]
      %v253 = vld [vmem:[%s166 + $0x138] sm:$0xf]
      %v254 = vld [vmem:[%s166 + $0x13c] sm:$0xf]
      %v255 = vld [vmem:[%s166 + $0x140] sm:$0xf]
      %v256 = vld [vmem:[%s166 + $0x144] sm:$0xf]
      %v257 = vld [vmem:[%s166 + $0x148] sm:$0xf]
      %v258 = vld [vmem:[%s166 + $0x14c] sm:$0xf]
      %v259 = vld [vmem:[%s166 + $0x150] sm:$0xf]
      %v260 = vld [vmem:[%s166 + $0x154] sm:$0xf]
      %v261 = vld [vmem:[%s166 + $0x158] sm:$0xf]
      %v262 = vld [vmem:[%s166 + $0x15c] sm:$0xf]
      %v263 = vld [vmem:[%s166 + $0x160] sm:$0xf]
      %v264 = vld [vmem:[%s166 + $0x164] sm:$0xf]
      %v265 = vld [vmem:[%s166 + $0x168] sm:$0xf]
      %v266 = vld [vmem:[%s166 + $0x16c] sm:$0xf]
      %v267 = vld [vmem:[%s166 + $0x170] sm:$0xf]
      %v268 = vld [vmem:[%s166 + $0x174] sm:$0xf]
      %v269 = vld [vmem:[%s166 + $0x178] sm:$0xf]
      %v270 = vld [vmem:[%s166 + $0x17c] sm:$0xf]
      %v271 = vld [vmem:[%s166 + $0x180] sm:$0xf]
      %v272 = vld [vmem:[%s166 + $0x184] sm:$0xf]
      %v273 = vld [vmem:[%s166 + $0x188] sm:$0xf]
      %v274 = vld [vmem:[%s166 + $0x18c] sm:$0xf]
      %v275 = vld [vmem:[%s166 + $0x190] sm:$0xf]
      %v276 = vld [vmem:[%s166 + $0x194] sm:$0xf]
      %v277 = vld [vmem:[%s166 + $0x198] sm:$0xf]
      %v278 = vld [vmem:[%s166 + $0x19c] sm:$0xf]
      %v279 = vld [vmem:[%s166 + $0x1a0] sm:$0xf]
      %v280 = vld [vmem:[%s166 + $0x1a4] sm:$0xf]
      %v281 = vld [vmem:[%s166 + $0x1a8] sm:$0xf]
      %v282 = vld [vmem:[%s166 + $0x1ac] sm:$0xf]
      %v283 = vld [vmem:[%s166 + $0x1b0] sm:$0xf]
      %v284 = vld [vmem:[%s166 + $0x1b4] sm:$0xf]
      %v285 = vld [vmem:[%s166 + $0x1b8] sm:$0xf]
      %v286 = vld [vmem:[%s166 + $0x1bc] sm:$0xf]
      %v287 = vld [vmem:[%s166 + $0x1c0] sm:$0xf]
      %v288 = vld [vmem:[%s166 + $0x1c4] sm:$0xf]
      %v289 = vld [vmem:[%s166 + $0x1c8] sm:$0xf]
      %v290 = vld [vmem:[%s166 + $0x1cc] sm:$0xf]
      %v291 = vld [vmem:[%s166 + $0x1d0] sm:$0xf]
      %v292 = vld [vmem:[%s166 + $0x1d4] sm:$0xf]
      %v293 = vld [vmem:[%s166 + $0x1d8] sm:$0xf]
      %v294 = vld [vmem:[%s166 + $0x1dc] sm:$0xf]
      %v295 = vld [vmem:[%s166 + $0x1e0] sm:$0xf]
      %v296 = vld [vmem:[%s166 + $0x1e4] sm:$0xf]
      %v297 = vld [vmem:[%s166 + $0x1e8] sm:$0xf]
      %v298 = vld [vmem:[%s166 + $0x1ec] sm:$0xf]
      %v299 = vld [vmem:[%s166 + $0x1f0] sm:$0xf]
      %v300 = vld [vmem:[%s166 + $0x1f4] sm:$0xf]
      %v301 = vld [vmem:[%s166 + $0x1f8] sm:$0xf]
      %v302 = vld [vmem:[%s166 + $0x1fc] sm:$0xf]
      %v303 = vld [vmem:[%s1] sm:$0xf]
      %v304 = vld [vmem:[%s1 + $0x4] sm:$0xf]
      %v305 = vld [vmem:[%s1 + $0x8] sm:$0xf]
      %v306 = vld [vmem:[%s1 + $0xc] sm:$0xf]
      %v307 = vld [vmem:[%s1 + $0x10] sm:$0xf]
      %v308 = vld [vmem:[%s1 + $0x14] sm:$0xf]
      %v309 = vld [vmem:[%s2] sm:$0x1]
      %v311 = vlaneseq
      %v312 = vshrl.u32 %v311, 7
      %v313 = vsub.s32 0, %v312
      %v314 = vrot.slane %v309, %v313
      %v444 = vunpack.c.l.b16 %v175
      %v445 = vunpack.c.l.b16 %v176
      %v446 = vunpack.c.l.b16 %v177
      %v447 = vunpack.c.l.b16 %v178
      %v448 = vunpack.c.l.b16 %v179
      %v449 = vunpack.c.l.b16 %v180
      %v450 = vunpack.c.l.b16 %v181
      %v451 = vunpack.c.l.b16 %v182
      %v452 = vunpack.c.l.b16 %v183
      %v453 = vunpack.c.l.b16 %v184
      %v454 = vunpack.c.l.b16 %v185
      %v455 = vunpack.c.l.b16 %v186
      %v456 = vunpack.c.l.b16 %v187
      %v457 = vunpack.c.l.b16 %v188
      %v458 = vunpack.c.l.b16 %v189
      %v459 = vunpack.c.l.b16 %v190
      %v460 = vunpack.c.l.b16 %v191
      %v461 = vunpack.c.l.b16 %v192
      %v462 = vunpack.c.l.b16 %v193
      %v463 = vunpack.c.l.b16 %v194
      %v464 = vunpack.c.l.b16 %v195
      %v465 = vunpack.c.l.b16 %v196
      %v466 = vunpack.c.l.b16 %v197
      %v467 = vunpack.c.l.b16 %v198
      %v468 = vunpack.c.l.b16 %v199
      %v469 = vunpack.c.l.b16 %v200
      %v470 = vunpack.c.l.b16 %v201
      %v471 = vunpack.c.l.b16 %v202
      %v472 = vunpack.c.l.b16 %v203
      %v473 = vunpack.c.l.b16 %v204
      %v474 = vunpack.c.l.b16 %v205
      %v475 = vunpack.c.l.b16 %v206
      %v476 = vunpack.c.l.b16 %v207
      %v477 = vunpack.c.l.b16 %v208
      %v478 = vunpack.c.l.b16 %v209
      %v479 = vunpack.c.l.b16 %v210
      %v480 = vunpack.c.l.b16 %v211
      %v481 = vunpack.c.l.b16 %v212
      %v482 = vunpack.c.l.b16 %v213
      %v483 = vunpack.c.l.b16 %v214
      %v484 = vunpack.c.l.b16 %v215
      %v485 = vunpack.c.l.b16 %v216
      %v486 = vunpack.c.l.b16 %v217
      %v487 = vunpack.c.l.b16 %v218
      %v488 = vunpack.c.l.b16 %v219
      %v489 = vunpack.c.l.b16 %v220
      %v490 = vunpack.c.l.b16 %v221
      %v491 = vunpack.c.l.b16 %v222
      %v492 = vunpack.c.l.b16 %v223
      %v493 = vunpack.c.l.b16 %v224
      %v494 = vunpack.c.l.b16 %v225
      %v495 = vunpack.c.l.b16 %v226
      %v496 = vunpack.c.l.b16 %v227
      %v497 = vunpack.c.l.b16 %v228
      %v498 = vunpack.c.l.b16 %v229
      %v499 = vunpack.c.l.b16 %v230
      %v500 = vunpack.c.l.b16 %v231
      %v501 = vunpack.c.l.b16 %v232
      %v502 = vunpack.c.l.b16 %v233
      %v503 = vunpack.c.l.b16 %v234
      %v504 = vunpack.c.l.b16 %v235
      %v505 = vunpack.c.l.b16 %v236
      %v506 = vunpack.c.l.b16 %v237
      %v507 = vunpack.c.l.b16 %v238
      %v508 = vunpack.c.l.b16 %v239
      %v509 = vunpack.c.l.b16 %v240
      %v510 = vunpack.c.l.b16 %v241
      %v511 = vunpack.c.l.b16 %v242
      %v512 = vunpack.c.l.b16 %v243
      %v513 = vunpack.c.l.b16 %v244
      %v514 = vunpack.c.l.b16 %v245
      %v515 = vunpack.c.l.b16 %v246
      %v516 = vunpack.c.l.b16 %v247
      %v517 = vunpack.c.l.b16 %v248
      %v518 = vunpack.c.l.b16 %v249
      %v519 = vunpack.c.l.b16 %v250
      %v520 = vunpack.c.l.b16 %v251
      %v521 = vunpack.c.l.b16 %v252
      %v522 = vunpack.c.l.b16 %v253
      %v523 = vunpack.c.l.b16 %v254
      %v524 = vunpack.c.l.b16 %v255
      %v525 = vunpack.c.l.b16 %v256
      %v526 = vunpack.c.l.b16 %v257
      %v527 = vunpack.c.l.b16 %v258
      %v528 = vunpack.c.l.b16 %v259
      %v529 = vunpack.c.l.b16 %v260
      %v530 = vunpack.c.l.b16 %v261
      %v531 = vunpack.c.l.b16 %v262
      %v532 = vunpack.c.l.b16 %v263
      %v533 = vunpack.c.l.b16 %v264
      %v534 = vunpack.c.l.b16 %v265
      %v535 = vunpack.c.l.b16 %v266
      %v536 = vunpack.c.l.b16 %v267
      %v537 = vunpack.c.l.b16 %v268
      %v538 = vunpack.c.l.b16 %v269
      %v539 = vunpack.c.l.b16 %v270
      %v540 = vunpack.c.l.b16 %v271
      %v541 = vunpack.c.l.b16 %v272
      %v542 = vunpack.c.l.b16 %v273
      %v543 = vunpack.c.l.b16 %v274
      %v544 = vunpack.c.l.b16 %v275
      %v545 = vunpack.c.l.b16 %v276
      %v546 = vunpack.c.l.b16 %v277
      %v547 = vunpack.c.l.b16 %v278
      %v548 = vunpack.c.l.b16 %v279
      %v549 = vunpack.c.l.b16 %v280
      %v550 = vunpack.c.l.b16 %v281
      %v551 = vunpack.c.l.b16 %v282
      %v552 = vunpack.c.l.b16 %v283
      %v553 = vunpack.c.l.b16 %v284
      %v554 = vunpack.c.l.b16 %v285
      %v555 = vunpack.c.l.b16 %v286
      %v556 = vunpack.c.l.b16 %v287
      %v557 = vunpack.c.l.b16 %v288
      %v558 = vunpack.c.l.b16 %v289
      %v559 = vunpack.c.l.b16 %v290
      %v560 = vunpack.c.l.b16 %v291
      %v561 = vunpack.c.l.b16 %v292
      %v562 = vunpack.c.l.b16 %v293
      %v563 = vunpack.c.l.b16 %v294
      %v564 = vunpack.c.l.b16 %v295
      %v565 = vunpack.c.l.b16 %v296
      %v566 = vunpack.c.l.b16 %v297
      %v567 = vunpack.c.l.b16 %v298
      %v568 = vunpack.c.l.b16 %v299
      %v569 = vunpack.c.l.b16 %v300
      %v570 = vunpack.c.l.b16 %v301
      %v571 = vunpack.c.l.b16 %v302
      %v572 = vpack.c.b16 %v445, %v444
      %v573 = vpack.c.b16 %v447, %v446
      %v574 = vpack.c.b16 %v449, %v448
      %v575 = vpack.c.b16 %v451, %v450
      %v576 = vpack.c.b16 %v453, %v452
      %v577 = vpack.c.b16 %v455, %v454
      %v578 = vpack.c.b16 %v457, %v456
      %v579 = vpack.c.b16 %v459, %v458
      %v580 = vpack.c.b16 %v461, %v460
      %v581 = vpack.c.b16 %v463, %v462
      %v582 = vpack.c.b16 %v465, %v464
      %v583 = vpack.c.b16 %v467, %v466
      %v584 = vpack.c.b16 %v469, %v468
      %v585 = vpack.c.b16 %v471, %v470
      %v586 = vpack.c.b16 %v473, %v472
      %v587 = vpack.c.b16 %v475, %v474
      %v588 = vpack.c.b16 %v477, %v476
      %v589 = vpack.c.b16 %v479, %v478
      %v590 = vpack.c.b16 %v481, %v480
      %v591 = vpack.c.b16 %v483, %v482
      %v592 = vpack.c.b16 %v485, %v484
      %v593 = vpack.c.b16 %v487, %v486
      %v594 = vpack.c.b16 %v489, %v488
      %v595 = vpack.c.b16 %v491, %v490
      %v596 = vpack.c.b16 %v493, %v492
      %v597 = vpack.c.b16 %v495, %v494
      %v598 = vpack.c.b16 %v497, %v496
      %v599 = vpack.c.b16 %v499, %v498
      %v600 = vpack.c.b16 %v501, %v500
      %v601 = vpack.c.b16 %v503, %v502
      %v602 = vpack.c.b16 %v505, %v504
      %v603 = vpack.c.b16 %v507, %v506
      %v604 = vpack.c.b16 %v509, %v508
      %v605 = vpack.c.b16 %v511, %v510
      %v606 = vpack.c.b16 %v513, %v512
      %v607 = vpack.c.b16 %v515, %v514
      %v608 = vpack.c.b16 %v517, %v516
      %v609 = vpack.c.b16 %v519, %v518
      %v610 = vpack.c.b16 %v521, %v520
      %v611 = vpack.c.b16 %v523, %v522
      %v612 = vpack.c.b16 %v525, %v524
      %v613 = vpack.c.b16 %v527, %v526
      %v614 = vpack.c.b16 %v529, %v528
      %v615 = vpack.c.b16 %v531, %v530
      %v616 = vpack.c.b16 %v533, %v532
      %v617 = vpack.c.b16 %v535, %v534
      %v618 = vpack.c.b16 %v537, %v536
      %v619 = vpack.c.b16 %v539, %v538
      %v620 = vpack.c.b16 %v541, %v540
      %v621 = vpack.c.b16 %v543, %v542
      %v622 = vpack.c.b16 %v545, %v544
      %v623 = vpack.c.b16 %v547, %v546
      %v624 = vpack.c.b16 %v549, %v548
      %v625 = vpack.c.b16 %v551, %v550
      %v626 = vpack.c.b16 %v553, %v552
      %v627 = vpack.c.b16 %v555, %v554
      %v628 = vpack.c.b16 %v557, %v556
      %v629 = vpack.c.b16 %v559, %v558
      %v630 = vpack.c.b16 %v561, %v560
      %v631 = vpack.c.b16 %v563, %v562
      %v632 = vpack.c.b16 %v565, %v564
      %v633 = vpack.c.b16 %v567, %v566
      %v634 = vpack.c.b16 %v569, %v568
      %v635 = vpack.c.b16 %v571, %v570
      %v642 = vunpack.c.l.b16 %v303
      %v643 = vunpack.c.l.b16 %v304
      %v644 = vunpack.c.l.b16 %v305
      %v645 = vunpack.c.l.b16 %v306
      %v646 = vunpack.c.l.b16 %v307
      %v647 = vunpack.c.l.b16 %v308
      %v648 = vpack.c.b16 %v643, %v642
      %v649 = vpack.c.b16 %v645, %v644
      %v650 = vpack.c.b16 %v647, %v646
      %vm654 = vcmask 392192
      %v656 = vsel %vm654, %v572, 0
      %v659 = vsel %vm654, %v573, 0
      %v662 = vsel %vm654, %v574, 0
      %v665 = vsel %vm654, %v575, 0
      %v668 = vsel %vm654, %v576, 0
      %v671 = vsel %vm654, %v577, 0
      %v674 = vsel %vm654, %v578, 0
      %v677 = vsel %vm654, %v579, 0
      %v680 = vsel %vm654, %v580, 0
      %v683 = vsel %vm654, %v581, 0
      %v686 = vsel %vm654, %v582, 0
      %v689 = vsel %vm654, %v583, 0
      %v692 = vsel %vm654, %v584, 0
      %v695 = vsel %vm654, %v585, 0
      %v698 = vsel %vm654, %v586, 0
      %v701 = vsel %vm654, %v587, 0
      %v704 = vsel %vm654, %v588, 0
      %v707 = vsel %vm654, %v589, 0
      %v710 = vsel %vm654, %v590, 0
      %v713 = vsel %vm654, %v591, 0
      %v716 = vsel %vm654, %v592, 0
      %v719 = vsel %vm654, %v593, 0
      %v722 = vsel %vm654, %v594, 0
      %v725 = vsel %vm654, %v595, 0
      %v728 = vsel %vm654, %v596, 0
      %v731 = vsel %vm654, %v597, 0
      %v734 = vsel %vm654, %v598, 0
      %v737 = vsel %vm654, %v599, 0
      %v740 = vsel %vm654, %v600, 0
      %v743 = vsel %vm654, %v601, 0
      %v746 = vsel %vm654, %v602, 0
      %v749 = vsel %vm654, %v603, 0
      %v752 = vsel %vm654, %v604, 0
      %v755 = vsel %vm654, %v605, 0
      %v758 = vsel %vm654, %v606, 0
      %v761 = vsel %vm654, %v607, 0
      %v764 = vsel %vm654, %v608, 0
      %v767 = vsel %vm654, %v609, 0
      %v770 = vsel %vm654, %v610, 0
      %v773 = vsel %vm654, %v611, 0
      %v776 = vsel %vm654, %v612, 0
      %v779 = vsel %vm654, %v613, 0
      %v782 = vsel %vm654, %v614, 0
      %v785 = vsel %vm654, %v615, 0
      %v788 = vsel %vm654, %v616, 0
      %v791 = vsel %vm654, %v617, 0
      %v794 = vsel %vm654, %v618, 0
      %v797 = vsel %vm654, %v619, 0
      %v800 = vsel %vm654, %v620, 0
      %v803 = vsel %vm654, %v621, 0
      %v806 = vsel %vm654, %v622, 0
      %v809 = vsel %vm654, %v623, 0
      %v812 = vsel %vm654, %v624, 0
      %v815 = vsel %vm654, %v625, 0
      %v818 = vsel %vm654, %v626, 0
      %v821 = vsel %vm654, %v627, 0
      %v824 = vsel %vm654, %v628, 0
      %v827 = vsel %vm654, %v629, 0
      %v830 = vsel %vm654, %v630, 0
      %v833 = vsel %vm654, %v631, 0
      %v836 = vsel %vm654, %v632, 0
      %v839 = vsel %vm654, %v633, 0
      %v842 = vsel %vm654, %v634, 0
      %v845 = vsel %vm654, %v635, 0
      %847 = vmatprep.subr.bf16.mxu0 0
      %848 = vmatpush1.bf16.msra.mxu0 0
      %849 = vmatprep.subr.bf16.mxu0 0
      %850 = vmatpush1.bf16.msra.mxu0 0
      %851 = vmatprep.subr.bf16.mxu0 0
      %852 = vmatpush1.bf16.msra.mxu0 0
      %853 = vmatprep.subr.bf16.mxu0 0
      %854 = vmatpush1.bf16.msra.mxu0 0
      %855 = vmatprep.subr.bf16.mxu0 0
      %856 = vmatpush1.bf16.msra.mxu0 0
      %857 = vmatprep.subr.bf16.mxu0 0
      %858 = vmatpush1.bf16.msra.mxu0 %v650
      %859 = vmatprep.subr.bf16.mxu0 0
      %860 = vmatpush1.bf16.msra.mxu0 %v649
      %861 = vmatprep.subr.bf16.mxu0 0
      %862 = vmatpush1.bf16.msra.mxu0 %v648
      %863 = vmatprep.subr.bf16.mxu0 0
      %864 = vmatpush2.bf16.msra.mxu0 0
      %865 = vmatprep.subr.bf16.mxu0 0
      %866 = vmatpush2.bf16.msra.mxu0 0
      %867 = vmatprep.subr.bf16.mxu0 0
      %868 = vmatpush2.bf16.msra.mxu0 0
      %869 = vmatprep.subr.bf16.mxu0 0
      %870 = vmatpush2.bf16.msra.mxu0 0
      %871 = vmatprep.subr.bf16.mxu0 0
      %872 = vmatpush2.bf16.msra.mxu0 0
      %873 = vmatprep.subr.bf16.mxu0 0
      %874 = vmatpush2.bf16.msra.mxu0 0
      %875 = vmatprep.subr.bf16.mxu0 0
      %876 = vmatpush2.bf16.msra.mxu0 0
      %877 = vmatprep.subr.bf16.mxu0 0
      %878 = vmatpush2.bf16.msra.mxu0 0
      %879 = vmatprep.mubr.bf16.mxu0 0
      %880 = vmatmul.mubr.bf16.gmra.mxu0 %v656
      %v881 = vpop.f32.mrf.mxu0
      %v882 = vadd.f32 %v314, %v881
      %v883 = vpop.f32.mrf.mxu0
      %v884 = vpop.f32.mrf.mxu0
      %v885 = vadd.f32 %v314, %v884
      %v886 = vpop.f32.mrf.mxu0
      %887 = vmatprep.mubr.bf16.mxu0 0
      %888 = vmatmul.mubr.bf16.gmra.mxu0 %v659
      %v889 = vpop.f32.mrf.mxu0
      %v890 = vadd.f32 %v314, %v889
      %v891 = vpop.f32.mrf.mxu0
      %v892 = vpop.f32.mrf.mxu0
      %v893 = vadd.f32 %v314, %v892
      %v894 = vpop.f32.mrf.mxu0
      %895 = vmatprep.mubr.bf16.mxu0 0
      %896 = vmatmul.mubr.bf16.gmra.mxu0 %v662
      %v897 = vpop.f32.mrf.mxu0
      %v898 = vadd.f32 %v314, %v897
      %v899 = vpop.f32.mrf.mxu0
      %v900 = vpop.f32.mrf.mxu0
      %v901 = vadd.f32 %v314, %v900
      %v902 = vpop.f32.mrf.mxu0
      %903 = vmatprep.mubr.bf16.mxu0 0
      %904 = vmatmul.mubr.bf16.gmra.mxu0 %v665
      %v905 = vpop.f32.mrf.mxu0
      %v906 = vadd.f32 %v314, %v905
      %v907 = vpop.f32.mrf.mxu0
      %v908 = vpop.f32.mrf.mxu0
      %v909 = vadd.f32 %v314, %v908
      %v910 = vpop.f32.mrf.mxu0
      %911 = vmatprep.mubr.bf16.mxu0 0
      %912 = vmatmul.mubr.bf16.gmra.mxu0 %v668
      %v913 = vpop.f32.mrf.mxu0
      %v914 = vadd.f32 %v314, %v913
      %v915 = vpop.f32.mrf.mxu0
      %v916 = vpop.f32.mrf.mxu0
      %v917 = vadd.f32 %v314, %v916
      %v918 = vpop.f32.mrf.mxu0
      %919 = vmatprep.mubr.bf16.mxu0 0
      %920 = vmatmul.mubr.bf16.gmra.mxu0 %v671
      %v921 = vpop.f32.mrf.mxu0
      %v922 = vadd.f32 %v314, %v921
      %v923 = vpop.f32.mrf.mxu0
      %v924 = vpop.f32.mrf.mxu0
      %v925 = vadd.f32 %v314, %v924
      %v926 = vpop.f32.mrf.mxu0
      %927 = vmatprep.mubr.bf16.mxu0 0
      %928 = vmatmul.mubr.bf16.gmra.mxu0 %v674
      %v929 = vpop.f32.mrf.mxu0
      %v930 = vadd.f32 %v314, %v929
      %v931 = vpop.f32.mrf.mxu0
      %v932 = vpop.f32.mrf.mxu0
      %v933 = vadd.f32 %v314, %v932
      %v934 = vpop.f32.mrf.mxu0
      %935 = vmatprep.mubr.bf16.mxu0 0
      %936 = vmatmul.mubr.bf16.gmra.mxu0 %v677
      %v937 = vpop.f32.mrf.mxu0
      %v938 = vadd.f32 %v314, %v937
      %v939 = vpop.f32.mrf.mxu0
      %v940 = vpop.f32.mrf.mxu0
      %v941 = vadd.f32 %v314, %v940
      %v942 = vpop.f32.mrf.mxu0
      %943 = vmatprep.mubr.bf16.mxu0 0
      %944 = vmatmul.mubr.bf16.gmra.mxu0 %v680
      %v945 = vpop.f32.mrf.mxu0
      %v946 = vadd.f32 %v314, %v945
      %v947 = vpop.f32.mrf.mxu0
      %v948 = vpop.f32.mrf.mxu0
      %v949 = vadd.f32 %v314, %v948
      %v950 = vpop.f32.mrf.mxu0
      %951 = vmatprep.mubr.bf16.mxu0 0
      %952 = vmatmul.mubr.bf16.gmra.mxu0 %v683
      %v953 = vpop.f32.mrf.mxu0
      %v954 = vadd.f32 %v314, %v953
      %v955 = vpop.f32.mrf.mxu0
      %v956 = vpop.f32.mrf.mxu0
      %v957 = vadd.f32 %v314, %v956
      %v958 = vpop.f32.mrf.mxu0
      %959 = vmatprep.mubr.bf16.mxu0 0
      %960 = vmatmul.mubr.bf16.gmra.mxu0 %v686
      %v961 = vpop.f32.mrf.mxu0
      %v962 = vadd.f32 %v314, %v961
      %v963 = vpop.f32.mrf.mxu0
      %v964 = vpop.f32.mrf.mxu0
      %v965 = vadd.f32 %v314, %v964
      %v966 = vpop.f32.mrf.mxu0
      %967 = vmatprep.mubr.bf16.mxu0 0
      %968 = vmatmul.mubr.bf16.gmra.mxu0 %v689
      %v969 = vpop.f32.mrf.mxu0
      %v970 = vadd.f32 %v314, %v969
      %v971 = vpop.f32.mrf.mxu0
      %v972 = vpop.f32.mrf.mxu0
      %v973 = vadd.f32 %v314, %v972
      %v974 = vpop.f32.mrf.mxu0
      %975 = vmatprep.mubr.bf16.mxu0 0
      %976 = vmatmul.mubr.bf16.gmra.mxu0 %v692
      %v977 = vpop.f32.mrf.mxu0
      %v978 = vadd.f32 %v314, %v977
      %v979 = vpop.f32.mrf.mxu0
      %v980 = vpop.f32.mrf.mxu0
      %v981 = vadd.f32 %v314, %v980
      %v982 = vpop.f32.mrf.mxu0
      %983 = vmatprep.mubr.bf16.mxu0 0
      %984 = vmatmul.mubr.bf16.gmra.mxu0 %v695
      %v985 = vpop.f32.mrf.mxu0
      %v986 = vadd.f32 %v314, %v985
      %v987 = vpop.f32.mrf.mxu0
      %v988 = vpop.f32.mrf.mxu0
      %v989 = vadd.f32 %v314, %v988
      %v990 = vpop.f32.mrf.mxu0
      %991 = vmatprep.mubr.bf16.mxu0 0
      %992 = vmatmul.mubr.bf16.gmra.mxu0 %v698
      %v993 = vpop.f32.mrf.mxu0
      %v994 = vadd.f32 %v314, %v993
      %v995 = vpop.f32.mrf.mxu0
      %v996 = vpop.f32.mrf.mxu0
      %v997 = vadd.f32 %v314, %v996
      %v998 = vpop.f32.mrf.mxu0
      %999 = vmatprep.mubr.bf16.mxu0 0
      %1000 = vmatmul.mubr.bf16.gmra.mxu0 %v701
      %v1001 = vpop.f32.mrf.mxu0
      %v1002 = vadd.f32 %v314, %v1001
      %v1003 = vpop.f32.mrf.mxu0
      %v1004 = vpop.f32.mrf.mxu0
      %v1005 = vadd.f32 %v314, %v1004
      %v1006 = vpop.f32.mrf.mxu0
      %1007 = vmatprep.mubr.bf16.mxu0 0
      %1008 = vmatmul.mubr.bf16.gmra.mxu0 %v704
      %v1009 = vpop.f32.mrf.mxu0
      %v1010 = vadd.f32 %v314, %v1009
      %v1011 = vpop.f32.mrf.mxu0
      %v1012 = vpop.f32.mrf.mxu0
      %v1013 = vadd.f32 %v314, %v1012
      %v1014 = vpop.f32.mrf.mxu0
      %1015 = vmatprep.mubr.bf16.mxu0 0
      %1016 = vmatmul.mubr.bf16.gmra.mxu0 %v707
      %v1017 = vpop.f32.mrf.mxu0
      %v1018 = vadd.f32 %v314, %v1017
      %v1019 = vpop.f32.mrf.mxu0
      %v1020 = vpop.f32.mrf.mxu0
      %v1021 = vadd.f32 %v314, %v1020
      %v1022 = vpop.f32.mrf.mxu0
      %1023 = vmatprep.mubr.bf16.mxu0 0
      %1024 = vmatmul.mubr.bf16.gmra.mxu0 %v710
      %v1025 = vpop.f32.mrf.mxu0
      %v1026 = vadd.f32 %v314, %v1025
      %v1027 = vpop.f32.mrf.mxu0
      %v1028 = vpop.f32.mrf.mxu0
      %v1029 = vadd.f32 %v314, %v1028
      %v1030 = vpop.f32.mrf.mxu0
      %1031 = vmatprep.mubr.bf16.mxu0 0
      %1032 = vmatmul.mubr.bf16.gmra.mxu0 %v713
      %v1033 = vpop.f32.mrf.mxu0
      %v1034 = vadd.f32 %v314, %v1033
      %v1035 = vpop.f32.mrf.mxu0
      %v1036 = vpop.f32.mrf.mxu0
      %v1037 = vadd.f32 %v314, %v1036
      %v1038 = vpop.f32.mrf.mxu0
      %1039 = vmatprep.mubr.bf16.mxu0 0
      %1040 = vmatmul.mubr.bf16.gmra.mxu0 %v716
      %v1041 = vpop.f32.mrf.mxu0
      %v1042 = vadd.f32 %v314, %v1041
      %v1043 = vpop.f32.mrf.mxu0
      %v1044 = vpop.f32.mrf.mxu0
      %v1045 = vadd.f32 %v314, %v1044
      %v1046 = vpop.f32.mrf.mxu0
      %1047 = vmatprep.mubr.bf16.mxu0 0
      %1048 = vmatmul.mubr.bf16.gmra.mxu0 %v719
      %v1049 = vpop.f32.mrf.mxu0
      %v1050 = vadd.f32 %v314, %v1049
      %v1051 = vpop.f32.mrf.mxu0
      %v1052 = vpop.f32.mrf.mxu0
      %v1053 = vadd.f32 %v314, %v1052
      %v1054 = vpop.f32.mrf.mxu0
      %1055 = vmatprep.mubr.bf16.mxu0 0
      %1056 = vmatmul.mubr.bf16.gmra.mxu0 %v722
      %v1057 = vpop.f32.mrf.mxu0
      %v1058 = vadd.f32 %v314, %v1057
      %v1059 = vpop.f32.mrf.mxu0
      %v1060 = vpop.f32.mrf.mxu0
      %v1061 = vadd.f32 %v314, %v1060
      %v1062 = vpop.f32.mrf.mxu0
      %1063 = vmatprep.mubr.bf16.mxu0 0
      %1064 = vmatmul.mubr.bf16.gmra.mxu0 %v725
      %v1065 = vpop.f32.mrf.mxu0
      %v1066 = vadd.f32 %v314, %v1065
      %v1067 = vpop.f32.mrf.mxu0
      %v1068 = vpop.f32.mrf.mxu0
      %v1069 = vadd.f32 %v314, %v1068
      %v1070 = vpop.f32.mrf.mxu0
      %1071 = vmatprep.mubr.bf16.mxu0 0
      %1072 = vmatmul.mubr.bf16.gmra.mxu0 %v728
      %v1073 = vpop.f32.mrf.mxu0
      %v1074 = vadd.f32 %v314, %v1073
      %v1075 = vpop.f32.mrf.mxu0
      %v1076 = vpop.f32.mrf.mxu0
      %v1077 = vadd.f32 %v314, %v1076
      %v1078 = vpop.f32.mrf.mxu0
      %1079 = vmatprep.mubr.bf16.mxu0 0
      %1080 = vmatmul.mubr.bf16.gmra.mxu0 %v731
      %v1081 = vpop.f32.mrf.mxu0
      %v1082 = vadd.f32 %v314, %v1081
      %v1083 = vpop.f32.mrf.mxu0
      %v1084 = vpop.f32.mrf.mxu0
      %v1085 = vadd.f32 %v314, %v1084
      %v1086 = vpop.f32.mrf.mxu0
      %1087 = vmatprep.mubr.bf16.mxu0 0
      %1088 = vmatmul.mubr.bf16.gmra.mxu0 %v734
      %v1089 = vpop.f32.mrf.mxu0
      %v1090 = vadd.f32 %v314, %v1089
      %v1091 = vpop.f32.mrf.mxu0
      %v1092 = vpop.f32.mrf.mxu0
      %v1093 = vadd.f32 %v314, %v1092
      %v1094 = vpop.f32.mrf.mxu0
      %1095 = vmatprep.mubr.bf16.mxu0 0
      %1096 = vmatmul.mubr.bf16.gmra.mxu0 %v737
      %v1097 = vpop.f32.mrf.mxu0
      %v1098 = vadd.f32 %v314, %v1097
      %v1099 = vpop.f32.mrf.mxu0
      %v1100 = vpop.f32.mrf.mxu0
      %v1101 = vadd.f32 %v314, %v1100
      %v1102 = vpop.f32.mrf.mxu0
      %1103 = vmatprep.mubr.bf16.mxu0 0
      %1104 = vmatmul.mubr.bf16.gmra.mxu0 %v740
      %v1105 = vpop.f32.mrf.mxu0
      %v1106 = vadd.f32 %v314, %v1105
      %v1107 = vpop.f32.mrf.mxu0
      %v1108 = vpop.f32.mrf.mxu0
      %v1109 = vadd.f32 %v314, %v1108
      %v1110 = vpop.f32.mrf.mxu0
      %1111 = vmatprep.mubr.bf16.mxu0 0
      %1112 = vmatmul.mubr.bf16.gmra.mxu0 %v743
      %v1113 = vpop.f32.mrf.mxu0
      %v1114 = vadd.f32 %v314, %v1113
      %v1115 = vpop.f32.mrf.mxu0
      %v1116 = vpop.f32.mrf.mxu0
      %v1117 = vadd.f32 %v314, %v1116
      %v1118 = vpop.f32.mrf.mxu0
      %1119 = vmatprep.mubr.bf16.mxu0 0
      %1120 = vmatmul.mubr.bf16.gmra.mxu0 %v746
      %v1121 = vpop.f32.mrf.mxu0
      %v1122 = vadd.f32 %v314, %v1121
      %v1123 = vpop.f32.mrf.mxu0
      %v1124 = vpop.f32.mrf.mxu0
      %v1125 = vadd.f32 %v314, %v1124
      %v1126 = vpop.f32.mrf.mxu0
      %1127 = vmatprep.mubr.bf16.mxu0 0
      %1128 = vmatmul.mubr.bf16.gmra.mxu0 %v749
      %v1129 = vpop.f32.mrf.mxu0
      %v1130 = vadd.f32 %v314, %v1129
      %v1131 = vpop.f32.mrf.mxu0
      %v1132 = vpop.f32.mrf.mxu0
      %v1133 = vadd.f32 %v314, %v1132
      %v1134 = vpop.f32.mrf.mxu0
      %1135 = vmatprep.mubr.bf16.mxu0 0
      %1136 = vmatmul.mubr.bf16.gmra.mxu0 %v752
      %v1137 = vpop.f32.mrf.mxu0
      %v1138 = vadd.f32 %v314, %v1137
      %v1139 = vpop.f32.mrf.mxu0
      %v1140 = vpop.f32.mrf.mxu0
      %v1141 = vadd.f32 %v314, %v1140
      %v1142 = vpop.f32.mrf.mxu0
      %1143 = vmatprep.mubr.bf16.mxu0 0
      %1144 = vmatmul.mubr.bf16.gmra.mxu0 %v755
      %v1145 = vpop.f32.mrf.mxu0
      %v1146 = vadd.f32 %v314, %v1145
      %v1147 = vpop.f32.mrf.mxu0
      %v1148 = vpop.f32.mrf.mxu0
      %v1149 = vadd.f32 %v314, %v1148
      %v1150 = vpop.f32.mrf.mxu0
      %1151 = vmatprep.mubr.bf16.mxu0 0
      %1152 = vmatmul.mubr.bf16.gmra.mxu0 %v758
      %v1153 = vpop.f32.mrf.mxu0
      %v1154 = vadd.f32 %v314, %v1153
      %v1155 = vpop.f32.mrf.mxu0
      %v1156 = vpop.f32.mrf.mxu0
      %v1157 = vadd.f32 %v314, %v1156
      %v1158 = vpop.f32.mrf.mxu0
      %1159 = vmatprep.mubr.bf16.mxu0 0
      %1160 = vmatmul.mubr.bf16.gmra.mxu0 %v761
      %v1161 = vpop.f32.mrf.mxu0
      %v1162 = vadd.f32 %v314, %v1161
      %v1163 = vpop.f32.mrf.mxu0
      %v1164 = vpop.f32.mrf.mxu0
      %v1165 = vadd.f32 %v314, %v1164
      %v1166 = vpop.f32.mrf.mxu0
      %1167 = vmatprep.mubr.bf16.mxu0 0
      %1168 = vmatmul.mubr.bf16.gmra.mxu0 %v764
      %v1169 = vpop.f32.mrf.mxu0
      %v1170 = vadd.f32 %v314, %v1169
      %v1171 = vpop.f32.mrf.mxu0
      %v1172 = vpop.f32.mrf.mxu0
      %v1173 = vadd.f32 %v314, %v1172
      %v1174 = vpop.f32.mrf.mxu0
      %1175 = vmatprep.mubr.bf16.mxu0 0
      %1176 = vmatmul.mubr.bf16.gmra.mxu0 %v767
      %v1177 = vpop.f32.mrf.mxu0
      %v1178 = vadd.f32 %v314, %v1177
      %v1179 = vpop.f32.mrf.mxu0
      %v1180 = vpop.f32.mrf.mxu0
      %v1181 = vadd.f32 %v314, %v1180
      %v1182 = vpop.f32.mrf.mxu0
      %1183 = vmatprep.mubr.bf16.mxu0 0
      %1184 = vmatmul.mubr.bf16.gmra.mxu0 %v770
      %v1185 = vpop.f32.mrf.mxu0
      %v1186 = vadd.f32 %v314, %v1185
      %v1187 = vpop.f32.mrf.mxu0
      %v1188 = vpop.f32.mrf.mxu0
      %v1189 = vadd.f32 %v314, %v1188
      %v1190 = vpop.f32.mrf.mxu0
      %1191 = vmatprep.mubr.bf16.mxu0 0
      %1192 = vmatmul.mubr.bf16.gmra.mxu0 %v773
      %v1193 = vpop.f32.mrf.mxu0
      %v1194 = vadd.f32 %v314, %v1193
      %v1195 = vpop.f32.mrf.mxu0
      %v1196 = vpop.f32.mrf.mxu0
      %v1197 = vadd.f32 %v314, %v1196
      %v1198 = vpop.f32.mrf.mxu0
      %1199 = vmatprep.mubr.bf16.mxu0 0
      %1200 = vmatmul.mubr.bf16.gmra.mxu0 %v776
      %v1201 = vpop.f32.mrf.mxu0
      %v1202 = vadd.f32 %v314, %v1201
      %v1203 = vpop.f32.mrf.mxu0
      %v1204 = vpop.f32.mrf.mxu0
      %v1205 = vadd.f32 %v314, %v1204
      %v1206 = vpop.f32.mrf.mxu0
      %1207 = vmatprep.mubr.bf16.mxu0 0
      %1208 = vmatmul.mubr.bf16.gmra.mxu0 %v779
      %v1209 = vpop.f32.mrf.mxu0
      %v1210 = vadd.f32 %v314, %v1209
      %v1211 = vpop.f32.mrf.mxu0
      %v1212 = vpop.f32.mrf.mxu0
      %v1213 = vadd.f32 %v314, %v1212
      %v1214 = vpop.f32.mrf.mxu0
      %1215 = vmatprep.mubr.bf16.mxu0 0
      %1216 = vmatmul.mubr.bf16.gmra.mxu0 %v782
      %v1217 = vpop.f32.mrf.mxu0
      %v1218 = vadd.f32 %v314, %v1217
      %v1219 = vpop.f32.mrf.mxu0
      %v1220 = vpop.f32.mrf.mxu0
      %v1221 = vadd.f32 %v314, %v1220
      %v1222 = vpop.f32.mrf.mxu0
      %1223 = vmatprep.mubr.bf16.mxu0 0
      %1224 = vmatmul.mubr.bf16.gmra.mxu0 %v785
      %v1225 = vpop.f32.mrf.mxu0
      %v1226 = vadd.f32 %v314, %v1225
      %v1227 = vpop.f32.mrf.mxu0
      %v1228 = vpop.f32.mrf.mxu0
      %v1229 = vadd.f32 %v314, %v1228
      %v1230 = vpop.f32.mrf.mxu0
      %1231 = vmatprep.mubr.bf16.mxu0 0
      %1232 = vmatmul.mubr.bf16.gmra.mxu0 %v788
      %v1233 = vpop.f32.mrf.mxu0
      %v1234 = vadd.f32 %v314, %v1233
      %v1235 = vpop.f32.mrf.mxu0
      %v1236 = vpop.f32.mrf.mxu0
      %v1237 = vadd.f32 %v314, %v1236
      %v1238 = vpop.f32.mrf.mxu0
      %1239 = vmatprep.mubr.bf16.mxu0 0
      %1240 = vmatmul.mubr.bf16.gmra.mxu0 %v791
      %v1241 = vpop.f32.mrf.mxu0
      %v1242 = vadd.f32 %v314, %v1241
      %v1243 = vpop.f32.mrf.mxu0
      %v1244 = vpop.f32.mrf.mxu0
      %v1245 = vadd.f32 %v314, %v1244
      %v1246 = vpop.f32.mrf.mxu0
      %1247 = vmatprep.mubr.bf16.mxu0 0
      %1248 = vmatmul.mubr.bf16.gmra.mxu0 %v794
      %v1249 = vpop.f32.mrf.mxu0
      %v1250 = vadd.f32 %v314, %v1249
      %v1251 = vpop.f32.mrf.mxu0
      %v1252 = vpop.f32.mrf.mxu0
      %v1253 = vadd.f32 %v314, %v1252
      %v1254 = vpop.f32.mrf.mxu0
      %1255 = vmatprep.mubr.bf16.mxu0 0
      %1256 = vmatmul.mubr.bf16.gmra.mxu0 %v797
      %v1257 = vpop.f32.mrf.mxu0
      %v1258 = vadd.f32 %v314, %v1257
      %v1259 = vpop.f32.mrf.mxu0
      %v1260 = vpop.f32.mrf.mxu0
      %v1261 = vadd.f32 %v314, %v1260
      %v1262 = vpop.f32.mrf.mxu0
      %1263 = vmatprep.mubr.bf16.mxu0 0
      %1264 = vmatmul.mubr.bf16.gmra.mxu0 %v800
      %v1265 = vpop.f32.mrf.mxu0
      %v1266 = vadd.f32 %v314, %v1265
      %v1267 = vpop.f32.mrf.mxu0
      %v1268 = vpop.f32.mrf.mxu0
      %v1269 = vadd.f32 %v314, %v1268
      %v1270 = vpop.f32.mrf.mxu0
      %1271 = vmatprep.mubr.bf16.mxu0 0
      %1272 = vmatmul.mubr.bf16.gmra.mxu0 %v803
      %v1273 = vpop.f32.mrf.mxu0
      %v1274 = vadd.f32 %v314, %v1273
      %v1275 = vpop.f32.mrf.mxu0
      %v1276 = vpop.f32.mrf.mxu0
      %v1277 = vadd.f32 %v314, %v1276
      %v1278 = vpop.f32.mrf.mxu0
      %1279 = vmatprep.mubr.bf16.mxu0 0
      %1280 = vmatmul.mubr.bf16.gmra.mxu0 %v806
      %v1281 = vpop.f32.mrf.mxu0
      %v1282 = vadd.f32 %v314, %v1281
      %v1283 = vpop.f32.mrf.mxu0
      %v1284 = vpop.f32.mrf.mxu0
      %v1285 = vadd.f32 %v314, %v1284
      %v1286 = vpop.f32.mrf.mxu0
      %1287 = vmatprep.mubr.bf16.mxu0 0
      %1288 = vmatmul.mubr.bf16.gmra.mxu0 %v809
      %v1289 = vpop.f32.mrf.mxu0
      %v1290 = vadd.f32 %v314, %v1289
      %v1291 = vpop.f32.mrf.mxu0
      %v1292 = vpop.f32.mrf.mxu0
      %v1293 = vadd.f32 %v314, %v1292
      %v1294 = vpop.f32.mrf.mxu0
      %1295 = vmatprep.mubr.bf16.mxu0 0
      %1296 = vmatmul.mubr.bf16.gmra.mxu0 %v812
      %v1297 = vpop.f32.mrf.mxu0
      %v1298 = vadd.f32 %v314, %v1297
      %v1299 = vpop.f32.mrf.mxu0
      %v1300 = vpop.f32.mrf.mxu0
      %v1301 = vadd.f32 %v314, %v1300
      %v1302 = vpop.f32.mrf.mxu0
      %1303 = vmatprep.mubr.bf16.mxu0 0
      %1304 = vmatmul.mubr.bf16.gmra.mxu0 %v815
      %v1305 = vpop.f32.mrf.mxu0
      %v1306 = vadd.f32 %v314, %v1305
      %v1307 = vpop.f32.mrf.mxu0
      %v1308 = vpop.f32.mrf.mxu0
      %v1309 = vadd.f32 %v314, %v1308
      %v1310 = vpop.f32.mrf.mxu0
      %1311 = vmatprep.mubr.bf16.mxu0 0
      %1312 = vmatmul.mubr.bf16.gmra.mxu0 %v818
      %v1313 = vpop.f32.mrf.mxu0
      %v1314 = vadd.f32 %v314, %v1313
      %v1315 = vpop.f32.mrf.mxu0
      %v1316 = vpop.f32.mrf.mxu0
      %v1317 = vadd.f32 %v314, %v1316
      %v1318 = vpop.f32.mrf.mxu0
      %1319 = vmatprep.mubr.bf16.mxu0 0
      %1320 = vmatmul.mubr.bf16.gmra.mxu0 %v821
      %v1321 = vpop.f32.mrf.mxu0
      %v1322 = vadd.f32 %v314, %v1321
      %v1323 = vpop.f32.mrf.mxu0
      %v1324 = vpop.f32.mrf.mxu0
      %v1325 = vadd.f32 %v314, %v1324
      %v1326 = vpop.f32.mrf.mxu0
      %1327 = vmatprep.mubr.bf16.mxu0 0
      %1328 = vmatmul.mubr.bf16.gmra.mxu0 %v824
      %v1329 = vpop.f32.mrf.mxu0
      %v1330 = vadd.f32 %v314, %v1329
      %v1331 = vpop.f32.mrf.mxu0
      %v1332 = vpop.f32.mrf.mxu0
      %v1333 = vadd.f32 %v314, %v1332
      %v1334 = vpop.f32.mrf.mxu0
      %1335 = vmatprep.mubr.bf16.mxu0 0
      %1336 = vmatmul.mubr.bf16.gmra.mxu0 %v827
      %v1337 = vpop.f32.mrf.mxu0
      %v1338 = vadd.f32 %v314, %v1337
      %v1339 = vpop.f32.mrf.mxu0
      %v1340 = vpop.f32.mrf.mxu0
      %v1341 = vadd.f32 %v314, %v1340
      %v1342 = vpop.f32.mrf.mxu0
      %1343 = vmatprep.mubr.bf16.mxu0 0
      %1344 = vmatmul.mubr.bf16.gmra.mxu0 %v830
      %v1345 = vpop.f32.mrf.mxu0
      %v1346 = vadd.f32 %v314, %v1345
      %v1347 = vpop.f32.mrf.mxu0
      %v1348 = vpop.f32.mrf.mxu0
      %v1349 = vadd.f32 %v314, %v1348
      %v1350 = vpop.f32.mrf.mxu0
      %1351 = vmatprep.mubr.bf16.mxu0 0
      %1352 = vmatmul.mubr.bf16.gmra.mxu0 %v833
      %v1353 = vpop.f32.mrf.mxu0
      %v1354 = vadd.f32 %v314, %v1353
      %v1355 = vpop.f32.mrf.mxu0
      %v1356 = vpop.f32.mrf.mxu0
      %v1357 = vadd.f32 %v314, %v1356
      %v1358 = vpop.f32.mrf.mxu0
      %1359 = vmatprep.mubr.bf16.mxu0 0
      %1360 = vmatmul.mubr.bf16.gmra.mxu0 %v836
      %v1361 = vpop.f32.mrf.mxu0
      %v1362 = vadd.f32 %v314, %v1361
      %v1363 = vpop.f32.mrf.mxu0
      %v1364 = vpop.f32.mrf.mxu0
      %v1365 = vadd.f32 %v314, %v1364
      %v1366 = vpop.f32.mrf.mxu0
      %1367 = vmatprep.mubr.bf16.mxu0 0
      %1368 = vmatmul.mubr.bf16.gmra.mxu0 %v839
      %v1369 = vpop.f32.mrf.mxu0
      %v1370 = vadd.f32 %v314, %v1369
      %v1371 = vpop.f32.mrf.mxu0
      %v1372 = vpop.f32.mrf.mxu0
      %v1373 = vadd.f32 %v314, %v1372
      %v1374 = vpop.f32.mrf.mxu0
      %1375 = vmatprep.mubr.bf16.mxu0 0
      %1376 = vmatmul.mubr.bf16.gmra.mxu0 %v842
      %v1377 = vpop.f32.mrf.mxu0
      %v1378 = vadd.f32 %v314, %v1377
      %v1379 = vpop.f32.mrf.mxu0
      %v1380 = vpop.f32.mrf.mxu0
      %v1381 = vadd.f32 %v314, %v1380
      %v1382 = vpop.f32.mrf.mxu0
      %1383 = vmatprep.mubr.bf16.mxu0 0
      %1384 = vmatmul.mubr.bf16.gmra.mxu0 %v845
      %v1385 = vpop.f32.mrf.mxu0
      %v1386 = vadd.f32 %v314, %v1385
      %v1387 = vpop.f32.mrf.mxu0
      %v1388 = vpop.f32.mrf.mxu0
      %v1389 = vadd.f32 %v314, %v1388
      %v1390 = vpop.f32.mrf.mxu0
      %1391 = vdwg.mxu0
      %vm1392 = vcmp.gt.f32.partialorder %v882, 0.0
      %vm1393 = vcmp.gt.f32.partialorder %v885, 0.0
      %vm1394 = vcmp.gt.f32.partialorder %v890, 0.0
      %vm1395 = vcmp.gt.f32.partialorder %v893, 0.0
      %vm1396 = vcmp.gt.f32.partialorder %v898, 0.0
      %vm1397 = vcmp.gt.f32.partialorder %v901, 0.0
      %vm1398 = vcmp.gt.f32.partialorder %v906, 0.0
      %vm1399 = vcmp.gt.f32.partialorder %v909, 0.0
      %vm1400 = vcmp.gt.f32.partialorder %v914, 0.0
      %vm1401 = vcmp.gt.f32.partialorder %v917, 0.0
      %vm1402 = vcmp.gt.f32.partialorder %v922, 0.0
      %vm1403 = vcmp.gt.f32.partialorder %v925, 0.0
      %vm1404 = vcmp.gt.f32.partialorder %v930, 0.0
      %vm1405 = vcmp.gt.f32.partialorder %v933, 0.0
      %vm1406 = vcmp.gt.f32.partialorder %v938, 0.0
      %vm1407 = vcmp.gt.f32.partialorder %v941, 0.0
      %vm1408 = vcmp.gt.f32.partialorder %v946, 0.0
      %vm1409 = vcmp.gt.f32.partialorder %v949, 0.0
      %vm1410 = vcmp.gt.f32.partialorder %v954, 0.0
      %vm1411 = vcmp.gt.f32.partialorder %v957, 0.0
      %vm1412 = vcmp.gt.f32.partialorder %v962, 0.0
      %vm1413 = vcmp.gt.f32.partialorder %v965, 0.0
      %vm1414 = vcmp.gt.f32.partialorder %v970, 0.0
      %vm1415 = vcmp.gt.f32.partialorder %v973, 0.0
      %vm1416 = vcmp.gt.f32.partialorder %v978, 0.0
      %vm1417 = vcmp.gt.f32.partialorder %v981, 0.0
      %vm1418 = vcmp.gt.f32.partialorder %v986, 0.0
      %vm1419 = vcmp.gt.f32.partialorder %v989, 0.0
      %vm1420 = vcmp.gt.f32.partialorder %v994, 0.0
      %vm1421 = vcmp.gt.f32.partialorder %v997, 0.0
      %vm1422 = vcmp.gt.f32.partialorder %v1002, 0.0
      %vm1423 = vcmp.gt.f32.partialorder %v1005, 0.0
      %vm1424 = vcmp.gt.f32.partialorder %v1010, 0.0
      %vm1425 = vcmp.gt.f32.partialorder %v1013, 0.0
      %vm1426 = vcmp.gt.f32.partialorder %v1018, 0.0
      %vm1427 = vcmp.gt.f32.partialorder %v1021, 0.0
      %vm1428 = vcmp.gt.f32.partialorder %v1026, 0.0
      %vm1429 = vcmp.gt.f32.partialorder %v1029, 0.0
      %vm1430 = vcmp.gt.f32.partialorder %v1034, 0.0
      %vm1431 = vcmp.gt.f32.partialorder %v1037, 0.0
      %vm1432 = vcmp.gt.f32.partialorder %v1042, 0.0
      %vm1433 = vcmp.gt.f32.partialorder %v1045, 0.0
      %vm1434 = vcmp.gt.f32.partialorder %v1050, 0.0
      %vm1435 = vcmp.gt.f32.partialorder %v1053, 0.0
      %vm1436 = vcmp.gt.f32.partialorder %v1058, 0.0
      %vm1437 = vcmp.gt.f32.partialorder %v1061, 0.0
      %vm1438 = vcmp.gt.f32.partialorder %v1066, 0.0
      %vm1439 = vcmp.gt.f32.partialorder %v1069, 0.0
      %vm1440 = vcmp.gt.f32.partialorder %v1074, 0.0
      %vm1441 = vcmp.gt.f32.partialorder %v1077, 0.0
      %vm1442 = vcmp.gt.f32.partialorder %v1082, 0.0
      %vm1443 = vcmp.gt.f32.partialorder %v1085, 0.0
      %vm1444 = vcmp.gt.f32.partialorder %v1090, 0.0
      %vm1445 = vcmp.gt.f32.partialorder %v1093, 0.0
      %vm1446 = vcmp.gt.f32.partialorder %v1098, 0.0
      %vm1447 = vcmp.gt.f32.partialorder %v1101, 0.0
      %vm1448 = vcmp.gt.f32.partialorder %v1106, 0.0
      %vm1449 = vcmp.gt.f32.partialorder %v1109, 0.0
      %vm1450 = vcmp.gt.f32.partialorder %v1114, 0.0
      %vm1451 = vcmp.gt.f32.partialorder %v1117, 0.0
      %vm1452 = vcmp.gt.f32.partialorder %v1122, 0.0
      %vm1453 = vcmp.gt.f32.partialorder %v1125, 0.0
      %vm1454 = vcmp.gt.f32.partialorder %v1130, 0.0
      %vm1455 = vcmp.gt.f32.partialorder %v1133, 0.0
      %vm1456 = vcmp.gt.f32.partialorder %v1138, 0.0
      %vm1457 = vcmp.gt.f32.partialorder %v1141, 0.0
      %vm1458 = vcmp.gt.f32.partialorder %v1146, 0.0
      %vm1459 = vcmp.gt.f32.partialorder %v1149, 0.0
      %vm1460 = vcmp.gt.f32.partialorder %v1154, 0.0
      %vm1461 = vcmp.gt.f32.partialorder %v1157, 0.0
      %vm1462 = vcmp.gt.f32.partialorder %v1162, 0.0
      %vm1463 = vcmp.gt.f32.partialorder %v1165, 0.0
      %vm1464 = vcmp.gt.f32.partialorder %v1170, 0.0
      %vm1465 = vcmp.gt.f32.partialorder %v1173, 0.0
      %vm1466 = vcmp.gt.f32.partialorder %v1178, 0.0
      %vm1467 = vcmp.gt.f32.partialorder %v1181, 0.0
      %vm1468 = vcmp.gt.f32.partialorder %v1186, 0.0
      %vm1469 = vcmp.gt.f32.partialorder %v1189, 0.0
      %vm1470 = vcmp.gt.f32.partialorder %v1194, 0.0
      %vm1471 = vcmp.gt.f32.partialorder %v1197, 0.0
      %vm1472 = vcmp.gt.f32.partialorder %v1202, 0.0
      %vm1473 = vcmp.gt.f32.partialorder %v1205, 0.0
      %vm1474 = vcmp.gt.f32.partialorder %v1210, 0.0
      %vm1475 = vcmp.gt.f32.partialorder %v1213, 0.0
      %vm1476 = vcmp.gt.f32.partialorder %v1218, 0.0
      %vm1477 = vcmp.gt.f32.partialorder %v1221, 0.0
      %vm1478 = vcmp.gt.f32.partialorder %v1226, 0.0
      %vm1479 = vcmp.gt.f32.partialorder %v1229, 0.0
      %vm1480 = vcmp.gt.f32.partialorder %v1234, 0.0
      %vm1481 = vcmp.gt.f32.partialorder %v1237, 0.0
      %vm1482 = vcmp.gt.f32.partialorder %v1242, 0.0
      %vm1483 = vcmp.gt.f32.partialorder %v1245, 0.0
      %vm1484 = vcmp.gt.f32.partialorder %v1250, 0.0
      %vm1485 = vcmp.gt.f32.partialorder %v1253, 0.0
      %vm1486 = vcmp.gt.f32.partialorder %v1258, 0.0
      %vm1487 = vcmp.gt.f32.partialorder %v1261, 0.0
      %vm1488 = vcmp.gt.f32.partialorder %v1266, 0.0
      %vm1489 = vcmp.gt.f32.partialorder %v1269, 0.0
      %vm1490 = vcmp.gt.f32.partialorder %v1274, 0.0
      %vm1491 = vcmp.gt.f32.partialorder %v1277, 0.0
      %vm1492 = vcmp.gt.f32.partialorder %v1282, 0.0
      %vm1493 = vcmp.gt.f32.partialorder %v1285, 0.0
      %vm1494 = vcmp.gt.f32.partialorder %v1290, 0.0
      %vm1495 = vcmp.gt.f32.partialorder %v1293, 0.0
      %vm1496 = vcmp.gt.f32.partialorder %v1298, 0.0
      %vm1497 = vcmp.gt.f32.partialorder %v1301, 0.0
      %vm1498 = vcmp.gt.f32.partialorder %v1306, 0.0
      %vm1499 = vcmp.gt.f32.partialorder %v1309, 0.0
      %vm1500 = vcmp.gt.f32.partialorder %v1314, 0.0
      %vm1501 = vcmp.gt.f32.partialorder %v1317, 0.0
      %vm1502 = vcmp.gt.f32.partialorder %v1322, 0.0
      %vm1503 = vcmp.gt.f32.partialorder %v1325, 0.0
      %vm1504 = vcmp.gt.f32.partialorder %v1330, 0.0
      %vm1505 = vcmp.gt.f32.partialorder %v1333, 0.0
      %vm1506 = vcmp.gt.f32.partialorder %v1338, 0.0
      %vm1507 = vcmp.gt.f32.partialorder %v1341, 0.0
      %vm1508 = vcmp.gt.f32.partialorder %v1346, 0.0
      %vm1509 = vcmp.gt.f32.partialorder %v1349, 0.0
      %vm1510 = vcmp.gt.f32.partialorder %v1354, 0.0
      %vm1511 = vcmp.gt.f32.partialorder %v1357, 0.0
      %vm1512 = vcmp.gt.f32.partialorder %v1362, 0.0
      %vm1513 = vcmp.gt.f32.partialorder %v1365, 0.0
      %vm1514 = vcmp.gt.f32.partialorder %v1370, 0.0
      %vm1515 = vcmp.gt.f32.partialorder %v1373, 0.0
      %vm1516 = vcmp.gt.f32.partialorder %v1378, 0.0
      %vm1517 = vcmp.gt.f32.partialorder %v1381, 0.0
      %vm1518 = vcmp.gt.f32.partialorder %v1386, 0.0
      %vm1519 = vcmp.gt.f32.partialorder %v1389, 0.0
      %v1520 = vmul.f32 %v882, 0.2
      %v1521 = vmul.f32 %v885, 0.2
      %v1522 = vmul.f32 %v890, 0.2
      %v1523 = vmul.f32 %v893, 0.2
      %v1524 = vmul.f32 %v898, 0.2
      %v1525 = vmul.f32 %v901, 0.2
      %v1526 = vmul.f32 %v906, 0.2
      %v1527 = vmul.f32 %v909, 0.2
      %v1528 = vmul.f32 %v914, 0.2
      %v1529 = vmul.f32 %v917, 0.2
      %v1530 = vmul.f32 %v922, 0.2
      %v1531 = vmul.f32 %v925, 0.2
      %v1532 = vmul.f32 %v930, 0.2
      %v1533 = vmul.f32 %v933, 0.2
      %v1534 = vmul.f32 %v938, 0.2
      %v1535 = vmul.f32 %v941, 0.2
      %v1536 = vmul.f32 %v946, 0.2
      %v1537 = vmul.f32 %v949, 0.2
      %v1538 = vmul.f32 %v954, 0.2
      %v1539 = vmul.f32 %v957, 0.2
      %v1540 = vmul.f32 %v962, 0.2
      %v1541 = vmul.f32 %v965, 0.2
      %v1542 = vmul.f32 %v970, 0.2
      %v1543 = vmul.f32 %v973, 0.2
      %v1544 = vmul.f32 %v978, 0.2
      %v1545 = vmul.f32 %v981, 0.2
      %v1546 = vmul.f32 %v986, 0.2
      %v1547 = vmul.f32 %v989, 0.2
      %v1548 = vmul.f32 %v994, 0.2
      %v1549 = vmul.f32 %v997, 0.2
      %v1550 = vmul.f32 %v1002, 0.2
      %v1551 = vmul.f32 %v1005, 0.2
      %v1552 = vmul.f32 %v1010, 0.2
      %v1553 = vmul.f32 %v1013, 0.2
      %v1554 = vmul.f32 %v1018, 0.2
      %v1555 = vmul.f32 %v1021, 0.2
      %v1556 = vmul.f32 %v1026, 0.2
      %v1557 = vmul.f32 %v1029, 0.2
      %v1558 = vmul.f32 %v1034, 0.2
      %v1559 = vmul.f32 %v1037, 0.2
      %v1560 = vmul.f32 %v1042, 0.2
      %v1561 = vmul.f32 %v1045, 0.2
      %v1562 = vmul.f32 %v1050, 0.2
      %v1563 = vmul.f32 %v1053, 0.2
      %v1564 = vmul.f32 %v1058, 0.2
      %v1565 = vmul.f32 %v1061, 0.2
      %v1566 = vmul.f32 %v1066, 0.2
      %v1567 = vmul.f32 %v1069, 0.2
      %v1568 = vmul.f32 %v1074, 0.2
      %v1569 = vmul.f32 %v1077, 0.2
      %v1570 = vmul.f32 %v1082, 0.2
      %v1571 = vmul.f32 %v1085, 0.2
      %v1572 = vmul.f32 %v1090, 0.2
      %v1573 = vmul.f32 %v1093, 0.2
      %v1574 = vmul.f32 %v1098, 0.2
      %v1575 = vmul.f32 %v1101, 0.2
      %v1576 = vmul.f32 %v1106, 0.2
      %v1577 = vmul.f32 %v1109, 0.2
      %v1578 = vmul.f32 %v1114, 0.2
      %v1579 = vmul.f32 %v1117, 0.2
      %v1580 = vmul.f32 %v1122, 0.2
      %v1581 = vmul.f32 %v1125, 0.2
      %v1582 = vmul.f32 %v1130, 0.2
      %v1583 = vmul.f32 %v1133, 0.2
      %v1584 = vmul.f32 %v1138, 0.2
      %v1585 = vmul.f32 %v1141, 0.2
      %v1586 = vmul.f32 %v1146, 0.2
      %v1587 = vmul.f32 %v1149, 0.2
      %v1588 = vmul.f32 %v1154, 0.2
      %v1589 = vmul.f32 %v1157, 0.2
      %v1590 = vmul.f32 %v1162, 0.2
      %v1591 = vmul.f32 %v1165, 0.2
      %v1592 = vmul.f32 %v1170, 0.2
      %v1593 = vmul.f32 %v1173, 0.2
      %v1594 = vmul.f32 %v1178, 0.2
      %v1595 = vmul.f32 %v1181, 0.2
      %v1596 = vmul.f32 %v1186, 0.2
      %v1597 = vmul.f32 %v1189, 0.2
      %v1598 = vmul.f32 %v1194, 0.2
      %v1599 = vmul.f32 %v1197, 0.2
      %v1600 = vmul.f32 %v1202, 0.2
      %v1601 = vmul.f32 %v1205, 0.2
      %v1602 = vmul.f32 %v1210, 0.2
      %v1603 = vmul.f32 %v1213, 0.2
      %v1604 = vmul.f32 %v1218, 0.2
      %v1605 = vmul.f32 %v1221, 0.2
      %v1606 = vmul.f32 %v1226, 0.2
      %v1607 = vmul.f32 %v1229, 0.2
      %v1608 = vmul.f32 %v1234, 0.2
      %v1609 = vmul.f32 %v1237, 0.2
      %v1610 = vmul.f32 %v1242, 0.2
      %v1611 = vmul.f32 %v1245, 0.2
      %v1612 = vmul.f32 %v1250, 0.2
      %v1613 = vmul.f32 %v1253, 0.2
      %v1614 = vmul.f32 %v1258, 0.2
      %v1615 = vmul.f32 %v1261, 0.2
      %v1616 = vmul.f32 %v1266, 0.2
      %v1617 = vmul.f32 %v1269, 0.2
      %v1618 = vmul.f32 %v1274, 0.2
      %v1619 = vmul.f32 %v1277, 0.2
      %v1620 = vmul.f32 %v1282, 0.2
      %v1621 = vmul.f32 %v1285, 0.2
      %v1622 = vmul.f32 %v1290, 0.2
      %v1623 = vmul.f32 %v1293, 0.2
      %v1624 = vmul.f32 %v1298, 0.2
      %v1625 = vmul.f32 %v1301, 0.2
      %v1626 = vmul.f32 %v1306, 0.2
      %v1627 = vmul.f32 %v1309, 0.2
      %v1628 = vmul.f32 %v1314, 0.2
      %v1629 = vmul.f32 %v1317, 0.2
      %v1630 = vmul.f32 %v1322, 0.2
      %v1631 = vmul.f32 %v1325, 0.2
      %v1632 = vmul.f32 %v1330, 0.2
      %v1633 = vmul.f32 %v1333, 0.2
      %v1634 = vmul.f32 %v1338, 0.2
      %v1635 = vmul.f32 %v1341, 0.2
      %v1636 = vmul.f32 %v1346, 0.2
      %v1637 = vmul.f32 %v1349, 0.2
      %v1638 = vmul.f32 %v1354, 0.2
      %v1639 = vmul.f32 %v1357, 0.2
      %v1640 = vmul.f32 %v1362, 0.2
      %v1641 = vmul.f32 %v1365, 0.2
      %v1642 = vmul.f32 %v1370, 0.2
      %v1643 = vmul.f32 %v1373, 0.2
      %v1644 = vmul.f32 %v1378, 0.2
      %v1645 = vmul.f32 %v1381, 0.2
      %v1646 = vmul.f32 %v1386, 0.2
      %v1647 = vmul.f32 %v1389, 0.2
      %v1648 = vsel %vm1392, %v882, %v1520
      %v1649 = vsel %vm1393, %v885, %v1521
      %v1650 = vsel %vm1394, %v890, %v1522
      %v1651 = vsel %vm1395, %v893, %v1523
      %v1652 = vsel %vm1396, %v898, %v1524
      %v1653 = vsel %vm1397, %v901, %v1525
      %v1654 = vsel %vm1398, %v906, %v1526
      %v1655 = vsel %vm1399, %v909, %v1527
      %v1656 = vsel %vm1400, %v914, %v1528
      %v1657 = vsel %vm1401, %v917, %v1529
      %v1658 = vsel %vm1402, %v922, %v1530
      %v1659 = vsel %vm1403, %v925, %v1531
      %v1660 = vsel %vm1404, %v930, %v1532
      %v1661 = vsel %vm1405, %v933, %v1533
      %v1662 = vsel %vm1406, %v938, %v1534
      %v1663 = vsel %vm1407, %v941, %v1535
      %v1664 = vsel %vm1408, %v946, %v1536
      %v1665 = vsel %vm1409, %v949, %v1537
      %v1666 = vsel %vm1410, %v954, %v1538
      %v1667 = vsel %vm1411, %v957, %v1539
      %v1668 = vsel %vm1412, %v962, %v1540
      %v1669 = vsel %vm1413, %v965, %v1541
      %v1670 = vsel %vm1414, %v970, %v1542
      %v1671 = vsel %vm1415, %v973, %v1543
      %v1672 = vsel %vm1416, %v978, %v1544
      %v1673 = vsel %vm1417, %v981, %v1545
      %v1674 = vsel %vm1418, %v986, %v1546
      %v1675 = vsel %vm1419, %v989, %v1547
      %v1676 = vsel %vm1420, %v994, %v1548
      %v1677 = vsel %vm1421, %v997, %v1549
      %v1678 = vsel %vm1422, %v1002, %v1550
      %v1679 = vsel %vm1423, %v1005, %v1551
      %v1680 = vsel %vm1424, %v1010, %v1552
      %v1681 = vsel %vm1425, %v1013, %v1553
      %v1682 = vsel %vm1426, %v1018, %v1554
      %v1683 = vsel %vm1427, %v1021, %v1555
      %v1684 = vsel %vm1428, %v1026, %v1556
      %v1685 = vsel %vm1429, %v1029, %v1557
      %v1686 = vsel %vm1430, %v1034, %v1558
      %v1687 = vsel %vm1431, %v1037, %v1559
      %v1688 = vsel %vm1432, %v1042, %v1560
      %v1689 = vsel %vm1433, %v1045, %v1561
      %v1690 = vsel %vm1434, %v1050, %v1562
      %v1691 = vsel %vm1435, %v1053, %v1563
      %v1692 = vsel %vm1436, %v1058, %v1564
      %v1693 = vsel %vm1437, %v1061, %v1565
      %v1694 = vsel %vm1438, %v1066, %v1566
      %v1695 = vsel %vm1439, %v1069, %v1567
      %v1696 = vsel %vm1440, %v1074, %v1568
      %v1697 = vsel %vm1441, %v1077, %v1569
      %v1698 = vsel %vm1442, %v1082, %v1570
      %v1699 = vsel %vm1443, %v1085, %v1571
      %v1700 = vsel %vm1444, %v1090, %v1572
      %v1701 = vsel %vm1445, %v1093, %v1573
      %v1702 = vsel %vm1446, %v1098, %v1574
      %v1703 = vsel %vm1447, %v1101, %v1575
      %v1704 = vsel %vm1448, %v1106, %v1576
      %v1705 = vsel %vm1449, %v1109, %v1577
      %v1706 = vsel %vm1450, %v1114, %v1578
      %v1707 = vsel %vm1451, %v1117, %v1579
      %v1708 = vsel %vm1452, %v1122, %v1580
      %v1709 = vsel %vm1453, %v1125, %v1581
      %v1710 = vsel %vm1454, %v1130, %v1582
      %v1711 = vsel %vm1455, %v1133, %v1583
      %v1712 = vsel %vm1456, %v1138, %v1584
      %v1713 = vsel %vm1457, %v1141, %v1585
      %v1714 = vsel %vm1458, %v1146, %v1586
      %v1715 = vsel %vm1459, %v1149, %v1587
      %v1716 = vsel %vm1460, %v1154, %v1588
      %v1717 = vsel %vm1461, %v1157, %v1589
      %v1718 = vsel %vm1462, %v1162, %v1590
      %v1719 = vsel %vm1463, %v1165, %v1591
      %v1720 = vsel %vm1464, %v1170, %v1592
      %v1721 = vsel %vm1465, %v1173, %v1593
      %v1722 = vsel %vm1466, %v1178, %v1594
      %v1723 = vsel %vm1467, %v1181, %v1595
      %v1724 = vsel %vm1468, %v1186, %v1596
      %v1725 = vsel %vm1469, %v1189, %v1597
      %v1726 = vsel %vm1470, %v1194, %v1598
      %v1727 = vsel %vm1471, %v1197, %v1599
      %v1728 = vsel %vm1472, %v1202, %v1600
      %v1729 = vsel %vm1473, %v1205, %v1601
      %v1730 = vsel %vm1474, %v1210, %v1602
      %v1731 = vsel %vm1475, %v1213, %v1603
      %v1732 = vsel %vm1476, %v1218, %v1604
      %v1733 = vsel %vm1477, %v1221, %v1605
      %v1734 = vsel %vm1478, %v1226, %v1606
      %v1735 = vsel %vm1479, %v1229, %v1607
      %v1736 = vsel %vm1480, %v1234, %v1608
      %v1737 = vsel %vm1481, %v1237, %v1609
      %v1738 = vsel %vm1482, %v1242, %v1610
      %v1739 = vsel %vm1483, %v1245, %v1611
      %v1740 = vsel %vm1484, %v1250, %v1612
      %v1741 = vsel %vm1485, %v1253, %v1613
      %v1742 = vsel %vm1486, %v1258, %v1614
      %v1743 = vsel %vm1487, %v1261, %v1615
      %v1744 = vsel %vm1488, %v1266, %v1616
      %v1745 = vsel %vm1489, %v1269, %v1617
      %v1746 = vsel %vm1490, %v1274, %v1618
      %v1747 = vsel %vm1491, %v1277, %v1619
      %v1748 = vsel %vm1492, %v1282, %v1620
      %v1749 = vsel %vm1493, %v1285, %v1621
      %v1750 = vsel %vm1494, %v1290, %v1622
      %v1751 = vsel %vm1495, %v1293, %v1623
      %v1752 = vsel %vm1496, %v1298, %v1624
      %v1753 = vsel %vm1497, %v1301, %v1625
      %v1754 = vsel %vm1498, %v1306, %v1626
      %v1755 = vsel %vm1499, %v1309, %v1627
      %v1756 = vsel %vm1500, %v1314, %v1628
      %v1757 = vsel %vm1501, %v1317, %v1629
      %v1758 = vsel %vm1502, %v1322, %v1630
      %v1759 = vsel %vm1503, %v1325, %v1631
      %v1760 = vsel %vm1504, %v1330, %v1632
      %v1761 = vsel %vm1505, %v1333, %v1633
      %v1762 = vsel %vm1506, %v1338, %v1634
      %v1763 = vsel %vm1507, %v1341, %v1635
      %v1764 = vsel %vm1508, %v1346, %v1636
      %v1765 = vsel %vm1509, %v1349, %v1637
      %v1766 = vsel %vm1510, %v1354, %v1638
      %v1767 = vsel %vm1511, %v1357, %v1639
      %v1768 = vsel %vm1512, %v1362, %v1640
      %v1769 = vsel %vm1513, %v1365, %v1641
      %v1770 = vsel %vm1514, %v1370, %v1642
      %v1771 = vsel %vm1515, %v1373, %v1643
      %v1772 = vsel %vm1516, %v1378, %v1644
      %v1773 = vsel %vm1517, %v1381, %v1645
      %v1774 = vsel %vm1518, %v1386, %v1646
      %v1775 = vsel %vm1519, %v1389, %v1647
      %v1776 = vpack.c.bf16 %v1649, %v1648
      %v1777 = vpack.c.bf16 %v1651, %v1650
      %v1778 = vpack.c.bf16 %v1653, %v1652
      %v1779 = vpack.c.bf16 %v1655, %v1654
      %v1780 = vpack.c.bf16 %v1657, %v1656
      %v1781 = vpack.c.bf16 %v1659, %v1658
      %v1782 = vpack.c.bf16 %v1661, %v1660
      %v1783 = vpack.c.bf16 %v1663, %v1662
      %v1784 = vpack.c.bf16 %v1665, %v1664
      %v1785 = vpack.c.bf16 %v1667, %v1666
      %v1786 = vpack.c.bf16 %v1669, %v1668
      %v1787 = vpack.c.bf16 %v1671, %v1670
      %v1788 = vpack.c.bf16 %v1673, %v1672
      %v1789 = vpack.c.bf16 %v1675, %v1674
      %v1790 = vpack.c.bf16 %v1677, %v1676
      %v1791 = vpack.c.bf16 %v1679, %v1678
      %v1792 = vpack.c.bf16 %v1681, %v1680
      %v1793 = vpack.c.bf16 %v1683, %v1682
      %v1794 = vpack.c.bf16 %v1685, %v1684
      %v1795 = vpack.c.bf16 %v1687, %v1686
      %v1796 = vpack.c.bf16 %v1689, %v1688
      %v1797 = vpack.c.bf16 %v1691, %v1690
      %v1798 = vpack.c.bf16 %v1693, %v1692
      %v1799 = vpack.c.bf16 %v1695, %v1694
      %v1800 = vpack.c.bf16 %v1697, %v1696
      %v1801 = vpack.c.bf16 %v1699, %v1698
      %v1802 = vpack.c.bf16 %v1701, %v1700
      %v1803 = vpack.c.bf16 %v1703, %v1702
      %v1804 = vpack.c.bf16 %v1705, %v1704
      %v1805 = vpack.c.bf16 %v1707, %v1706
      %v1806 = vpack.c.bf16 %v1709, %v1708
      %v1807 = vpack.c.bf16 %v1711, %v1710
      %v1808 = vpack.c.bf16 %v1713, %v1712
      %v1809 = vpack.c.bf16 %v1715, %v1714
      %v1810 = vpack.c.bf16 %v1717, %v1716
      %v1811 = vpack.c.bf16 %v1719, %v1718
      %v1812 = vpack.c.bf16 %v1721, %v1720
      %v1813 = vpack.c.bf16 %v1723, %v1722
      %v1814 = vpack.c.bf16 %v1725, %v1724
      %v1815 = vpack.c.bf16 %v1727, %v1726
      %v1816 = vpack.c.bf16 %v1729, %v1728
      %v1817 = vpack.c.bf16 %v1731, %v1730
      %v1818 = vpack.c.bf16 %v1733, %v1732
      %v1819 = vpack.c.bf16 %v1735, %v1734
      %v1820 = vpack.c.bf16 %v1737, %v1736
      %v1821 = vpack.c.bf16 %v1739, %v1738
      %v1822 = vpack.c.bf16 %v1741, %v1740
      %v1823 = vpack.c.bf16 %v1743, %v1742
      %v1824 = vpack.c.bf16 %v1745, %v1744
      %v1825 = vpack.c.bf16 %v1747, %v1746
      %v1826 = vpack.c.bf16 %v1749, %v1748
      %v1827 = vpack.c.bf16 %v1751, %v1750
      %v1828 = vpack.c.bf16 %v1753, %v1752
      %v1829 = vpack.c.bf16 %v1755, %v1754
      %v1830 = vpack.c.bf16 %v1757, %v1756
      %v1831 = vpack.c.bf16 %v1759, %v1758
      %v1832 = vpack.c.bf16 %v1761, %v1760
      %v1833 = vpack.c.bf16 %v1763, %v1762
      %v1834 = vpack.c.bf16 %v1765, %v1764
      %v1835 = vpack.c.bf16 %v1767, %v1766
      %v1836 = vpack.c.bf16 %v1769, %v1768
      %v1837 = vpack.c.bf16 %v1771, %v1770
      %v1838 = vpack.c.bf16 %v1773, %v1772
      %v1839 = vpack.c.bf16 %v1775, %v1774
      %v1904 = vunpack.c.l.b16 %v1776
      %v1905 = vunpack.c.h.b16 %v1776
      %v1906 = vunpack.c.l.b16 %v1777
      %v1907 = vunpack.c.h.b16 %v1777
      %v1908 = vunpack.c.l.b16 %v1778
      %v1909 = vunpack.c.h.b16 %v1778
      %v1910 = vunpack.c.l.b16 %v1779
      %v1911 = vunpack.c.h.b16 %v1779
      %v1912 = vunpack.c.l.b16 %v1780
      %v1913 = vunpack.c.h.b16 %v1780
      %v1914 = vunpack.c.l.b16 %v1781
      %v1915 = vunpack.c.h.b16 %v1781
      %v1916 = vunpack.c.l.b16 %v1782
      %v1917 = vunpack.c.h.b16 %v1782
      %v1918 = vunpack.c.l.b16 %v1783
      %v1919 = vunpack.c.h.b16 %v1783
      %v1920 = vunpack.c.l.b16 %v1784
      %v1921 = vunpack.c.h.b16 %v1784
      %v1922 = vunpack.c.l.b16 %v1785
      %v1923 = vunpack.c.h.b16 %v1785
      %v1924 = vunpack.c.l.b16 %v1786
      %v1925 = vunpack.c.h.b16 %v1786
      %v1926 = vunpack.c.l.b16 %v1787
      %v1927 = vunpack.c.h.b16 %v1787
      %v1928 = vunpack.c.l.b16 %v1788
      %v1929 = vunpack.c.h.b16 %v1788
      %v1930 = vunpack.c.l.b16 %v1789
      %v1931 = vunpack.c.h.b16 %v1789
      %v1932 = vunpack.c.l.b16 %v1790
      %v1933 = vunpack.c.h.b16 %v1790
      %v1934 = vunpack.c.l.b16 %v1791
      %v1935 = vunpack.c.h.b16 %v1791
      %v1936 = vunpack.c.l.b16 %v1792
      %v1937 = vunpack.c.h.b16 %v1792
      %v1938 = vunpack.c.l.b16 %v1793
      %v1939 = vunpack.c.h.b16 %v1793
      %v1940 = vunpack.c.l.b16 %v1794
      %v1941 = vunpack.c.h.b16 %v1794
      %v1942 = vunpack.c.l.b16 %v1795
      %v1943 = vunpack.c.h.b16 %v1795
      %v1944 = vunpack.c.l.b16 %v1796
      %v1945 = vunpack.c.h.b16 %v1796
      %v1946 = vunpack.c.l.b16 %v1797
      %v1947 = vunpack.c.h.b16 %v1797
      %v1948 = vunpack.c.l.b16 %v1798
      %v1949 = vunpack.c.h.b16 %v1798
      %v1950 = vunpack.c.l.b16 %v1799
      %v1951 = vunpack.c.h.b16 %v1799
      %v1952 = vunpack.c.l.b16 %v1800
      %v1953 = vunpack.c.h.b16 %v1800
      %v1954 = vunpack.c.l.b16 %v1801
      %v1955 = vunpack.c.h.b16 %v1801
      %v1956 = vunpack.c.l.b16 %v1802
      %v1957 = vunpack.c.h.b16 %v1802
      %v1958 = vunpack.c.l.b16 %v1803
      %v1959 = vunpack.c.h.b16 %v1803
      %v1960 = vunpack.c.l.b16 %v1804
      %v1961 = vunpack.c.h.b16 %v1804
      %v1962 = vunpack.c.l.b16 %v1805
      %v1963 = vunpack.c.h.b16 %v1805
      %v1964 = vunpack.c.l.b16 %v1806
      %v1965 = vunpack.c.h.b16 %v1806
      %v1966 = vunpack.c.l.b16 %v1807
      %v1967 = vunpack.c.h.b16 %v1807
      %v1968 = vunpack.c.l.b16 %v1808
      %v1969 = vunpack.c.h.b16 %v1808
      %v1970 = vunpack.c.l.b16 %v1809
      %v1971 = vunpack.c.h.b16 %v1809
      %v1972 = vunpack.c.l.b16 %v1810
      %v1973 = vunpack.c.h.b16 %v1810
      %v1974 = vunpack.c.l.b16 %v1811
      %v1975 = vunpack.c.h.b16 %v1811
      %v1976 = vunpack.c.l.b16 %v1812
      %v1977 = vunpack.c.h.b16 %v1812
      %v1978 = vunpack.c.l.b16 %v1813
      %v1979 = vunpack.c.h.b16 %v1813
      %v1980 = vunpack.c.l.b16 %v1814
      %v1981 = vunpack.c.h.b16 %v1814
      %v1982 = vunpack.c.l.b16 %v1815
      %v1983 = vunpack.c.h.b16 %v1815
      %v1984 = vunpack.c.l.b16 %v1816
      %v1985 = vunpack.c.h.b16 %v1816
      %v1986 = vunpack.c.l.b16 %v1817
      %v1987 = vunpack.c.h.b16 %v1817
      %v1988 = vunpack.c.l.b16 %v1818
      %v1989 = vunpack.c.h.b16 %v1818
      %v1990 = vunpack.c.l.b16 %v1819
      %v1991 = vunpack.c.h.b16 %v1819
      %v1992 = vunpack.c.l.b16 %v1820
      %v1993 = vunpack.c.h.b16 %v1820
      %v1994 = vunpack.c.l.b16 %v1821
      %v1995 = vunpack.c.h.b16 %v1821
      %v1996 = vunpack.c.l.b16 %v1822
      %v1997 = vunpack.c.h.b16 %v1822
      %v1998 = vunpack.c.l.b16 %v1823
      %v1999 = vunpack.c.h.b16 %v1823
      %v2000 = vunpack.c.l.b16 %v1824
      %v2001 = vunpack.c.h.b16 %v1824
      %v2002 = vunpack.c.l.b16 %v1825
      %v2003 = vunpack.c.h.b16 %v1825
      %v2004 = vunpack.c.l.b16 %v1826
      %v2005 = vunpack.c.h.b16 %v1826
      %v2006 = vunpack.c.l.b16 %v1827
      %v2007 = vunpack.c.h.b16 %v1827
      %v2008 = vunpack.c.l.b16 %v1828
      %v2009 = vunpack.c.h.b16 %v1828
      %v2010 = vunpack.c.l.b16 %v1829
      %v2011 = vunpack.c.h.b16 %v1829
      %v2012 = vunpack.c.l.b16 %v1830
      %v2013 = vunpack.c.h.b16 %v1830
      %v2014 = vunpack.c.l.b16 %v1831
      %v2015 = vunpack.c.h.b16 %v1831
      %v2016 = vunpack.c.l.b16 %v1832
      %v2017 = vunpack.c.h.b16 %v1832
      %v2018 = vunpack.c.l.b16 %v1833
      %v2019 = vunpack.c.h.b16 %v1833
      %v2020 = vunpack.c.l.b16 %v1834
      %v2021 = vunpack.c.h.b16 %v1834
      %v2022 = vunpack.c.l.b16 %v1835
      %v2023 = vunpack.c.h.b16 %v1835
      %v2024 = vunpack.c.l.b16 %v1836
      %v2025 = vunpack.c.h.b16 %v1836
      %v2026 = vunpack.c.l.b16 %v1837
      %v2027 = vunpack.c.h.b16 %v1837
      %v2028 = vunpack.c.l.b16 %v1838
      %v2029 = vunpack.c.h.b16 %v1838
      %v2030 = vunpack.c.l.b16 %v1839
      %v2031 = vunpack.c.h.b16 %v1839
      %v2032 = vpack.c.b16 %v1904, %v1904
      %v2033 = vpack.c.b16 %v1905, %v1905
      %v2034 = vpack.c.b16 %v1906, %v1906
      %v2035 = vpack.c.b16 %v1907, %v1907
      %v2036 = vpack.c.b16 %v1908, %v1908
      %v2037 = vpack.c.b16 %v1909, %v1909
      %v2038 = vpack.c.b16 %v1910, %v1910
      %v2039 = vpack.c.b16 %v1911, %v1911
      %v2040 = vpack.c.b16 %v1912, %v1912
      %v2041 = vpack.c.b16 %v1913, %v1913
      %v2042 = vpack.c.b16 %v1914, %v1914
      %v2043 = vpack.c.b16 %v1915, %v1915
      %v2044 = vpack.c.b16 %v1916, %v1916
      %v2045 = vpack.c.b16 %v1917, %v1917
      %v2046 = vpack.c.b16 %v1918, %v1918
      %v2047 = vpack.c.b16 %v1919, %v1919
      %v2048 = vpack.c.b16 %v1920, %v1920
      %v2049 = vpack.c.b16 %v1921, %v1921
      %v2050 = vpack.c.b16 %v1922, %v1922
      %v2051 = vpack.c.b16 %v1923, %v1923
      %v2052 = vpack.c.b16 %v1924, %v1924
      %v2053 = vpack.c.b16 %v1925, %v1925
      %v2054 = vpack.c.b16 %v1926, %v1926
      %v2055 = vpack.c.b16 %v1927, %v1927
      %v2056 = vpack.c.b16 %v1928, %v1928
      %v2057 = vpack.c.b16 %v1929, %v1929
      %v2058 = vpack.c.b16 %v1930, %v1930
      %v2059 = vpack.c.b16 %v1931, %v1931
      %v2060 = vpack.c.b16 %v1932, %v1932
      %v2061 = vpack.c.b16 %v1933, %v1933
      %v2062 = vpack.c.b16 %v1934, %v1934
      %v2063 = vpack.c.b16 %v1935, %v1935
      %v2064 = vpack.c.b16 %v1936, %v1936
      %v2065 = vpack.c.b16 %v1937, %v1937
      %v2066 = vpack.c.b16 %v1938, %v1938
      %v2067 = vpack.c.b16 %v1939, %v1939
      %v2068 = vpack.c.b16 %v1940, %v1940
      %v2069 = vpack.c.b16 %v1941, %v1941
      %v2070 = vpack.c.b16 %v1942, %v1942
      %v2071 = vpack.c.b16 %v1943, %v1943
      %v2072 = vpack.c.b16 %v1944, %v1944
      %v2073 = vpack.c.b16 %v1945, %v1945
      %v2074 = vpack.c.b16 %v1946, %v1946
      %v2075 = vpack.c.b16 %v1947, %v1947
      %v2076 = vpack.c.b16 %v1948, %v1948
      %v2077 = vpack.c.b16 %v1949, %v1949
      %v2078 = vpack.c.b16 %v1950, %v1950
      %v2079 = vpack.c.b16 %v1951, %v1951
      %v2080 = vpack.c.b16 %v1952, %v1952
      %v2081 = vpack.c.b16 %v1953, %v1953
      %v2082 = vpack.c.b16 %v1954, %v1954
      %v2083 = vpack.c.b16 %v1955, %v1955
      %v2084 = vpack.c.b16 %v1956, %v1956
      %v2085 = vpack.c.b16 %v1957, %v1957
      %v2086 = vpack.c.b16 %v1958, %v1958
      %v2087 = vpack.c.b16 %v1959, %v1959
      %v2088 = vpack.c.b16 %v1960, %v1960
      %v2089 = vpack.c.b16 %v1961, %v1961
      %v2090 = vpack.c.b16 %v1962, %v1962
      %v2091 = vpack.c.b16 %v1963, %v1963
      %v2092 = vpack.c.b16 %v1964, %v1964
      %v2093 = vpack.c.b16 %v1965, %v1965
      %v2094 = vpack.c.b16 %v1966, %v1966
      %v2095 = vpack.c.b16 %v1967, %v1967
      %v2096 = vpack.c.b16 %v1968, %v1968
      %v2097 = vpack.c.b16 %v1969, %v1969
      %v2098 = vpack.c.b16 %v1970, %v1970
      %v2099 = vpack.c.b16 %v1971, %v1971
      %v2100 = vpack.c.b16 %v1972, %v1972
      %v2101 = vpack.c.b16 %v1973, %v1973
      %v2102 = vpack.c.b16 %v1974, %v1974
      %v2103 = vpack.c.b16 %v1975, %v1975
      %v2104 = vpack.c.b16 %v1976, %v1976
      %v2105 = vpack.c.b16 %v1977, %v1977
      %v2106 = vpack.c.b16 %v1978, %v1978
      %v2107 = vpack.c.b16 %v1979, %v1979
      %v2108 = vpack.c.b16 %v1980, %v1980
      %v2109 = vpack.c.b16 %v1981, %v1981
      %v2110 = vpack.c.b16 %v1982, %v1982
      %v2111 = vpack.c.b16 %v1983, %v1983
      %v2112 = vpack.c.b16 %v1984, %v1984
      %v2113 = vpack.c.b16 %v1985, %v1985
      %v2114 = vpack.c.b16 %v1986, %v1986
      %v2115 = vpack.c.b16 %v1987, %v1987
      %v2116 = vpack.c.b16 %v1988, %v1988
      %v2117 = vpack.c.b16 %v1989, %v1989
      %v2118 = vpack.c.b16 %v1990, %v1990
      %v2119 = vpack.c.b16 %v1991, %v1991
      %v2120 = vpack.c.b16 %v1992, %v1992
      %v2121 = vpack.c.b16 %v1993, %v1993
      %v2122 = vpack.c.b16 %v1994, %v1994
      %v2123 = vpack.c.b16 %v1995, %v1995
      %v2124 = vpack.c.b16 %v1996, %v1996
      %v2125 = vpack.c.b16 %v1997, %v1997
      %v2126 = vpack.c.b16 %v1998, %v1998
      %v2127 = vpack.c.b16 %v1999, %v1999
      %v2128 = vpack.c.b16 %v2000, %v2000
      %v2129 = vpack.c.b16 %v2001, %v2001
      %v2130 = vpack.c.b16 %v2002, %v2002
      %v2131 = vpack.c.b16 %v2003, %v2003
      %v2132 = vpack.c.b16 %v2004, %v2004
      %v2133 = vpack.c.b16 %v2005, %v2005
      %v2134 = vpack.c.b16 %v2006, %v2006
      %v2135 = vpack.c.b16 %v2007, %v2007
      %v2136 = vpack.c.b16 %v2008, %v2008
      %v2137 = vpack.c.b16 %v2009, %v2009
      %v2138 = vpack.c.b16 %v2010, %v2010
      %v2139 = vpack.c.b16 %v2011, %v2011
      %v2140 = vpack.c.b16 %v2012, %v2012
      %v2141 = vpack.c.b16 %v2013, %v2013
      %v2142 = vpack.c.b16 %v2014, %v2014
      %v2143 = vpack.c.b16 %v2015, %v2015
      %v2144 = vpack.c.b16 %v2016, %v2016
      %v2145 = vpack.c.b16 %v2017, %v2017
      %v2146 = vpack.c.b16 %v2018, %v2018
      %v2147 = vpack.c.b16 %v2019, %v2019
      %v2148 = vpack.c.b16 %v2020, %v2020
      %v2149 = vpack.c.b16 %v2021, %v2021
      %v2150 = vpack.c.b16 %v2022, %v2022
      %v2151 = vpack.c.b16 %v2023, %v2023
      %v2152 = vpack.c.b16 %v2024, %v2024
      %v2153 = vpack.c.b16 %v2025, %v2025
      %v2154 = vpack.c.b16 %v2026, %v2026
      %v2155 = vpack.c.b16 %v2027, %v2027
      %v2156 = vpack.c.b16 %v2028, %v2028
      %v2157 = vpack.c.b16 %v2029, %v2029
      %v2158 = vpack.c.b16 %v2030, %v2030
      %v2159 = vpack.c.b16 %v2031, %v2031
      %vm2288 = vcmask 60416
      %2289 = vst.msk [vmem:[%s172] sm:$0xf] %vm2288, %v2032
      %2290 = vst.msk [vmem:[%s172 + $0x4] sm:$0xf] %vm2288, %v2033
      %2291 = vst.msk [vmem:[%s172 + $0x8] sm:$0xf] %vm2288, %v2034
      %2292 = vst.msk [vmem:[%s172 + $0xc] sm:$0xf] %vm2288, %v2035
      %2293 = vst.msk [vmem:[%s172 + $0x10] sm:$0xf] %vm2288, %v2036
      %2294 = vst.msk [vmem:[%s172 + $0x14] sm:$0xf] %vm2288, %v2037
      %2295 = vst.msk [vmem:[%s172 + $0x18] sm:$0xf] %vm2288, %v2038
      %2296 = vst.msk [vmem:[%s172 + $0x1c] sm:$0xf] %vm2288, %v2039
      %2297 = vst.msk [vmem:[%s172 + $0x20] sm:$0xf] %vm2288, %v2040
      %2298 = vst.msk [vmem:[%s172 + $0x24] sm:$0xf] %vm2288, %v2041
      %2299 = vst.msk [vmem:[%s172 + $0x28] sm:$0xf] %vm2288, %v2042
      %2300 = vst.msk [vmem:[%s172 + $0x2c] sm:$0xf] %vm2288, %v2043
      %2301 = vst.msk [vmem:[%s172 + $0x30] sm:$0xf] %vm2288, %v2044
      %2302 = vst.msk [vmem:[%s172 + $0x34] sm:$0xf] %vm2288, %v2045
      %2303 = vst.msk [vmem:[%s172 + $0x38] sm:$0xf] %vm2288, %v2046
      %2304 = vst.msk [vmem:[%s172 + $0x3c] sm:$0xf] %vm2288, %v2047
      %2305 = vst.msk [vmem:[%s172 + $0x40] sm:$0xf] %vm2288, %v2048
      %2306 = vst.msk [vmem:[%s172 + $0x44] sm:$0xf] %vm2288, %v2049
      %2307 = vst.msk [vmem:[%s172 + $0x48] sm:$0xf] %vm2288, %v2050
      %2308 = vst.msk [vmem:[%s172 + $0x4c] sm:$0xf] %vm2288, %v2051
      %2309 = vst.msk [vmem:[%s172 + $0x50] sm:$0xf] %vm2288, %v2052
      %2310 = vst.msk [vmem:[%s172 + $0x54] sm:$0xf] %vm2288, %v2053
      %2311 = vst.msk [vmem:[%s172 + $0x58] sm:$0xf] %vm2288, %v2054
      %2312 = vst.msk [vmem:[%s172 + $0x5c] sm:$0xf] %vm2288, %v2055
      %2313 = vst.msk [vmem:[%s172 + $0x60] sm:$0xf] %vm2288, %v2056
      %2314 = vst.msk [vmem:[%s172 + $0x64] sm:$0xf] %vm2288, %v2057
      %2315 = vst.msk [vmem:[%s172 + $0x68] sm:$0xf] %vm2288, %v2058
      %2316 = vst.msk [vmem:[%s172 + $0x6c] sm:$0xf] %vm2288, %v2059
      %2317 = vst.msk [vmem:[%s172 + $0x70] sm:$0xf] %vm2288, %v2060
      %2318 = vst.msk [vmem:[%s172 + $0x74] sm:$0xf] %vm2288, %v2061
      %2319 = vst.msk [vmem:[%s172 + $0x78] sm:$0xf] %vm2288, %v2062
      %2320 = vst.msk [vmem:[%s172 + $0x7c] sm:$0xf] %vm2288, %v2063
      %2321 = vst.msk [vmem:[%s172 + $0x80] sm:$0xf] %vm2288, %v2064
      %2322 = vst.msk [vmem:[%s172 + $0x84] sm:$0xf] %vm2288, %v2065
      %2323 = vst.msk [vmem:[%s172 + $0x88] sm:$0xf] %vm2288, %v2066
      %2324 = vst.msk [vmem:[%s172 + $0x8c] sm:$0xf] %vm2288, %v2067
      %2325 = vst.msk [vmem:[%s172 + $0x90] sm:$0xf] %vm2288, %v2068
      %2326 = vst.msk [vmem:[%s172 + $0x94] sm:$0xf] %vm2288, %v2069
      %2327 = vst.msk [vmem:[%s172 + $0x98] sm:$0xf] %vm2288, %v2070
      %2328 = vst.msk [vmem:[%s172 + $0x9c] sm:$0xf] %vm2288, %v2071
      %2329 = vst.msk [vmem:[%s172 + $0xa0] sm:$0xf] %vm2288, %v2072
      %2330 = vst.msk [vmem:[%s172 + $0xa4] sm:$0xf] %vm2288, %v2073
      %2331 = vst.msk [vmem:[%s172 + $0xa8] sm:$0xf] %vm2288, %v2074
      %2332 = vst.msk [vmem:[%s172 + $0xac] sm:$0xf] %vm2288, %v2075
      %2333 = vst.msk [vmem:[%s172 + $0xb0] sm:$0xf] %vm2288, %v2076
      %2334 = vst.msk [vmem:[%s172 + $0xb4] sm:$0xf] %vm2288, %v2077
      %2335 = vst.msk [vmem:[%s172 + $0xb8] sm:$0xf] %vm2288, %v2078
      %2336 = vst.msk [vmem:[%s172 + $0xbc] sm:$0xf] %vm2288, %v2079
      %2337 = vst.msk [vmem:[%s172 + $0xc0] sm:$0xf] %vm2288, %v2080
      %2338 = vst.msk [vmem:[%s172 + $0xc4] sm:$0xf] %vm2288, %v2081
      %2339 = vst.msk [vmem:[%s172 + $0xc8] sm:$0xf] %vm2288, %v2082
      %2340 = vst.msk [vmem:[%s172 + $0xcc] sm:$0xf] %vm2288, %v2083
      %2341 = vst.msk [vmem:[%s172 + $0xd0] sm:$0xf] %vm2288, %v2084
      %2342 = vst.msk [vmem:[%s172 + $0xd4] sm:$0xf] %vm2288, %v2085
      %2343 = vst.msk [vmem:[%s172 + $0xd8] sm:$0xf] %vm2288, %v2086
      %2344 = vst.msk [vmem:[%s172 + $0xdc] sm:$0xf] %vm2288, %v2087
      %2345 = vst.msk [vmem:[%s172 + $0xe0] sm:$0xf] %vm2288, %v2088
      %2346 = vst.msk [vmem:[%s172 + $0xe4] sm:$0xf] %vm2288, %v2089
      %2347 = vst.msk [vmem:[%s172 + $0xe8] sm:$0xf] %vm2288, %v2090
      %2348 = vst.msk [vmem:[%s172 + $0xec] sm:$0xf] %vm2288, %v2091
      %2349 = vst.msk [vmem:[%s172 + $0xf0] sm:$0xf] %vm2288, %v2092
      %2350 = vst.msk [vmem:[%s172 + $0xf4] sm:$0xf] %vm2288, %v2093
      %2351 = vst.msk [vmem:[%s172 + $0xf8] sm:$0xf] %vm2288, %v2094
      %2352 = vst.msk [vmem:[%s172 + $0xfc] sm:$0xf] %vm2288, %v2095
      %2353 = vst.msk [vmem:[%s172 + $0x100] sm:$0xf] %vm2288, %v2096
      %2354 = vst.msk [vmem:[%s172 + $0x104] sm:$0xf] %vm2288, %v2097
      %2355 = vst.msk [vmem:[%s172 + $0x108] sm:$0xf] %vm2288, %v2098
      %2356 = vst.msk [vmem:[%s172 + $0x10c] sm:$0xf] %vm2288, %v2099
      %2357 = vst.msk [vmem:[%s172 + $0x110] sm:$0xf] %vm2288, %v2100
      %2358 = vst.msk [vmem:[%s172 + $0x114] sm:$0xf] %vm2288, %v2101
      %2359 = vst.msk [vmem:[%s172 + $0x118] sm:$0xf] %vm2288, %v2102
      %2360 = vst.msk [vmem:[%s172 + $0x11c] sm:$0xf] %vm2288, %v2103
      %2361 = vst.msk [vmem:[%s172 + $0x120] sm:$0xf] %vm2288, %v2104
      %2362 = vst.msk [vmem:[%s172 + $0x124] sm:$0xf] %vm2288, %v2105
      %2363 = vst.msk [vmem:[%s172 + $0x128] sm:$0xf] %vm2288, %v2106
      %2364 = vst.msk [vmem:[%s172 + $0x12c] sm:$0xf] %vm2288, %v2107
      %2365 = vst.msk [vmem:[%s172 + $0x130] sm:$0xf] %vm2288, %v2108
      %2366 = vst.msk [vmem:[%s172 + $0x134] sm:$0xf] %vm2288, %v2109
      %2367 = vst.msk [vmem:[%s172 + $0x138] sm:$0xf] %vm2288, %v2110
      %2368 = vst.msk [vmem:[%s172 + $0x13c] sm:$0xf] %vm2288, %v2111
      %2369 = vst.msk [vmem:[%s172 + $0x140] sm:$0xf] %vm2288, %v2112
      %2370 = vst.msk [vmem:[%s172 + $0x144] sm:$0xf] %vm2288, %v2113
      %2371 = vst.msk [vmem:[%s172 + $0x148] sm:$0xf] %vm2288, %v2114
      %2372 = vst.msk [vmem:[%s172 + $0x14c] sm:$0xf] %vm2288, %v2115
      %2373 = vst.msk [vmem:[%s172 + $0x150] sm:$0xf] %vm2288, %v2116
      %2374 = vst.msk [vmem:[%s172 + $0x154] sm:$0xf] %vm2288, %v2117
      %2375 = vst.msk [vmem:[%s172 + $0x158] sm:$0xf] %vm2288, %v2118
      %2376 = vst.msk [vmem:[%s172 + $0x15c] sm:$0xf] %vm2288, %v2119
      %2377 = vst.msk [vmem:[%s172 + $0x160] sm:$0xf] %vm2288, %v2120
      %2378 = vst.msk [vmem:[%s172 + $0x164] sm:$0xf] %vm2288, %v2121
      %2379 = vst.msk [vmem:[%s172 + $0x168] sm:$0xf] %vm2288, %v2122
      %2380 = vst.msk [vmem:[%s172 + $0x16c] sm:$0xf] %vm2288, %v2123
      %2381 = vst.msk [vmem:[%s172 + $0x170] sm:$0xf] %vm2288, %v2124
      %2382 = vst.msk [vmem:[%s172 + $0x174] sm:$0xf] %vm2288, %v2125
      %2383 = vst.msk [vmem:[%s172 + $0x178] sm:$0xf] %vm2288, %v2126
      %2384 = vst.msk [vmem:[%s172 + $0x17c] sm:$0xf] %vm2288, %v2127
      %2385 = vst.msk [vmem:[%s172 + $0x180] sm:$0xf] %vm2288, %v2128
      %2386 = vst.msk [vmem:[%s172 + $0x184] sm:$0xf] %vm2288, %v2129
      %2387 = vst.msk [vmem:[%s172 + $0x188] sm:$0xf] %vm2288, %v2130
      %2388 = vst.msk [vmem:[%s172 + $0x18c] sm:$0xf] %vm2288, %v2131
      %2389 = vst.msk [vmem:[%s172 + $0x190] sm:$0xf] %vm2288, %v2132
      %2390 = vst.msk [vmem:[%s172 + $0x194] sm:$0xf] %vm2288, %v2133
      %2391 = vst.msk [vmem:[%s172 + $0x198] sm:$0xf] %vm2288, %v2134
      %2392 = vst.msk [vmem:[%s172 + $0x19c] sm:$0xf] %vm2288, %v2135
      %2393 = vst.msk [vmem:[%s172 + $0x1a0] sm:$0xf] %vm2288, %v2136
      %2394 = vst.msk [vmem:[%s172 + $0x1a4] sm:$0xf] %vm2288, %v2137
      %2395 = vst.msk [vmem:[%s172 + $0x1a8] sm:$0xf] %vm2288, %v2138
      %2396 = vst.msk [vmem:[%s172 + $0x1ac] sm:$0xf] %vm2288, %v2139
      %2397 = vst.msk [vmem:[%s172 + $0x1b0] sm:$0xf] %vm2288, %v2140
      %2398 = vst.msk [vmem:[%s172 + $0x1b4] sm:$0xf] %vm2288, %v2141
      %2399 = vst.msk [vmem:[%s172 + $0x1b8] sm:$0xf] %vm2288, %v2142
      %2400 = vst.msk [vmem:[%s172 + $0x1bc] sm:$0xf] %vm2288, %v2143
      %2401 = vst.msk [vmem:[%s172 + $0x1c0] sm:$0xf] %vm2288, %v2144
      %2402 = vst.msk [vmem:[%s172 + $0x1c4] sm:$0xf] %vm2288, %v2145
      %2403 = vst.msk [vmem:[%s172 + $0x1c8] sm:$0xf] %vm2288, %v2146
      %2404 = vst.msk [vmem:[%s172 + $0x1cc] sm:$0xf] %vm2288, %v2147
      %2405 = vst.msk [vmem:[%s172 + $0x1d0] sm:$0xf] %vm2288, %v2148
      %2406 = vst.msk [vmem:[%s172 + $0x1d4] sm:$0xf] %vm2288, %v2149
      %2407 = vst.msk [vmem:[%s172 + $0x1d8] sm:$0xf] %vm2288, %v2150
      %2408 = vst.msk [vmem:[%s172 + $0x1dc] sm:$0xf] %vm2288, %v2151
      %2409 = vst.msk [vmem:[%s172 + $0x1e0] sm:$0xf] %vm2288, %v2152
      %2410 = vst.msk [vmem:[%s172 + $0x1e4] sm:$0xf] %vm2288, %v2153
      %2411 = vst.msk [vmem:[%s172 + $0x1e8] sm:$0xf] %vm2288, %v2154
      %2412 = vst.msk [vmem:[%s172 + $0x1ec] sm:$0xf] %vm2288, %v2155
      %2413 = vst.msk [vmem:[%s172 + $0x1f0] sm:$0xf] %vm2288, %v2156
      %2414 = vst.msk [vmem:[%s172 + $0x1f4] sm:$0xf] %vm2288, %v2157
      %2415 = vst.msk [vmem:[%s172 + $0x1f8] sm:$0xf] %vm2288, %v2158
      %2416 = vst.msk [vmem:[%s172 + $0x1fc] sm:$0xf] %vm2288, %v2159
      %s2417 = smul.u32 128, %s14
      %p2418 = scmp.lt.s32.totalorder %s2417, 255
      %s2419 = scalar_select %p2418, %s2417, 255
      %s2420 = smul.addr %s2419, 4
      %s2421 = scalar_lea.vmem %s3, %s2420
      // Predicated region
      $region33: #{netD_forward.8} parent=31 // pred_check
        %p2422 = pneg %p100
      $region34: #{netD_forward.8} parent=31 // pred_check_branch
        %2424 = sbr.rel (%p2422) target = $region36
      $region35: #{netD_forward.8} parent=31 // pred_region
        %s2425 = smul.u32 128, %s14
      $region36: #{netD_forward.8} parent=31 // pred_fallthru
        _
    $region32: #{netD_forward.8} parent=5 // pred_fallthru
      _
    %p2426 = scmp.le.s32.totalorder 2, %s9
    // Predicated region
    $region37: #{netD_forward.8} parent=5 // pred_check
      %p2427 = pneg %p2426
    $region38: #{netD_forward.8} parent=5 // pred_check_branch
      %2429 = sbr.rel (%p2427) target = $region40
    $region39: #{netD_forward.8} parent=5 // pred_region
      %s2430 = ssub.s32 %s9, 2
      // Predicated region
      $region41: #{netD_forward.8} parent=39 // pred_check
        %p2431 = pneg %p106
      $region42: #{netD_forward.8} parent=39 // pred_check_branch
        %2433 = sbr.rel (%p2431) target = $region44
      $region43: #{netD_forward.8} parent=39 // pred_region
        %s2434 = smul.u32 128, %s15
        %p2435 = scmp.lt.s32.totalorder %s2434, 255
        %s2436 = scalar_select %p2435, %s2434, 255
        %s2437 = smul.addr %s2436, 4
        %s2438 = scalar_lea.vmem %s3, %s2437
      $region44: #{netD_forward.8} parent=39 // pred_fallthru
        _
    $region40: #{netD_forward.8} parent=5 // pred_fallthru
      _
  $region6: #{netD_forward.8} parent=0 // loop_footer
    %s13 = sadd.s32 1, %s9
  $region7: #{netD_forward.8} parent=0 // loop_footer_branch
    %8 = sbr.rel target = $region3
  $region8: #{netD_forward.8} parent=0 // loop_exit
    _

// kernel: netD_forward.9
$region0: #{netD_forward.9}
  #allocation0 [shape = 'u32[]', space=smem, size = 0x4, offset = 0x4, fixed_abs, tag = 'smem constant byte address 0x4 - core index']
  #allocation1 [shape = 'u32[144,128]{1,0:T(1,128)}', space=vmem, size = 0x12000, scoped, tag = 'internal scratch']
  %s0 = inlined_call_operand.vmem [shape: bf16[512,128], index: 0, kind: input, shape index: {}]
  %s1 = inlined_call_operand.vmem [shape: bf16[128,16], index: 1, kind: input, shape index: {}]
  %s2 = inlined_call_operand.vmem [shape: bf16[512,16], index: 2, kind: output, shape index: {0}]
  %s3 = inlined_call_operand.vmem [shape: f32[1,2,16], index: 3, kind: output, shape index: {1}]
  %4 = xla_tuple %s2, %s3
  %s5 = sld [smem:[#allocation0]]
  $region26: #{netD_forward.9} parent=0
    _
  %s7 = ssub.s32 1, %s5
  %s8 = scalar_select 0, %s7, %s5
  // Predicated region
  $region2: #{netD_forward.9} parent=0 // pred_check
    _
  $region3: #{netD_forward.9} parent=0 // pred_check_branch
    %10 = sbr.rel (0) target = $region5
  $region4: #{netD_forward.9} parent=0 // pred_region
    _
  $region5: #{netD_forward.9} parent=0 // pred_fallthru
    _
  // Predicated region
  $region6: #{netD_forward.9} parent=0 // pred_check
    _
  $region7: #{netD_forward.9} parent=0 // pred_check_branch
    %12 = sbr.rel (0) target = $region9
  $region8: #{netD_forward.9} parent=0 // pred_region
    _
  $region9: #{netD_forward.9} parent=0 // pred_fallthru
    _
  %v14 = vld [vmem:[%s0] sm:$0xf]
  %v15 = vld [vmem:[%s0 + $0x4] sm:$0xf]
  %v16 = vld [vmem:[%s0 + $0x8] sm:$0xf]
  %v17 = vld [vmem:[%s0 + $0xc] sm:$0xf]
  %v18 = vld [vmem:[%s0 + $0x10] sm:$0xf]
  %v19 = vld [vmem:[%s0 + $0x14] sm:$0xf]
  %v20 = vld [vmem:[%s0 + $0x18] sm:$0xf]
  %v21 = vld [vmem:[%s0 + $0x1c] sm:$0xf]
  %v22 = vld [vmem:[%s0 + $0x20] sm:$0xf]
  %v23 = vld [vmem:[%s0 + $0x24] sm:$0xf]
  %v24 = vld [vmem:[%s0 + $0x28] sm:$0xf]
  %v25 = vld [vmem:[%s0 + $0x2c] sm:$0xf]
  %v26 = vld [vmem:[%s0 + $0x30] sm:$0xf]
  %v27 = vld [vmem:[%s0 + $0x34] sm:$0xf]
  %v28 = vld [vmem:[%s0 + $0x38] sm:$0xf]
  %v29 = vld [vmem:[%s0 + $0x3c] sm:$0xf]
  %v30 = vld [vmem:[%s0 + $0x40] sm:$0xf]
  %v31 = vld [vmem:[%s0 + $0x44] sm:$0xf]
  %v32 = vld [vmem:[%s0 + $0x48] sm:$0xf]
  %v33 = vld [vmem:[%s0 + $0x4c] sm:$0xf]
  %v34 = vld [vmem:[%s0 + $0x50] sm:$0xf]
  %v35 = vld [vmem:[%s0 + $0x54] sm:$0xf]
  %v36 = vld [vmem:[%s0 + $0x58] sm:$0xf]
  %v37 = vld [vmem:[%s0 + $0x5c] sm:$0xf]
  %v38 = vld [vmem:[%s0 + $0x60] sm:$0xf]
  %v39 = vld [vmem:[%s0 + $0x64] sm:$0xf]
  %v40 = vld [vmem:[%s0 + $0x68] sm:$0xf]
  %v41 = vld [vmem:[%s0 + $0x6c] sm:$0xf]
  %v42 = vld [vmem:[%s0 + $0x70] sm:$0xf]
  %v43 = vld [vmem:[%s0 + $0x74] sm:$0xf]
  %v44 = vld [vmem:[%s0 + $0x78] sm:$0xf]
  %v45 = vld [vmem:[%s0 + $0x7c] sm:$0xf]
  %v46 = vld [vmem:[%s0 + $0x80] sm:$0xf]
  %v47 = vld [vmem:[%s0 + $0x84] sm:$0xf]
  %v48 = vld [vmem:[%s0 + $0x88] sm:$0xf]
  %v49 = vld [vmem:[%s0 + $0x8c] sm:$0xf]
  %v50 = vld [vmem:[%s0 + $0x90] sm:$0xf]
  %v51 = vld [vmem:[%s0 + $0x94] sm:$0xf]
  %v52 = vld [vmem:[%s0 + $0x98] sm:$0xf]
  %v53 = vld [vmem:[%s0 + $0x9c] sm:$0xf]
  %v54 = vld [vmem:[%s0 + $0xa0] sm:$0xf]
  %v55 = vld [vmem:[%s0 + $0xa4] sm:$0xf]
  %v56 = vld [vmem:[%s0 + $0xa8] sm:$0xf]
  %v57 = vld [vmem:[%s0 + $0xac] sm:$0xf]
  %v58 = vld [vmem:[%s0 + $0xb0] sm:$0xf]
  %v59 = vld [vmem:[%s0 + $0xb4] sm:$0xf]
  %v60 = vld [vmem:[%s0 + $0xb8] sm:$0xf]
  %v61 = vld [vmem:[%s0 + $0xbc] sm:$0xf]
  %v62 = vld [vmem:[%s0 + $0xc0] sm:$0xf]
  %v63 = vld [vmem:[%s0 + $0xc4] sm:$0xf]
  %v64 = vld [vmem:[%s0 + $0xc8] sm:$0xf]
  %v65 = vld [vmem:[%s0 + $0xcc] sm:$0xf]
  %v66 = vld [vmem:[%s0 + $0xd0] sm:$0xf]
  %v67 = vld [vmem:[%s0 + $0xd4] sm:$0xf]
  %v68 = vld [vmem:[%s0 + $0xd8] sm:$0xf]
  %v69 = vld [vmem:[%s0 + $0xdc] sm:$0xf]
  %v70 = vld [vmem:[%s0 + $0xe0] sm:$0xf]
  %v71 = vld [vmem:[%s0 + $0xe4] sm:$0xf]
  %v72 = vld [vmem:[%s0 + $0xe8] sm:$0xf]
  %v73 = vld [vmem:[%s0 + $0xec] sm:$0xf]
  %v74 = vld [vmem:[%s0 + $0xf0] sm:$0xf]
  %v75 = vld [vmem:[%s0 + $0xf4] sm:$0xf]
  %v76 = vld [vmem:[%s0 + $0xf8] sm:$0xf]
  %v77 = vld [vmem:[%s0 + $0xfc] sm:$0xf]
  %v78 = vld [vmem:[%s1] sm:$0xf]
  %v79 = vld [vmem:[%s1 + $0x4] sm:$0xf]
  %v80 = vld [vmem:[%s1 + $0x8] sm:$0xf]
  %v81 = vld [vmem:[%s1 + $0xc] sm:$0xf]
  %v82 = vld [vmem:[%s1 + $0x10] sm:$0xf]
  %v83 = vld [vmem:[%s1 + $0x14] sm:$0xf]
  %v84 = vld [vmem:[%s1 + $0x18] sm:$0xf]
  %v85 = vld [vmem:[%s1 + $0x1c] sm:$0xf]
  %v86 = vld [vmem:[%s1 + $0x20] sm:$0xf]
  %v87 = vld [vmem:[%s1 + $0x24] sm:$0xf]
  %v88 = vld [vmem:[%s1 + $0x28] sm:$0xf]
  %v89 = vld [vmem:[%s1 + $0x2c] sm:$0xf]
  %v90 = vld [vmem:[%s1 + $0x30] sm:$0xf]
  %v91 = vld [vmem:[%s1 + $0x34] sm:$0xf]
  %v92 = vld [vmem:[%s1 + $0x38] sm:$0xf]
  %v93 = vld [vmem:[%s1 + $0x3c] sm:$0xf]
  %v158 = vunpack.c.l.b16 %v14
  %v159 = vunpack.c.l.b16 %v15
  %v160 = vunpack.c.l.b16 %v16
  %v161 = vunpack.c.l.b16 %v17
  %v162 = vunpack.c.l.b16 %v18
  %v163 = vunpack.c.l.b16 %v19
  %v164 = vunpack.c.l.b16 %v20
  %v165 = vunpack.c.l.b16 %v21
  %v166 = vunpack.c.l.b16 %v22
  %v167 = vunpack.c.l.b16 %v23
  %v168 = vunpack.c.l.b16 %v24
  %v169 = vunpack.c.l.b16 %v25
  %v170 = vunpack.c.l.b16 %v26
  %v171 = vunpack.c.l.b16 %v27
  %v172 = vunpack.c.l.b16 %v28
  %v173 = vunpack.c.l.b16 %v29
  %v174 = vunpack.c.l.b16 %v30
  %v175 = vunpack.c.l.b16 %v31
  %v176 = vunpack.c.l.b16 %v32
  %v177 = vunpack.c.l.b16 %v33
  %v178 = vunpack.c.l.b16 %v34
  %v179 = vunpack.c.l.b16 %v35
  %v180 = vunpack.c.l.b16 %v36
  %v181 = vunpack.c.l.b16 %v37
  %v182 = vunpack.c.l.b16 %v38
  %v183 = vunpack.c.l.b16 %v39
  %v184 = vunpack.c.l.b16 %v40
  %v185 = vunpack.c.l.b16 %v41
  %v186 = vunpack.c.l.b16 %v42
  %v187 = vunpack.c.l.b16 %v43
  %v188 = vunpack.c.l.b16 %v44
  %v189 = vunpack.c.l.b16 %v45
  %v190 = vunpack.c.l.b16 %v46
  %v191 = vunpack.c.l.b16 %v47
  %v192 = vunpack.c.l.b16 %v48
  %v193 = vunpack.c.l.b16 %v49
  %v194 = vunpack.c.l.b16 %v50
  %v195 = vunpack.c.l.b16 %v51
  %v196 = vunpack.c.l.b16 %v52
  %v197 = vunpack.c.l.b16 %v53
  %v198 = vunpack.c.l.b16 %v54
  %v199 = vunpack.c.l.b16 %v55
  %v200 = vunpack.c.l.b16 %v56
  %v201 = vunpack.c.l.b16 %v57
  %v202 = vunpack.c.l.b16 %v58
  %v203 = vunpack.c.l.b16 %v59
  %v204 = vunpack.c.l.b16 %v60
  %v205 = vunpack.c.l.b16 %v61
  %v206 = vunpack.c.l.b16 %v62
  %v207 = vunpack.c.l.b16 %v63
  %v208 = vunpack.c.l.b16 %v64
  %v209 = vunpack.c.l.b16 %v65
  %v210 = vunpack.c.l.b16 %v66
  %v211 = vunpack.c.l.b16 %v67
  %v212 = vunpack.c.l.b16 %v68
  %v213 = vunpack.c.l.b16 %v69
  %v214 = vunpack.c.l.b16 %v70
  %v215 = vunpack.c.l.b16 %v71
  %v216 = vunpack.c.l.b16 %v72
  %v217 = vunpack.c.l.b16 %v73
  %v218 = vunpack.c.l.b16 %v74
  %v219 = vunpack.c.l.b16 %v75
  %v220 = vunpack.c.l.b16 %v76
  %v221 = vunpack.c.l.b16 %v77
  %v222 = vpack.c.b16 %v159, %v158
  %v223 = vpack.c.b16 %v161, %v160
  %v224 = vpack.c.b16 %v163, %v162
  %v225 = vpack.c.b16 %v165, %v164
  %v226 = vpack.c.b16 %v167, %v166
  %v227 = vpack.c.b16 %v169, %v168
  %v228 = vpack.c.b16 %v171, %v170
  %v229 = vpack.c.b16 %v173, %v172
  %v230 = vpack.c.b16 %v175, %v174
  %v231 = vpack.c.b16 %v177, %v176
  %v232 = vpack.c.b16 %v179, %v178
  %v233 = vpack.c.b16 %v181, %v180
  %v234 = vpack.c.b16 %v183, %v182
  %v235 = vpack.c.b16 %v185, %v184
  %v236 = vpack.c.b16 %v187, %v186
  %v237 = vpack.c.b16 %v189, %v188
  %v238 = vpack.c.b16 %v191, %v190
  %v239 = vpack.c.b16 %v193, %v192
  %v240 = vpack.c.b16 %v195, %v194
  %v241 = vpack.c.b16 %v197, %v196
  %v242 = vpack.c.b16 %v199, %v198
  %v243 = vpack.c.b16 %v201, %v200
  %v244 = vpack.c.b16 %v203, %v202
  %v245 = vpack.c.b16 %v205, %v204
  %v246 = vpack.c.b16 %v207, %v206
  %v247 = vpack.c.b16 %v209, %v208
  %v248 = vpack.c.b16 %v211, %v210
  %v249 = vpack.c.b16 %v213, %v212
  %v250 = vpack.c.b16 %v215, %v214
  %v251 = vpack.c.b16 %v217, %v216
  %v252 = vpack.c.b16 %v219, %v218
  %v253 = vpack.c.b16 %v221, %v220
  %v302 = vunpack.c.l.b16 %v78
  %v303 = vunpack.c.l.b16 %v79
  %v304 = vunpack.c.l.b16 %v80
  %v305 = vunpack.c.l.b16 %v81
  %v306 = vunpack.c.l.b16 %v82
  %v307 = vunpack.c.l.b16 %v83
  %v308 = vunpack.c.l.b16 %v84
  %v309 = vunpack.c.l.b16 %v85
  %v310 = vunpack.c.l.b16 %v86
  %v311 = vunpack.c.l.b16 %v87
  %v312 = vunpack.c.l.b16 %v88
  %v313 = vunpack.c.l.b16 %v89
  %v314 = vunpack.c.l.b16 %v90
  %v315 = vunpack.c.l.b16 %v91
  %v316 = vunpack.c.l.b16 %v92
  %v317 = vunpack.c.l.b16 %v93
  %v318 = vpack.c.b16 %v303, %v302
  %v319 = vpack.c.b16 %v305, %v304
  %v320 = vpack.c.b16 %v307, %v306
  %v321 = vpack.c.b16 %v309, %v308
  %v322 = vpack.c.b16 %v311, %v310
  %v323 = vpack.c.b16 %v313, %v312
  %v324 = vpack.c.b16 %v315, %v314
  %v325 = vpack.c.b16 %v317, %v316
  %334 = vmatprep.subr.bf16.mxu0 0
  %335 = vmatpush1.bf16.msra.mxu0 %v325
  %336 = vmatprep.subr.bf16.mxu0 0
  %337 = vmatpush1.bf16.msra.mxu0 %v324
  %338 = vmatprep.subr.bf16.mxu0 0
  %339 = vmatpush1.bf16.msra.mxu0 %v323
  %340 = vmatprep.subr.bf16.mxu0 0
  %341 = vmatpush1.bf16.msra.mxu0 %v322
  %342 = vmatprep.subr.bf16.mxu0 0
  %343 = vmatpush1.bf16.msra.mxu0 %v321
  %344 = vmatprep.subr.bf16.mxu0 0
  %345 = vmatpush1.bf16.msra.mxu0 %v320
  %346 = vmatprep.subr.bf16.mxu0 0
  %347 = vmatpush1.bf16.msra.mxu0 %v319
  %348 = vmatprep.subr.bf16.mxu0 0
  %349 = vmatpush1.bf16.msra.mxu0 %v318
  %350 = vmatprep.subr.bf16.mxu0 0
  %351 = vmatpush2.bf16.msra.mxu0 0
  %352 = vmatprep.subr.bf16.mxu0 0
  %353 = vmatpush2.bf16.msra.mxu0 0
  %354 = vmatprep.subr.bf16.mxu0 0
  %355 = vmatpush2.bf16.msra.mxu0 0
  %356 = vmatprep.subr.bf16.mxu0 0
  %357 = vmatpush2.bf16.msra.mxu0 0
  %358 = vmatprep.subr.bf16.mxu0 0
  %359 = vmatpush2.bf16.msra.mxu0 0
  %360 = vmatprep.subr.bf16.mxu0 0
  %361 = vmatpush2.bf16.msra.mxu0 0
  %362 = vmatprep.subr.bf16.mxu0 0
  %363 = vmatpush2.bf16.msra.mxu0 0
  %364 = vmatprep.subr.bf16.mxu0 0
  %365 = vmatpush2.bf16.msra.mxu0 0
  %366 = vmatprep.mubr.bf16.mxu0 0
  %367 = vmatmul.mubr.bf16.gmra.mxu0 %v222
  %v368 = vpop.f32.mrf.mxu0
  %v369 = vadd.f32 0.0, %v368
  %v370 = vpop.f32.mrf.mxu0
  %v371 = vpop.f32.mrf.mxu0
  %v372 = vadd.f32 0.0, %v371
  %v373 = vpop.f32.mrf.mxu0
  %374 = vmatprep.mubr.bf16.mxu0 0
  %375 = vmatmul.mubr.bf16.gmra.mxu0 %v223
  %v376 = vpop.f32.mrf.mxu0
  %v377 = vadd.f32 0.0, %v376
  %v378 = vpop.f32.mrf.mxu0
  %v379 = vpop.f32.mrf.mxu0
  %v380 = vadd.f32 0.0, %v379
  %v381 = vpop.f32.mrf.mxu0
  %382 = vmatprep.mubr.bf16.mxu0 0
  %383 = vmatmul.mubr.bf16.gmra.mxu0 %v224
  %v384 = vpop.f32.mrf.mxu0
  %v385 = vadd.f32 0.0, %v384
  %v386 = vpop.f32.mrf.mxu0
  %v387 = vpop.f32.mrf.mxu0
  %v388 = vadd.f32 0.0, %v387
  %v389 = vpop.f32.mrf.mxu0
  %390 = vmatprep.mubr.bf16.mxu0 0
  %391 = vmatmul.mubr.bf16.gmra.mxu0 %v225
  %v392 = vpop.f32.mrf.mxu0
  %v393 = vadd.f32 0.0, %v392
  %v394 = vpop.f32.mrf.mxu0
  %v395 = vpop.f32.mrf.mxu0
  %v396 = vadd.f32 0.0, %v395
  %v397 = vpop.f32.mrf.mxu0
  %398 = vmatprep.mubr.bf16.mxu0 0
  %399 = vmatmul.mubr.bf16.gmra.mxu0 %v226
  %v400 = vpop.f32.mrf.mxu0
  %v401 = vadd.f32 0.0, %v400
  %v402 = vpop.f32.mrf.mxu0
  %v403 = vpop.f32.mrf.mxu0
  %v404 = vadd.f32 0.0, %v403
  %v405 = vpop.f32.mrf.mxu0
  %406 = vmatprep.mubr.bf16.mxu0 0
  %407 = vmatmul.mubr.bf16.gmra.mxu0 %v227
  %v408 = vpop.f32.mrf.mxu0
  %v409 = vadd.f32 0.0, %v408
  %v410 = vpop.f32.mrf.mxu0
  %v411 = vpop.f32.mrf.mxu0
  %v412 = vadd.f32 0.0, %v411
  %v413 = vpop.f32.mrf.mxu0
  %414 = vmatprep.mubr.bf16.mxu0 0
  %415 = vmatmul.mubr.bf16.gmra.mxu0 %v228
  %v416 = vpop.f32.mrf.mxu0
  %v417 = vadd.f32 0.0, %v416
  %v418 = vpop.f32.mrf.mxu0
  %v419 = vpop.f32.mrf.mxu0
  %v420 = vadd.f32 0.0, %v419
  %v421 = vpop.f32.mrf.mxu0
  %422 = vmatprep.mubr.bf16.mxu0 0
  %423 = vmatmul.mubr.bf16.gmra.mxu0 %v229
  %v424 = vpop.f32.mrf.mxu0
  %v425 = vadd.f32 0.0, %v424
  %v426 = vpop.f32.mrf.mxu0
  %v427 = vpop.f32.mrf.mxu0
  %v428 = vadd.f32 0.0, %v427
  %v429 = vpop.f32.mrf.mxu0
  %430 = vmatprep.mubr.bf16.mxu0 0
  %431 = vmatmul.mubr.bf16.gmra.mxu0 %v230
  %v432 = vpop.f32.mrf.mxu0
  %v433 = vadd.f32 0.0, %v432
  %v434 = vpop.f32.mrf.mxu0
  %v435 = vpop.f32.mrf.mxu0
  %v436 = vadd.f32 0.0, %v435
  %v437 = vpop.f32.mrf.mxu0
  %438 = vmatprep.mubr.bf16.mxu0 0
  %439 = vmatmul.mubr.bf16.gmra.mxu0 %v231
  %v440 = vpop.f32.mrf.mxu0
  %v441 = vadd.f32 0.0, %v440
  %v442 = vpop.f32.mrf.mxu0
  %v443 = vpop.f32.mrf.mxu0
  %v444 = vadd.f32 0.0, %v443
  %v445 = vpop.f32.mrf.mxu0
  %446 = vmatprep.mubr.bf16.mxu0 0
  %447 = vmatmul.mubr.bf16.gmra.mxu0 %v232
  %v448 = vpop.f32.mrf.mxu0
  %v449 = vadd.f32 0.0, %v448
  %v450 = vpop.f32.mrf.mxu0
  %v451 = vpop.f32.mrf.mxu0
  %v452 = vadd.f32 0.0, %v451
  %v453 = vpop.f32.mrf.mxu0
  %454 = vmatprep.mubr.bf16.mxu0 0
  %455 = vmatmul.mubr.bf16.gmra.mxu0 %v233
  %v456 = vpop.f32.mrf.mxu0
  %v457 = vadd.f32 0.0, %v456
  %v458 = vpop.f32.mrf.mxu0
  %v459 = vpop.f32.mrf.mxu0
  %v460 = vadd.f32 0.0, %v459
  %v461 = vpop.f32.mrf.mxu0
  %462 = vmatprep.mubr.bf16.mxu0 0
  %463 = vmatmul.mubr.bf16.gmra.mxu0 %v234
  %v464 = vpop.f32.mrf.mxu0
  %v465 = vadd.f32 0.0, %v464
  %v466 = vpop.f32.mrf.mxu0
  %v467 = vpop.f32.mrf.mxu0
  %v468 = vadd.f32 0.0, %v467
  %v469 = vpop.f32.mrf.mxu0
  %470 = vmatprep.mubr.bf16.mxu0 0
  %471 = vmatmul.mubr.bf16.gmra.mxu0 %v235
  %v472 = vpop.f32.mrf.mxu0
  %v473 = vadd.f32 0.0, %v472
  %v474 = vpop.f32.mrf.mxu0
  %v475 = vpop.f32.mrf.mxu0
  %v476 = vadd.f32 0.0, %v475
  %v477 = vpop.f32.mrf.mxu0
  %478 = vmatprep.mubr.bf16.mxu0 0
  %479 = vmatmul.mubr.bf16.gmra.mxu0 %v236
  %v480 = vpop.f32.mrf.mxu0
  %v481 = vadd.f32 0.0, %v480
  %v482 = vpop.f32.mrf.mxu0
  %v483 = vpop.f32.mrf.mxu0
  %v484 = vadd.f32 0.0, %v483
  %v485 = vpop.f32.mrf.mxu0
  %486 = vmatprep.mubr.bf16.mxu0 0
  %487 = vmatmul.mubr.bf16.gmra.mxu0 %v237
  %v488 = vpop.f32.mrf.mxu0
  %v489 = vadd.f32 0.0, %v488
  %v490 = vpop.f32.mrf.mxu0
  %v491 = vpop.f32.mrf.mxu0
  %v492 = vadd.f32 0.0, %v491
  %v493 = vpop.f32.mrf.mxu0
  %494 = vmatprep.mubr.bf16.mxu0 0
  %495 = vmatmul.mubr.bf16.gmra.mxu0 %v238
  %v496 = vpop.f32.mrf.mxu0
  %v497 = vadd.f32 0.0, %v496
  %v498 = vpop.f32.mrf.mxu0
  %v499 = vpop.f32.mrf.mxu0
  %v500 = vadd.f32 0.0, %v499
  %v501 = vpop.f32.mrf.mxu0
  %502 = vmatprep.mubr.bf16.mxu0 0
  %503 = vmatmul.mubr.bf16.gmra.mxu0 %v239
  %v504 = vpop.f32.mrf.mxu0
  %v505 = vadd.f32 0.0, %v504
  %v506 = vpop.f32.mrf.mxu0
  %v507 = vpop.f32.mrf.mxu0
  %v508 = vadd.f32 0.0, %v507
  %v509 = vpop.f32.mrf.mxu0
  %510 = vmatprep.mubr.bf16.mxu0 0
  %511 = vmatmul.mubr.bf16.gmra.mxu0 %v240
  %v512 = vpop.f32.mrf.mxu0
  %v513 = vadd.f32 0.0, %v512
  %v514 = vpop.f32.mrf.mxu0
  %v515 = vpop.f32.mrf.mxu0
  %v516 = vadd.f32 0.0, %v515
  %v517 = vpop.f32.mrf.mxu0
  %518 = vmatprep.mubr.bf16.mxu0 0
  %519 = vmatmul.mubr.bf16.gmra.mxu0 %v241
  %v520 = vpop.f32.mrf.mxu0
  %v521 = vadd.f32 0.0, %v520
  %v522 = vpop.f32.mrf.mxu0
  %v523 = vpop.f32.mrf.mxu0
  %v524 = vadd.f32 0.0, %v523
  %v525 = vpop.f32.mrf.mxu0
  %526 = vmatprep.mubr.bf16.mxu0 0
  %527 = vmatmul.mubr.bf16.gmra.mxu0 %v242
  %v528 = vpop.f32.mrf.mxu0
  %v529 = vadd.f32 0.0, %v528
  %v530 = vpop.f32.mrf.mxu0
  %v531 = vpop.f32.mrf.mxu0
  %v532 = vadd.f32 0.0, %v531
  %v533 = vpop.f32.mrf.mxu0
  %534 = vmatprep.mubr.bf16.mxu0 0
  %535 = vmatmul.mubr.bf16.gmra.mxu0 %v243
  %v536 = vpop.f32.mrf.mxu0
  %v537 = vadd.f32 0.0, %v536
  %v538 = vpop.f32.mrf.mxu0
  %v539 = vpop.f32.mrf.mxu0
  %v540 = vadd.f32 0.0, %v539
  %v541 = vpop.f32.mrf.mxu0
  %542 = vmatprep.mubr.bf16.mxu0 0
  %543 = vmatmul.mubr.bf16.gmra.mxu0 %v244
  %v544 = vpop.f32.mrf.mxu0
  %v545 = vadd.f32 0.0, %v544
  %v546 = vpop.f32.mrf.mxu0
  %v547 = vpop.f32.mrf.mxu0
  %v548 = vadd.f32 0.0, %v547
  %v549 = vpop.f32.mrf.mxu0
  %550 = vmatprep.mubr.bf16.mxu0 0
  %551 = vmatmul.mubr.bf16.gmra.mxu0 %v245
  %v552 = vpop.f32.mrf.mxu0
  %v553 = vadd.f32 0.0, %v552
  %v554 = vpop.f32.mrf.mxu0
  %v555 = vpop.f32.mrf.mxu0
  %v556 = vadd.f32 0.0, %v555
  %v557 = vpop.f32.mrf.mxu0
  %558 = vmatprep.mubr.bf16.mxu0 0
  %559 = vmatmul.mubr.bf16.gmra.mxu0 %v246
  %v560 = vpop.f32.mrf.mxu0
  %v561 = vadd.f32 0.0, %v560
  %v562 = vpop.f32.mrf.mxu0
  %v563 = vpop.f32.mrf.mxu0
  %v564 = vadd.f32 0.0, %v563
  %v565 = vpop.f32.mrf.mxu0
  %566 = vmatprep.mubr.bf16.mxu0 0
  %567 = vmatmul.mubr.bf16.gmra.mxu0 %v247
  %v568 = vpop.f32.mrf.mxu0
  %v569 = vadd.f32 0.0, %v568
  %v570 = vpop.f32.mrf.mxu0
  %v571 = vpop.f32.mrf.mxu0
  %v572 = vadd.f32 0.0, %v571
  %v573 = vpop.f32.mrf.mxu0
  %574 = vmatprep.mubr.bf16.mxu0 0
  %575 = vmatmul.mubr.bf16.gmra.mxu0 %v248
  %v576 = vpop.f32.mrf.mxu0
  %v577 = vadd.f32 0.0, %v576
  %v578 = vpop.f32.mrf.mxu0
  %v579 = vpop.f32.mrf.mxu0
  %v580 = vadd.f32 0.0, %v579
  %v581 = vpop.f32.mrf.mxu0
  %582 = vmatprep.mubr.bf16.mxu0 0
  %583 = vmatmul.mubr.bf16.gmra.mxu0 %v249
  %v584 = vpop.f32.mrf.mxu0
  %v585 = vadd.f32 0.0, %v584
  %v586 = vpop.f32.mrf.mxu0
  %v587 = vpop.f32.mrf.mxu0
  %v588 = vadd.f32 0.0, %v587
  %v589 = vpop.f32.mrf.mxu0
  %590 = vmatprep.mubr.bf16.mxu0 0
  %591 = vmatmul.mubr.bf16.gmra.mxu0 %v250
  %v592 = vpop.f32.mrf.mxu0
  %v593 = vadd.f32 0.0, %v592
  %v594 = vpop.f32.mrf.mxu0
  %v595 = vpop.f32.mrf.mxu0
  %v596 = vadd.f32 0.0, %v595
  %v597 = vpop.f32.mrf.mxu0
  %598 = vmatprep.mubr.bf16.mxu0 0
  %599 = vmatmul.mubr.bf16.gmra.mxu0 %v251
  %v600 = vpop.f32.mrf.mxu0
  %v601 = vadd.f32 0.0, %v600
  %v602 = vpop.f32.mrf.mxu0
  %v603 = vpop.f32.mrf.mxu0
  %v604 = vadd.f32 0.0, %v603
  %v605 = vpop.f32.mrf.mxu0
  %606 = vmatprep.mubr.bf16.mxu0 0
  %607 = vmatmul.mubr.bf16.gmra.mxu0 %v252
  %v608 = vpop.f32.mrf.mxu0
  %v609 = vadd.f32 0.0, %v608
  %v610 = vpop.f32.mrf.mxu0
  %v611 = vpop.f32.mrf.mxu0
  %v612 = vadd.f32 0.0, %v611
  %v613 = vpop.f32.mrf.mxu0
  %614 = vmatprep.mubr.bf16.mxu0 0
  %615 = vmatmul.mubr.bf16.gmra.mxu0 %v253
  %v616 = vpop.f32.mrf.mxu0
  %v617 = vadd.f32 0.0, %v616
  %v618 = vpop.f32.mrf.mxu0
  %v619 = vpop.f32.mrf.mxu0
  %v620 = vadd.f32 0.0, %v619
  %v621 = vpop.f32.mrf.mxu0
  %622 = vdwg.mxu0
  %v623 = vpack.c.bf16 %v372, %v369
  %v624 = vpack.c.bf16 %v380, %v377
  %v625 = vpack.c.bf16 %v388, %v385
  %v626 = vpack.c.bf16 %v396, %v393
  %v627 = vpack.c.bf16 %v404, %v401
  %v628 = vpack.c.bf16 %v412, %v409
  %v629 = vpack.c.bf16 %v420, %v417
  %v630 = vpack.c.bf16 %v428, %v425
  %v631 = vpack.c.bf16 %v436, %v433
  %v632 = vpack.c.bf16 %v444, %v441
  %v633 = vpack.c.bf16 %v452, %v449
  %v634 = vpack.c.bf16 %v460, %v457
  %v635 = vpack.c.bf16 %v468, %v465
  %v636 = vpack.c.bf16 %v476, %v473
  %v637 = vpack.c.bf16 %v484, %v481
  %v638 = vpack.c.bf16 %v492, %v489
  %v639 = vpack.c.bf16 %v500, %v497
  %v640 = vpack.c.bf16 %v508, %v505
  %v641 = vpack.c.bf16 %v516, %v513
  %v642 = vpack.c.bf16 %v524, %v521
  %v643 = vpack.c.bf16 %v532, %v529
  %v644 = vpack.c.bf16 %v540, %v537
  %v645 = vpack.c.bf16 %v548, %v545
  %v646 = vpack.c.bf16 %v556, %v553
  %v647 = vpack.c.bf16 %v564, %v561
  %v648 = vpack.c.bf16 %v572, %v569
  %v649 = vpack.c.bf16 %v580, %v577
  %v650 = vpack.c.bf16 %v588, %v585
  %v651 = vpack.c.bf16 %v596, %v593
  %v652 = vpack.c.bf16 %v604, %v601
  %v653 = vpack.c.bf16 %v612, %v609
  %v654 = vpack.c.bf16 %v620, %v617
  %v687 = vunpack.c.l.b16 %v623
  %v688 = vunpack.c.h.b16 %v623
  %v689 = vunpack.c.l.b16 %v624
  %v690 = vunpack.c.h.b16 %v624
  %v691 = vunpack.c.l.b16 %v625
  %v692 = vunpack.c.h.b16 %v625
  %v693 = vunpack.c.l.b16 %v626
  %v694 = vunpack.c.h.b16 %v626
  %v695 = vunpack.c.l.b16 %v627
  %v696 = vunpack.c.h.b16 %v627
  %v697 = vunpack.c.l.b16 %v628
  %v698 = vunpack.c.h.b16 %v628
  %v699 = vunpack.c.l.b16 %v629
  %v700 = vunpack.c.h.b16 %v629
  %v701 = vunpack.c.l.b16 %v630
  %v702 = vunpack.c.h.b16 %v630
  %v703 = vunpack.c.l.b16 %v631
  %v704 = vunpack.c.h.b16 %v631
  %v705 = vunpack.c.l.b16 %v632
  %v706 = vunpack.c.h.b16 %v632
  %v707 = vunpack.c.l.b16 %v633
  %v708 = vunpack.c.h.b16 %v633
  %v709 = vunpack.c.l.b16 %v634
  %v710 = vunpack.c.h.b16 %v634
  %v711 = vunpack.c.l.b16 %v635
  %v712 = vunpack.c.h.b16 %v635
  %v713 = vunpack.c.l.b16 %v636
  %v714 = vunpack.c.h.b16 %v636
  %v715 = vunpack.c.l.b16 %v637
  %v716 = vunpack.c.h.b16 %v637
  %v717 = vunpack.c.l.b16 %v638
  %v718 = vunpack.c.h.b16 %v638
  %v719 = vunpack.c.l.b16 %v639
  %v720 = vunpack.c.h.b16 %v639
  %v721 = vunpack.c.l.b16 %v640
  %v722 = vunpack.c.h.b16 %v640
  %v723 = vunpack.c.l.b16 %v641
  %v724 = vunpack.c.h.b16 %v641
  %v725 = vunpack.c.l.b16 %v642
  %v726 = vunpack.c.h.b16 %v642
  %v727 = vunpack.c.l.b16 %v643
  %v728 = vunpack.c.h.b16 %v643
  %v729 = vunpack.c.l.b16 %v644
  %v730 = vunpack.c.h.b16 %v644
  %v731 = vunpack.c.l.b16 %v645
  %v732 = vunpack.c.h.b16 %v645
  %v733 = vunpack.c.l.b16 %v646
  %v734 = vunpack.c.h.b16 %v646
  %v735 = vunpack.c.l.b16 %v647
  %v736 = vunpack.c.h.b16 %v647
  %v737 = vunpack.c.l.b16 %v648
  %v738 = vunpack.c.h.b16 %v648
  %v739 = vunpack.c.l.b16 %v649
  %v740 = vunpack.c.h.b16 %v649
  %v741 = vunpack.c.l.b16 %v650
  %v742 = vunpack.c.h.b16 %v650
  %v743 = vunpack.c.l.b16 %v651
  %v744 = vunpack.c.h.b16 %v651
  %v745 = vunpack.c.l.b16 %v652
  %v746 = vunpack.c.h.b16 %v652
  %v747 = vunpack.c.l.b16 %v653
  %v748 = vunpack.c.h.b16 %v653
  %v749 = vunpack.c.l.b16 %v654
  %v750 = vunpack.c.h.b16 %v654
  %v751 = vpack.c.b16 %v687, %v687
  %v752 = vpack.c.b16 %v688, %v688
  %v753 = vpack.c.b16 %v689, %v689
  %v754 = vpack.c.b16 %v690, %v690
  %v755 = vpack.c.b16 %v691, %v691
  %v756 = vpack.c.b16 %v692, %v692
  %v757 = vpack.c.b16 %v693, %v693
  %v758 = vpack.c.b16 %v694, %v694
  %v759 = vpack.c.b16 %v695, %v695
  %v760 = vpack.c.b16 %v696, %v696
  %v761 = vpack.c.b16 %v697, %v697
  %v762 = vpack.c.b16 %v698, %v698
  %v763 = vpack.c.b16 %v699, %v699
  %v764 = vpack.c.b16 %v700, %v700
  %v765 = vpack.c.b16 %v701, %v701
  %v766 = vpack.c.b16 %v702, %v702
  %v767 = vpack.c.b16 %v703, %v703
  %v768 = vpack.c.b16 %v704, %v704
  %v769 = vpack.c.b16 %v705, %v705
  %v770 = vpack.c.b16 %v706, %v706
  %v771 = vpack.c.b16 %v707, %v707
  %v772 = vpack.c.b16 %v708, %v708
  %v773 = vpack.c.b16 %v709, %v709
  %v774 = vpack.c.b16 %v710, %v710
  %v775 = vpack.c.b16 %v711, %v711
  %v776 = vpack.c.b16 %v712, %v712
  %v777 = vpack.c.b16 %v713, %v713
  %v778 = vpack.c.b16 %v714, %v714
  %v779 = vpack.c.b16 %v715, %v715
  %v780 = vpack.c.b16 %v716, %v716
  %v781 = vpack.c.b16 %v717, %v717
  %v782 = vpack.c.b16 %v718, %v718
  %v783 = vpack.c.b16 %v719, %v719
  %v784 = vpack.c.b16 %v720, %v720
  %v785 = vpack.c.b16 %v721, %v721
  %v786 = vpack.c.b16 %v722, %v722
  %v787 = vpack.c.b16 %v723, %v723
  %v788 = vpack.c.b16 %v724, %v724
  %v789 = vpack.c.b16 %v725, %v725
  %v790 = vpack.c.b16 %v726, %v726
  %v791 = vpack.c.b16 %v727, %v727
  %v792 = vpack.c.b16 %v728, %v728
  %v793 = vpack.c.b16 %v729, %v729
  %v794 = vpack.c.b16 %v730, %v730
  %v795 = vpack.c.b16 %v731, %v731
  %v796 = vpack.c.b16 %v732, %v732
  %v797 = vpack.c.b16 %v733, %v733
  %v798 = vpack.c.b16 %v734, %v734
  %v799 = vpack.c.b16 %v735, %v735
  %v800 = vpack.c.b16 %v736, %v736
  %v801 = vpack.c.b16 %v737, %v737
  %v802 = vpack.c.b16 %v738, %v738
  %v803 = vpack.c.b16 %v739, %v739
  %v804 = vpack.c.b16 %v740, %v740
  %v805 = vpack.c.b16 %v741, %v741
  %v806 = vpack.c.b16 %v742, %v742
  %v807 = vpack.c.b16 %v743, %v743
  %v808 = vpack.c.b16 %v744, %v744
  %v809 = vpack.c.b16 %v745, %v745
  %v810 = vpack.c.b16 %v746, %v746
  %v811 = vpack.c.b16 %v747, %v747
  %v812 = vpack.c.b16 %v748, %v748
  %v813 = vpack.c.b16 %v749, %v749
  %v814 = vpack.c.b16 %v750, %v750
  %vm879 = vcmask 125952
  %880 = vst.msk [vmem:[%s2] sm:$0xf] %vm879, %v751
  %881 = vst.msk [vmem:[%s2 + $0x4] sm:$0xf] %vm879, %v752
  %882 = vst.msk [vmem:[%s2 + $0x8] sm:$0xf] %vm879, %v753
  %883 = vst.msk [vmem:[%s2 + $0xc] sm:$0xf] %vm879, %v754
  %884 = vst.msk [vmem:[%s2 + $0x10] sm:$0xf] %vm879, %v755
  %885 = vst.msk [vmem:[%s2 + $0x14] sm:$0xf] %vm879, %v756
  %886 = vst.msk [vmem:[%s2 + $0x18] sm:$0xf] %vm879, %v757
  %887 = vst.msk [vmem:[%s2 + $0x1c] sm:$0xf] %vm879, %v758
  %888 = vst.msk [vmem:[%s2 + $0x20] sm:$0xf] %vm879, %v759
  %889 = vst.msk [vmem:[%s2 + $0x24] sm:$0xf] %vm879, %v760
  %890 = vst.msk [vmem:[%s2 + $0x28] sm:$0xf] %vm879, %v761
  %891 = vst.msk [vmem:[%s2 + $0x2c] sm:$0xf] %vm879, %v762
  %892 = vst.msk [vmem:[%s2 + $0x30] sm:$0xf] %vm879, %v763
  %893 = vst.msk [vmem:[%s2 + $0x34] sm:$0xf] %vm879, %v764
  %894 = vst.msk [vmem:[%s2 + $0x38] sm:$0xf] %vm879, %v765
  %895 = vst.msk [vmem:[%s2 + $0x3c] sm:$0xf] %vm879, %v766
  %896 = vst.msk [vmem:[%s2 + $0x40] sm:$0xf] %vm879, %v767
  %897 = vst.msk [vmem:[%s2 + $0x44] sm:$0xf] %vm879, %v768
  %898 = vst.msk [vmem:[%s2 + $0x48] sm:$0xf] %vm879, %v769
  %899 = vst.msk [vmem:[%s2 + $0x4c] sm:$0xf] %vm879, %v770
  %900 = vst.msk [vmem:[%s2 + $0x50] sm:$0xf] %vm879, %v771
  %901 = vst.msk [vmem:[%s2 + $0x54] sm:$0xf] %vm879, %v772
  %902 = vst.msk [vmem:[%s2 + $0x58] sm:$0xf] %vm879, %v773
  %903 = vst.msk [vmem:[%s2 + $0x5c] sm:$0xf] %vm879, %v774
  %904 = vst.msk [vmem:[%s2 + $0x60] sm:$0xf] %vm879, %v775
  %905 = vst.msk [vmem:[%s2 + $0x64] sm:$0xf] %vm879, %v776
  %906 = vst.msk [vmem:[%s2 + $0x68] sm:$0xf] %vm879, %v777
  %907 = vst.msk [vmem:[%s2 + $0x6c] sm:$0xf] %vm879, %v778
  %908 = vst.msk [vmem:[%s2 + $0x70] sm:$0xf] %vm879, %v779
  %909 = vst.msk [vmem:[%s2 + $0x74] sm:$0xf] %vm879, %v780
  %910 = vst.msk [vmem:[%s2 + $0x78] sm:$0xf] %vm879, %v781
  %911 = vst.msk [vmem:[%s2 + $0x7c] sm:$0xf] %vm879, %v782
  %912 = vst.msk [vmem:[%s2 + $0x80] sm:$0xf] %vm879, %v783
  %913 = vst.msk [vmem:[%s2 + $0x84] sm:$0xf] %vm879, %v784
  %914 = vst.msk [vmem:[%s2 + $0x88] sm:$0xf] %vm879, %v785
  %915 = vst.msk [vmem:[%s2 + $0x8c] sm:$0xf] %vm879, %v786
  %916 = vst.msk [vmem:[%s2 + $0x90] sm:$0xf] %vm879, %v787
  %917 = vst.msk [vmem:[%s2 + $0x94] sm:$0xf] %vm879, %v788
  %918 = vst.msk [vmem:[%s2 + $0x98] sm:$0xf] %vm879, %v789
  %919 = vst.msk [vmem:[%s2 + $0x9c] sm:$0xf] %vm879, %v790
  %920 = vst.msk [vmem:[%s2 + $0xa0] sm:$0xf] %vm879, %v791
  %921 = vst.msk [vmem:[%s2 + $0xa4] sm:$0xf] %vm879, %v792
  %922 = vst.msk [vmem:[%s2 + $0xa8] sm:$0xf] %vm879, %v793
  %923 = vst.msk [vmem:[%s2 + $0xac] sm:$0xf] %vm879, %v794
  %924 = vst.msk [vmem:[%s2 + $0xb0] sm:$0xf] %vm879, %v795
  %925 = vst.msk [vmem:[%s2 + $0xb4] sm:$0xf] %vm879, %v796
  %926 = vst.msk [vmem:[%s2 + $0xb8] sm:$0xf] %vm879, %v797
  %927 = vst.msk [vmem:[%s2 + $0xbc] sm:$0xf] %vm879, %v798
  %928 = vst.msk [vmem:[%s2 + $0xc0] sm:$0xf] %vm879, %v799
  %929 = vst.msk [vmem:[%s2 + $0xc4] sm:$0xf] %vm879, %v800
  %930 = vst.msk [vmem:[%s2 + $0xc8] sm:$0xf] %vm879, %v801
  %931 = vst.msk [vmem:[%s2 + $0xcc] sm:$0xf] %vm879, %v802
  %932 = vst.msk [vmem:[%s2 + $0xd0] sm:$0xf] %vm879, %v803
  %933 = vst.msk [vmem:[%s2 + $0xd4] sm:$0xf] %vm879, %v804
  %934 = vst.msk [vmem:[%s2 + $0xd8] sm:$0xf] %vm879, %v805
  %935 = vst.msk [vmem:[%s2 + $0xdc] sm:$0xf] %vm879, %v806
  %936 = vst.msk [vmem:[%s2 + $0xe0] sm:$0xf] %vm879, %v807
  %937 = vst.msk [vmem:[%s2 + $0xe4] sm:$0xf] %vm879, %v808
  %938 = vst.msk [vmem:[%s2 + $0xe8] sm:$0xf] %vm879, %v809
  %939 = vst.msk [vmem:[%s2 + $0xec] sm:$0xf] %vm879, %v810
  %940 = vst.msk [vmem:[%s2 + $0xf0] sm:$0xf] %vm879, %v811
  %941 = vst.msk [vmem:[%s2 + $0xf4] sm:$0xf] %vm879, %v812
  %942 = vst.msk [vmem:[%s2 + $0xf8] sm:$0xf] %vm879, %v813
  %943 = vst.msk [vmem:[%s2 + $0xfc] sm:$0xf] %vm879, %v814
  %vm944 = vcmask 130048
  %v945 = vsel %vm944, %v369, 0.0
  %v946 = vsel %vm944, %v372, 0.0
  %v947 = vadd.f32 %v945, %v946
  %v948 = vsel %vm944, %v377, 0.0
  %v949 = vadd.f32 %v947, %v948
  %v950 = vsel %vm944, %v380, 0.0
  %v951 = vadd.f32 %v949, %v950
  %v952 = vsel %vm944, %v385, 0.0
  %v953 = vadd.f32 %v951, %v952
  %v954 = vsel %vm944, %v388, 0.0
  %v955 = vadd.f32 %v953, %v954
  %v956 = vsel %vm944, %v393, 0.0
  %v957 = vadd.f32 %v955, %v956
  %v958 = vsel %vm944, %v396, 0.0
  %v959 = vadd.f32 %v957, %v958
  %v960 = vsel %vm944, %v401, 0.0
  %v961 = vadd.f32 %v959, %v960
  %v962 = vsel %vm944, %v404, 0.0
  %v963 = vadd.f32 %v961, %v962
  %v964 = vsel %vm944, %v409, 0.0
  %v965 = vadd.f32 %v963, %v964
  %v966 = vsel %vm944, %v412, 0.0
  %v967 = vadd.f32 %v965, %v966
  %v968 = vsel %vm944, %v417, 0.0
  %v969 = vadd.f32 %v967, %v968
  %v970 = vsel %vm944, %v420, 0.0
  %v971 = vadd.f32 %v969, %v970
  %v972 = vsel %vm944, %v425, 0.0
  %v973 = vadd.f32 %v971, %v972
  %v974 = vsel %vm944, %v428, 0.0
  %v975 = vadd.f32 %v973, %v974
  %v976 = vsel %vm944, %v433, 0.0
  %v977 = vadd.f32 %v975, %v976
  %v978 = vsel %vm944, %v436, 0.0
  %v979 = vadd.f32 %v977, %v978
  %v980 = vsel %vm944, %v441, 0.0
  %v981 = vadd.f32 %v979, %v980
  %v982 = vsel %vm944, %v444, 0.0
  %v983 = vadd.f32 %v981, %v982
  %v984 = vsel %vm944, %v449, 0.0
  %v985 = vadd.f32 %v983, %v984
  %v986 = vsel %vm944, %v452, 0.0
  %v987 = vadd.f32 %v985, %v986
  %v988 = vsel %vm944, %v457, 0.0
  %v989 = vadd.f32 %v987, %v988
  %v990 = vsel %vm944, %v460, 0.0
  %v991 = vadd.f32 %v989, %v990
  %v992 = vsel %vm944, %v465, 0.0
  %v993 = vadd.f32 %v991, %v992
  %v994 = vsel %vm944, %v468, 0.0
  %v995 = vadd.f32 %v993, %v994
  %v996 = vsel %vm944, %v473, 0.0
  %v997 = vadd.f32 %v995, %v996
  %v998 = vsel %vm944, %v476, 0.0
  %v999 = vadd.f32 %v997, %v998
  %v1000 = vsel %vm944, %v481, 0.0
  %v1001 = vadd.f32 %v999, %v1000
  %v1002 = vsel %vm944, %v484, 0.0
  %v1003 = vadd.f32 %v1001, %v1002
  %v1004 = vsel %vm944, %v489, 0.0
  %v1005 = vadd.f32 %v1003, %v1004
  %v1006 = vsel %vm944, %v492, 0.0
  %v1007 = vadd.f32 %v1005, %v1006
  %v1008 = vsel %vm944, %v497, 0.0
  %v1009 = vadd.f32 %v1007, %v1008
  %v1010 = vsel %vm944, %v500, 0.0
  %v1011 = vadd.f32 %v1009, %v1010
  %v1012 = vsel %vm944, %v505, 0.0
  %v1013 = vadd.f32 %v1011, %v1012
  %v1014 = vsel %vm944, %v508, 0.0
  %v1015 = vadd.f32 %v1013, %v1014
  %v1016 = vsel %vm944, %v513, 0.0
  %v1017 = vadd.f32 %v1015, %v1016
  %v1018 = vsel %vm944, %v516, 0.0
  %v1019 = vadd.f32 %v1017, %v1018
  %v1020 = vsel %vm944, %v521, 0.0
  %v1021 = vadd.f32 %v1019, %v1020
  %v1022 = vsel %vm944, %v524, 0.0
  %v1023 = vadd.f32 %v1021, %v1022
  %v1024 = vsel %vm944, %v529, 0.0
  %v1025 = vadd.f32 %v1023, %v1024
  %v1026 = vsel %vm944, %v532, 0.0
  %v1027 = vadd.f32 %v1025, %v1026
  %v1028 = vsel %vm944, %v537, 0.0
  %v1029 = vadd.f32 %v1027, %v1028
  %v1030 = vsel %vm944, %v540, 0.0
  %v1031 = vadd.f32 %v1029, %v1030
  %v1032 = vsel %vm944, %v545, 0.0
  %v1033 = vadd.f32 %v1031, %v1032
  %v1034 = vsel %vm944, %v548, 0.0
  %v1035 = vadd.f32 %v1033, %v1034
  %v1036 = vsel %vm944, %v553, 0.0
  %v1037 = vadd.f32 %v1035, %v1036
  %v1038 = vsel %vm944, %v556, 0.0
  %v1039 = vadd.f32 %v1037, %v1038
  %v1040 = vsel %vm944, %v561, 0.0
  %v1041 = vadd.f32 %v1039, %v1040
  %v1042 = vsel %vm944, %v564, 0.0
  %v1043 = vadd.f32 %v1041, %v1042
  %v1044 = vsel %vm944, %v569, 0.0
  %v1045 = vadd.f32 %v1043, %v1044
  %v1046 = vsel %vm944, %v572, 0.0
  %v1047 = vadd.f32 %v1045, %v1046
  %v1048 = vsel %vm944, %v577, 0.0
  %v1049 = vadd.f32 %v1047, %v1048
  %v1050 = vsel %vm944, %v580, 0.0
  %v1051 = vadd.f32 %v1049, %v1050
  %v1052 = vsel %vm944, %v585, 0.0
  %v1053 = vadd.f32 %v1051, %v1052
  %v1054 = vsel %vm944, %v588, 0.0
  %v1055 = vadd.f32 %v1053, %v1054
  %v1056 = vsel %vm944, %v593, 0.0
  %v1057 = vadd.f32 %v1055, %v1056
  %v1058 = vsel %vm944, %v596, 0.0
  %v1059 = vadd.f32 %v1057, %v1058
  %v1060 = vsel %vm944, %v601, 0.0
  %v1061 = vadd.f32 %v1059, %v1060
  %v1062 = vsel %vm944, %v604, 0.0
  %v1063 = vadd.f32 %v1061, %v1062
  %v1064 = vsel %vm944, %v609, 0.0
  %v1065 = vadd.f32 %v1063, %v1064
  %v1066 = vsel %vm944, %v612, 0.0
  %v1067 = vadd.f32 %v1065, %v1066
  %v1068 = vsel %vm944, %v617, 0.0
  %v1069 = vadd.f32 %v1067, %v1068
  %v1070 = vsel %vm944, %v620, 0.0
  %v1071 = vadd.f32 %v1069, %v1070
  %v1072 = vrot.slane %v1071, 4
  %v1073 = vadd.f32 %v1071, %v1072
  %v1074 = vrot.slane %v1073, 2
  %v1075 = vadd.f32 %v1073, %v1074
  %v1076 = vrot.slane %v1075, 1
  %v1077 = vadd.f32 %v1075, %v1076
  %v1078 = vmul.f32 %v369, %v369
  %v1079 = vmul.f32 %v372, %v372
  %v1080 = vmul.f32 %v377, %v377
  %v1081 = vmul.f32 %v380, %v380
  %v1082 = vmul.f32 %v385, %v385
  %v1083 = vmul.f32 %v388, %v388
  %v1084 = vmul.f32 %v393, %v393
  %v1085 = vmul.f32 %v396, %v396
  %v1086 = vmul.f32 %v401, %v401
  %v1087 = vmul.f32 %v404, %v404
  %v1088 = vmul.f32 %v409, %v409
  %v1089 = vmul.f32 %v412, %v412
  %v1090 = vmul.f32 %v417, %v417
  %v1091 = vmul.f32 %v420, %v420
  %v1092 = vmul.f32 %v425, %v425
  %v1093 = vmul.f32 %v428, %v428
  %v1094 = vmul.f32 %v433, %v433
  %v1095 = vmul.f32 %v436, %v436
  %v1096 = vmul.f32 %v441, %v441
  %v1097 = vmul.f32 %v444, %v444
  %v1098 = vmul.f32 %v449, %v449
  %v1099 = vmul.f32 %v452, %v452
  %v1100 = vmul.f32 %v457, %v457
  %v1101 = vmul.f32 %v460, %v460
  %v1102 = vmul.f32 %v465, %v465
  %v1103 = vmul.f32 %v468, %v468
  %v1104 = vmul.f32 %v473, %v473
  %v1105 = vmul.f32 %v476, %v476
  %v1106 = vmul.f32 %v481, %v481
  %v1107 = vmul.f32 %v484, %v484
  %v1108 = vmul.f32 %v489, %v489
  %v1109 = vmul.f32 %v492, %v492
  %v1110 = vmul.f32 %v497, %v497
  %v1111 = vmul.f32 %v500, %v500
  %v1112 = vmul.f32 %v505, %v505
  %v1113 = vmul.f32 %v508, %v508
  %v1114 = vmul.f32 %v513, %v513
  %v1115 = vmul.f32 %v516, %v516
  %v1116 = vmul.f32 %v521, %v521
  %v1117 = vmul.f32 %v524, %v524
  %v1118 = vmul.f32 %v529, %v529
  %v1119 = vmul.f32 %v532, %v532
  %v1120 = vmul.f32 %v537, %v537
  %v1121 = vmul.f32 %v540, %v540
  %v1122 = vmul.f32 %v545, %v545
  %v1123 = vmul.f32 %v548, %v548
  %v1124 = vmul.f32 %v553, %v553
  %v1125 = vmul.f32 %v556, %v556
  %v1126 = vmul.f32 %v561, %v561
  %v1127 = vmul.f32 %v564, %v564
  %v1128 = vmul.f32 %v569, %v569
  %v1129 = vmul.f32 %v572, %v572
  %v1130 = vmul.f32 %v577, %v577
  %v1131 = vmul.f32 %v580, %v580
  %v1132 = vmul.f32 %v585, %v585
  %v1133 = vmul.f32 %v588, %v588
  %v1134 = vmul.f32 %v593, %v593
  %v1135 = vmul.f32 %v596, %v596
  %v1136 = vmul.f32 %v601, %v601
  %v1137 = vmul.f32 %v604, %v604
  %v1138 = vmul.f32 %v609, %v609
  %v1139 = vmul.f32 %v612, %v612
  %v1140 = vmul.f32 %v617, %v617
  %v1141 = vmul.f32 %v620, %v620
  %v1142 = vsel %vm944, %v1078, 0.0
  %v1143 = vsel %vm944, %v1079, 0.0
  %v1144 = vadd.f32 %v1142, %v1143
  %v1145 = vsel %vm944, %v1080, 0.0
  %v1146 = vadd.f32 %v1144, %v1145
  %v1147 = vsel %vm944, %v1081, 0.0
  %v1148 = vadd.f32 %v1146, %v1147
  %v1149 = vsel %vm944, %v1082, 0.0
  %v1150 = vadd.f32 %v1148, %v1149
  %v1151 = vsel %vm944, %v1083, 0.0
  %v1152 = vadd.f32 %v1150, %v1151
  %v1153 = vsel %vm944, %v1084, 0.0
  %v1154 = vadd.f32 %v1152, %v1153
  %v1155 = vsel %vm944, %v1085, 0.0
  %v1156 = vadd.f32 %v1154, %v1155
  %v1157 = vsel %vm944, %v1086, 0.0
  %v1158 = vadd.f32 %v1156, %v1157
  %v1159 = vsel %vm944, %v1087, 0.0
  %v1160 = vadd.f32 %v1158, %v1159
  %v1161 = vsel %vm944, %v1088, 0.0
  %v1162 = vadd.f32 %v1160, %v1161
  %v1163 = vsel %vm944, %v1089, 0.0
  %v1164 = vadd.f32 %v1162, %v1163
  %v1165 = vsel %vm944, %v1090, 0.0
  %v1166 = vadd.f32 %v1164, %v1165
  %v1167 = vsel %vm944, %v1091, 0.0
  %v1168 = vadd.f32 %v1166, %v1167
  %v1169 = vsel %vm944, %v1092, 0.0
  %v1170 = vadd.f32 %v1168, %v1169
  %v1171 = vsel %vm944, %v1093, 0.0
  %v1172 = vadd.f32 %v1170, %v1171
  %v1173 = vsel %vm944, %v1094, 0.0
  %v1174 = vadd.f32 %v1172, %v1173
  %v1175 = vsel %vm944, %v1095, 0.0
  %v1176 = vadd.f32 %v1174, %v1175
  %v1177 = vsel %vm944, %v1096, 0.0
  %v1178 = vadd.f32 %v1176, %v1177
  %v1179 = vsel %vm944, %v1097, 0.0
  %v1180 = vadd.f32 %v1178, %v1179
  %v1181 = vsel %vm944, %v1098, 0.0
  %v1182 = vadd.f32 %v1180, %v1181
  %v1183 = vsel %vm944, %v1099, 0.0
  %v1184 = vadd.f32 %v1182, %v1183
  %v1185 = vsel %vm944, %v1100, 0.0
  %v1186 = vadd.f32 %v1184, %v1185
  %v1187 = vsel %vm944, %v1101, 0.0
  %v1188 = vadd.f32 %v1186, %v1187
  %v1189 = vsel %vm944, %v1102, 0.0
  %v1190 = vadd.f32 %v1188, %v1189
  %v1191 = vsel %vm944, %v1103, 0.0
  %v1192 = vadd.f32 %v1190, %v1191
  %v1193 = vsel %vm944, %v1104, 0.0
  %v1194 = vadd.f32 %v1192, %v1193
  %v1195 = vsel %vm944, %v1105, 0.0
  %v1196 = vadd.f32 %v1194, %v1195
  %v1197 = vsel %vm944, %v1106, 0.0
  %v1198 = vadd.f32 %v1196, %v1197
  %v1199 = vsel %vm944, %v1107, 0.0
  %v1200 = vadd.f32 %v1198, %v1199
  %v1201 = vsel %vm944, %v1108, 0.0
  %v1202 = vadd.f32 %v1200, %v1201
  %v1203 = vsel %vm944, %v1109, 0.0
  %v1204 = vadd.f32 %v1202, %v1203
  %v1205 = vsel %vm944, %v1110, 0.0
  %v1206 = vadd.f32 %v1204, %v1205
  %v1207 = vsel %vm944, %v1111, 0.0
  %v1208 = vadd.f32 %v1206, %v1207
  %v1209 = vsel %vm944, %v1112, 0.0
  %v1210 = vadd.f32 %v1208, %v1209
  %v1211 = vsel %vm944, %v1113, 0.0
  %v1212 = vadd.f32 %v1210, %v1211
  %v1213 = vsel %vm944, %v1114, 0.0
  %v1214 = vadd.f32 %v1212, %v1213
  %v1215 = vsel %vm944, %v1115, 0.0
  %v1216 = vadd.f32 %v1214, %v1215
  %v1217 = vsel %vm944, %v1116, 0.0
  %v1218 = vadd.f32 %v1216, %v1217
  %v1219 = vsel %vm944, %v1117, 0.0
  %v1220 = vadd.f32 %v1218, %v1219
  %v1221 = vsel %vm944, %v1118, 0.0
  %v1222 = vadd.f32 %v1220, %v1221
  %v1223 = vsel %vm944, %v1119, 0.0
  %v1224 = vadd.f32 %v1222, %v1223
  %v1225 = vsel %vm944, %v1120, 0.0
  %v1226 = vadd.f32 %v1224, %v1225
  %v1227 = vsel %vm944, %v1121, 0.0
  %v1228 = vadd.f32 %v1226, %v1227
  %v1229 = vsel %vm944, %v1122, 0.0
  %v1230 = vadd.f32 %v1228, %v1229
  %v1231 = vsel %vm944, %v1123, 0.0
  %v1232 = vadd.f32 %v1230, %v1231
  %v1233 = vsel %vm944, %v1124, 0.0
  %v1234 = vadd.f32 %v1232, %v1233
  %v1235 = vsel %vm944, %v1125, 0.0
  %v1236 = vadd.f32 %v1234, %v1235
  %v1237 = vsel %vm944, %v1126, 0.0
  %v1238 = vadd.f32 %v1236, %v1237
  %v1239 = vsel %vm944, %v1127, 0.0
  %v1240 = vadd.f32 %v1238, %v1239
  %v1241 = vsel %vm944, %v1128, 0.0
  %v1242 = vadd.f32 %v1240, %v1241
  %v1243 = vsel %vm944, %v1129, 0.0
  %v1244 = vadd.f32 %v1242, %v1243
  %v1245 = vsel %vm944, %v1130, 0.0
  %v1246 = vadd.f32 %v1244, %v1245
  %v1247 = vsel %vm944, %v1131, 0.0
  %v1248 = vadd.f32 %v1246, %v1247
  %v1249 = vsel %vm944, %v1132, 0.0
  %v1250 = vadd.f32 %v1248, %v1249
  %v1251 = vsel %vm944, %v1133, 0.0
  %v1252 = vadd.f32 %v1250, %v1251
  %v1253 = vsel %vm944, %v1134, 0.0
  %v1254 = vadd.f32 %v1252, %v1253
  %v1255 = vsel %vm944, %v1135, 0.0
  %v1256 = vadd.f32 %v1254, %v1255
  %v1257 = vsel %vm944, %v1136, 0.0
  %v1258 = vadd.f32 %v1256, %v1257
  %v1259 = vsel %vm944, %v1137, 0.0
  %v1260 = vadd.f32 %v1258, %v1259
  %v1261 = vsel %vm944, %v1138, 0.0
  %v1262 = vadd.f32 %v1260, %v1261
  %v1263 = vsel %vm944, %v1139, 0.0
  %v1264 = vadd.f32 %v1262, %v1263
  %v1265 = vsel %vm944, %v1140, 0.0
  %v1266 = vadd.f32 %v1264, %v1265
  %v1267 = vsel %vm944, %v1141, 0.0
  %v1268 = vadd.f32 %v1266, %v1267
  %v1269 = vrot.slane %v1268, 4
  %v1270 = vadd.f32 %v1268, %v1269
  %v1271 = vrot.slane %v1270, 2
  %v1272 = vadd.f32 %v1270, %v1271
  %v1273 = vrot.slane %v1272, 1
  %v1274 = vadd.f32 %v1272, %v1273
  %vm1275 = vcmask 1040384
  %v1276 = vsel %vm1275, %v1077, %v1274
  %vm1277 = vcmask 123904
  %1278 = vst.msk [vmem:[%s3] sm:$0x3] %vm1277, %v1276
  // Predicated region
  $region10: #{netD_forward.9} parent=0 // pred_check
    _
  $region11: #{netD_forward.9} parent=0 // pred_check_branch
    %1280 = sbr.rel (0) target = $region13
  $region12: #{netD_forward.9} parent=0 // pred_region
    _
  $region13: #{netD_forward.9} parent=0 // pred_fallthru
    _
  // Predicated region
  $region14: #{netD_forward.9} parent=0 // pred_check
    _
  $region15: #{netD_forward.9} parent=0 // pred_check_branch
    %1282 = sbr.rel (0) target = $region17
  $region16: #{netD_forward.9} parent=0 // pred_region
    _
  $region17: #{netD_forward.9} parent=0 // pred_fallthru
    _
  // Predicated region
  $region18: #{netD_forward.9} parent=0 // pred_check
    _
  $region19: #{netD_forward.9} parent=0 // pred_check_branch
    %1284 = sbr.rel (0) target = $region21
  $region20: #{netD_forward.9} parent=0 // pred_region
    _
  $region21: #{netD_forward.9} parent=0 // pred_fallthru
    _
  // Predicated region
  $region22: #{netD_forward.9} parent=0 // pred_check
    _
  $region23: #{netD_forward.9} parent=0 // pred_check_branch
    %1286 = sbr.rel (0) target = $region25
  $region24: #{netD_forward.9} parent=0 // pred_region
    _
  $region25: #{netD_forward.9} parent=0 // pred_fallthru
    _

// kernel: netD_forward.10
$region0: #{netD_forward.10}
  #allocation0 [shape = 'u32[]', space=smem, size = 0x4, offset = 0x4, fixed_abs, tag = 'smem constant byte address 0x4 - core index']
  #allocation1 [shape = 'u32[144,128]{1,0:T(1,128)}', space=vmem, size = 0x12000, scoped, tag = 'internal scratch']
  %s0 = inlined_call_operand.vmem [shape: bf16[512,16], index: 0, kind: input, shape index: {}]
  %s1 = inlined_call_operand.vmem [shape: f32[1,16], index: 1, kind: input, shape index: {}]
  %s2 = inlined_call_operand.vmem [shape: f32[1,16], index: 2, kind: input, shape index: {}]
  %s3 = inlined_call_operand.vmem [shape: bf16[512,16], index: 3, kind: output, shape index: {}]
  %s4 = sld [smem:[#allocation0]]
  $region22: #{netD_forward.10} parent=0
    _
  %s6 = ssub.s32 1, %s4
  %s7 = scalar_select 0, %s6, %s4
  // Predicated region
  $region2: #{netD_forward.10} parent=0 // pred_check
    _
  $region3: #{netD_forward.10} parent=0 // pred_check_branch
    %9 = sbr.rel (0) target = $region5
  $region4: #{netD_forward.10} parent=0 // pred_region
    _
  $region5: #{netD_forward.10} parent=0 // pred_fallthru
    _
  // Predicated region
  $region6: #{netD_forward.10} parent=0 // pred_check
    _
  $region7: #{netD_forward.10} parent=0 // pred_check_branch
    %11 = sbr.rel (0) target = $region9
  $region8: #{netD_forward.10} parent=0 // pred_region
    _
  $region9: #{netD_forward.10} parent=0 // pred_fallthru
    _
  // Predicated region
  $region10: #{netD_forward.10} parent=0 // pred_check
    _
  $region11: #{netD_forward.10} parent=0 // pred_check_branch
    %13 = sbr.rel (0) target = $region13
  $region12: #{netD_forward.10} parent=0 // pred_region
    _
  $region13: #{netD_forward.10} parent=0 // pred_fallthru
    _
  %v14 = vld [vmem:[%s0] sm:$0xf]
  %v15 = vld [vmem:[%s0 + $0x4] sm:$0xf]
  %v16 = vld [vmem:[%s0 + $0x8] sm:$0xf]
  %v17 = vld [vmem:[%s0 + $0xc] sm:$0xf]
  %v18 = vld [vmem:[%s0 + $0x10] sm:$0xf]
  %v19 = vld [vmem:[%s0 + $0x14] sm:$0xf]
  %v20 = vld [vmem:[%s0 + $0x18] sm:$0xf]
  %v21 = vld [vmem:[%s0 + $0x1c] sm:$0xf]
  %v22 = vld [vmem:[%s0 + $0x20] sm:$0xf]
  %v23 = vld [vmem:[%s0 + $0x24] sm:$0xf]
  %v24 = vld [vmem:[%s0 + $0x28] sm:$0xf]
  %v25 = vld [vmem:[%s0 + $0x2c] sm:$0xf]
  %v26 = vld [vmem:[%s0 + $0x30] sm:$0xf]
  %v27 = vld [vmem:[%s0 + $0x34] sm:$0xf]
  %v28 = vld [vmem:[%s0 + $0x38] sm:$0xf]
  %v29 = vld [vmem:[%s0 + $0x3c] sm:$0xf]
  %v30 = vld [vmem:[%s0 + $0x40] sm:$0xf]
  %v31 = vld [vmem:[%s0 + $0x44] sm:$0xf]
  %v32 = vld [vmem:[%s0 + $0x48] sm:$0xf]
  %v33 = vld [vmem:[%s0 + $0x4c] sm:$0xf]
  %v34 = vld [vmem:[%s0 + $0x50] sm:$0xf]
  %v35 = vld [vmem:[%s0 + $0x54] sm:$0xf]
  %v36 = vld [vmem:[%s0 + $0x58] sm:$0xf]
  %v37 = vld [vmem:[%s0 + $0x5c] sm:$0xf]
  %v38 = vld [vmem:[%s0 + $0x60] sm:$0xf]
  %v39 = vld [vmem:[%s0 + $0x64] sm:$0xf]
  %v40 = vld [vmem:[%s0 + $0x68] sm:$0xf]
  %v41 = vld [vmem:[%s0 + $0x6c] sm:$0xf]
  %v42 = vld [vmem:[%s0 + $0x70] sm:$0xf]
  %v43 = vld [vmem:[%s0 + $0x74] sm:$0xf]
  %v44 = vld [vmem:[%s0 + $0x78] sm:$0xf]
  %v45 = vld [vmem:[%s0 + $0x7c] sm:$0xf]
  %v46 = vld [vmem:[%s0 + $0x80] sm:$0xf]
  %v47 = vld [vmem:[%s0 + $0x84] sm:$0xf]
  %v48 = vld [vmem:[%s0 + $0x88] sm:$0xf]
  %v49 = vld [vmem:[%s0 + $0x8c] sm:$0xf]
  %v50 = vld [vmem:[%s0 + $0x90] sm:$0xf]
  %v51 = vld [vmem:[%s0 + $0x94] sm:$0xf]
  %v52 = vld [vmem:[%s0 + $0x98] sm:$0xf]
  %v53 = vld [vmem:[%s0 + $0x9c] sm:$0xf]
  %v54 = vld [vmem:[%s0 + $0xa0] sm:$0xf]
  %v55 = vld [vmem:[%s0 + $0xa4] sm:$0xf]
  %v56 = vld [vmem:[%s0 + $0xa8] sm:$0xf]
  %v57 = vld [vmem:[%s0 + $0xac] sm:$0xf]
  %v58 = vld [vmem:[%s0 + $0xb0] sm:$0xf]
  %v59 = vld [vmem:[%s0 + $0xb4] sm:$0xf]
  %v60 = vld [vmem:[%s0 + $0xb8] sm:$0xf]
  %v61 = vld [vmem:[%s0 + $0xbc] sm:$0xf]
  %v62 = vld [vmem:[%s0 + $0xc0] sm:$0xf]
  %v63 = vld [vmem:[%s0 + $0xc4] sm:$0xf]
  %v64 = vld [vmem:[%s0 + $0xc8] sm:$0xf]
  %v65 = vld [vmem:[%s0 + $0xcc] sm:$0xf]
  %v66 = vld [vmem:[%s0 + $0xd0] sm:$0xf]
  %v67 = vld [vmem:[%s0 + $0xd4] sm:$0xf]
  %v68 = vld [vmem:[%s0 + $0xd8] sm:$0xf]
  %v69 = vld [vmem:[%s0 + $0xdc] sm:$0xf]
  %v70 = vld [vmem:[%s0 + $0xe0] sm:$0xf]
  %v71 = vld [vmem:[%s0 + $0xe4] sm:$0xf]
  %v72 = vld [vmem:[%s0 + $0xe8] sm:$0xf]
  %v73 = vld [vmem:[%s0 + $0xec] sm:$0xf]
  %v74 = vld [vmem:[%s0 + $0xf0] sm:$0xf]
  %v75 = vld [vmem:[%s0 + $0xf4] sm:$0xf]
  %v76 = vld [vmem:[%s0 + $0xf8] sm:$0xf]
  %v77 = vld [vmem:[%s0 + $0xfc] sm:$0xf]
  %v78 = vunpack.c.l.bf16 %v14
  %v79 = vunpack.c.l.bf16 %v15
  %v80 = vunpack.c.l.bf16 %v16
  %v81 = vunpack.c.l.bf16 %v17
  %v82 = vunpack.c.l.bf16 %v18
  %v83 = vunpack.c.l.bf16 %v19
  %v84 = vunpack.c.l.bf16 %v20
  %v85 = vunpack.c.l.bf16 %v21
  %v86 = vunpack.c.l.bf16 %v22
  %v87 = vunpack.c.l.bf16 %v23
  %v88 = vunpack.c.l.bf16 %v24
  %v89 = vunpack.c.l.bf16 %v25
  %v90 = vunpack.c.l.bf16 %v26
  %v91 = vunpack.c.l.bf16 %v27
  %v92 = vunpack.c.l.bf16 %v28
  %v93 = vunpack.c.l.bf16 %v29
  %v94 = vunpack.c.l.bf16 %v30
  %v95 = vunpack.c.l.bf16 %v31
  %v96 = vunpack.c.l.bf16 %v32
  %v97 = vunpack.c.l.bf16 %v33
  %v98 = vunpack.c.l.bf16 %v34
  %v99 = vunpack.c.l.bf16 %v35
  %v100 = vunpack.c.l.bf16 %v36
  %v101 = vunpack.c.l.bf16 %v37
  %v102 = vunpack.c.l.bf16 %v38
  %v103 = vunpack.c.l.bf16 %v39
  %v104 = vunpack.c.l.bf16 %v40
  %v105 = vunpack.c.l.bf16 %v41
  %v106 = vunpack.c.l.bf16 %v42
  %v107 = vunpack.c.l.bf16 %v43
  %v108 = vunpack.c.l.bf16 %v44
  %v109 = vunpack.c.l.bf16 %v45
  %v110 = vunpack.c.l.bf16 %v46
  %v111 = vunpack.c.l.bf16 %v47
  %v112 = vunpack.c.l.bf16 %v48
  %v113 = vunpack.c.l.bf16 %v49
  %v114 = vunpack.c.l.bf16 %v50
  %v115 = vunpack.c.l.bf16 %v51
  %v116 = vunpack.c.l.bf16 %v52
  %v117 = vunpack.c.l.bf16 %v53
  %v118 = vunpack.c.l.bf16 %v54
  %v119 = vunpack.c.l.bf16 %v55
  %v120 = vunpack.c.l.bf16 %v56
  %v121 = vunpack.c.l.bf16 %v57
  %v122 = vunpack.c.l.bf16 %v58
  %v123 = vunpack.c.l.bf16 %v59
  %v124 = vunpack.c.l.bf16 %v60
  %v125 = vunpack.c.l.bf16 %v61
  %v126 = vunpack.c.l.bf16 %v62
  %v127 = vunpack.c.l.bf16 %v63
  %v128 = vunpack.c.l.bf16 %v64
  %v129 = vunpack.c.l.bf16 %v65
  %v130 = vunpack.c.l.bf16 %v66
  %v131 = vunpack.c.l.bf16 %v67
  %v132 = vunpack.c.l.bf16 %v68
  %v133 = vunpack.c.l.bf16 %v69
  %v134 = vunpack.c.l.bf16 %v70
  %v135 = vunpack.c.l.bf16 %v71
  %v136 = vunpack.c.l.bf16 %v72
  %v137 = vunpack.c.l.bf16 %v73
  %v138 = vunpack.c.l.bf16 %v74
  %v139 = vunpack.c.l.bf16 %v75
  %v140 = vunpack.c.l.bf16 %v76
  %v141 = vunpack.c.l.bf16 %v77
  %v142 = vld [vmem:[%s1] sm:$0x1]
  %v144 = vlaneseq
  %v145 = vshrl.u32 %v144, 7
  %v146 = vsub.s32 0, %v145
  %v147 = vrot.slane %v142, %v146
  %v149 = vmul.f32 %v78, %v147
  %v150 = vmul.f32 %v79, %v147
  %v151 = vmul.f32 %v80, %v147
  %v152 = vmul.f32 %v81, %v147
  %v153 = vmul.f32 %v82, %v147
  %v154 = vmul.f32 %v83, %v147
  %v155 = vmul.f32 %v84, %v147
  %v156 = vmul.f32 %v85, %v147
  %v157 = vmul.f32 %v86, %v147
  %v158 = vmul.f32 %v87, %v147
  %v159 = vmul.f32 %v88, %v147
  %v160 = vmul.f32 %v89, %v147
  %v161 = vmul.f32 %v90, %v147
  %v162 = vmul.f32 %v91, %v147
  %v163 = vmul.f32 %v92, %v147
  %v164 = vmul.f32 %v93, %v147
  %v165 = vmul.f32 %v94, %v147
  %v166 = vmul.f32 %v95, %v147
  %v167 = vmul.f32 %v96, %v147
  %v168 = vmul.f32 %v97, %v147
  %v169 = vmul.f32 %v98, %v147
  %v170 = vmul.f32 %v99, %v147
  %v171 = vmul.f32 %v100, %v147
  %v172 = vmul.f32 %v101, %v147
  %v173 = vmul.f32 %v102, %v147
  %v174 = vmul.f32 %v103, %v147
  %v175 = vmul.f32 %v104, %v147
  %v176 = vmul.f32 %v105, %v147
  %v177 = vmul.f32 %v106, %v147
  %v178 = vmul.f32 %v107, %v147
  %v179 = vmul.f32 %v108, %v147
  %v180 = vmul.f32 %v109, %v147
  %v181 = vmul.f32 %v110, %v147
  %v182 = vmul.f32 %v111, %v147
  %v183 = vmul.f32 %v112, %v147
  %v184 = vmul.f32 %v113, %v147
  %v185 = vmul.f32 %v114, %v147
  %v186 = vmul.f32 %v115, %v147
  %v187 = vmul.f32 %v116, %v147
  %v188 = vmul.f32 %v117, %v147
  %v189 = vmul.f32 %v118, %v147
  %v190 = vmul.f32 %v119, %v147
  %v191 = vmul.f32 %v120, %v147
  %v192 = vmul.f32 %v121, %v147
  %v193 = vmul.f32 %v122, %v147
  %v194 = vmul.f32 %v123, %v147
  %v195 = vmul.f32 %v124, %v147
  %v196 = vmul.f32 %v125, %v147
  %v197 = vmul.f32 %v126, %v147
  %v198 = vmul.f32 %v127, %v147
  %v199 = vmul.f32 %v128, %v147
  %v200 = vmul.f32 %v129, %v147
  %v201 = vmul.f32 %v130, %v147
  %v202 = vmul.f32 %v131, %v147
  %v203 = vmul.f32 %v132, %v147
  %v204 = vmul.f32 %v133, %v147
  %v205 = vmul.f32 %v134, %v147
  %v206 = vmul.f32 %v135, %v147
  %v207 = vmul.f32 %v136, %v147
  %v208 = vmul.f32 %v137, %v147
  %v209 = vmul.f32 %v138, %v147
  %v210 = vmul.f32 %v139, %v147
  %v211 = vmul.f32 %v140, %v147
  %v212 = vmul.f32 %v141, %v147
  %v213 = vld [vmem:[%s2] sm:$0x1]
  %v215 = vlaneseq
  %v216 = vshrl.u32 %v215, 7
  %v217 = vsub.s32 0, %v216
  %v218 = vrot.slane %v213, %v217
  %v220 = vadd.f32 %v149, %v218
  %v221 = vadd.f32 %v150, %v218
  %v222 = vadd.f32 %v151, %v218
  %v223 = vadd.f32 %v152, %v218
  %v224 = vadd.f32 %v153, %v218
  %v225 = vadd.f32 %v154, %v218
  %v226 = vadd.f32 %v155, %v218
  %v227 = vadd.f32 %v156, %v218
  %v228 = vadd.f32 %v157, %v218
  %v229 = vadd.f32 %v158, %v218
  %v230 = vadd.f32 %v159, %v218
  %v231 = vadd.f32 %v160, %v218
  %v232 = vadd.f32 %v161, %v218
  %v233 = vadd.f32 %v162, %v218
  %v234 = vadd.f32 %v163, %v218
  %v235 = vadd.f32 %v164, %v218
  %v236 = vadd.f32 %v165, %v218
  %v237 = vadd.f32 %v166, %v218
  %v238 = vadd.f32 %v167, %v218
  %v239 = vadd.f32 %v168, %v218
  %v240 = vadd.f32 %v169, %v218
  %v241 = vadd.f32 %v170, %v218
  %v242 = vadd.f32 %v171, %v218
  %v243 = vadd.f32 %v172, %v218
  %v244 = vadd.f32 %v173, %v218
  %v245 = vadd.f32 %v174, %v218
  %v246 = vadd.f32 %v175, %v218
  %v247 = vadd.f32 %v176, %v218
  %v248 = vadd.f32 %v177, %v218
  %v249 = vadd.f32 %v178, %v218
  %v250 = vadd.f32 %v179, %v218
  %v251 = vadd.f32 %v180, %v218
  %v252 = vadd.f32 %v181, %v218
  %v253 = vadd.f32 %v182, %v218
  %v254 = vadd.f32 %v183, %v218
  %v255 = vadd.f32 %v184, %v218
  %v256 = vadd.f32 %v185, %v218
  %v257 = vadd.f32 %v186, %v218
  %v258 = vadd.f32 %v187, %v218
  %v259 = vadd.f32 %v188, %v218
  %v260 = vadd.f32 %v189, %v218
  %v261 = vadd.f32 %v190, %v218
  %v262 = vadd.f32 %v191, %v218
  %v263 = vadd.f32 %v192, %v218
  %v264 = vadd.f32 %v193, %v218
  %v265 = vadd.f32 %v194, %v218
  %v266 = vadd.f32 %v195, %v218
  %v267 = vadd.f32 %v196, %v218
  %v268 = vadd.f32 %v197, %v218
  %v269 = vadd.f32 %v198, %v218
  %v270 = vadd.f32 %v199, %v218
  %v271 = vadd.f32 %v200, %v218
  %v272 = vadd.f32 %v201, %v218
  %v273 = vadd.f32 %v202, %v218
  %v274 = vadd.f32 %v203, %v218
  %v275 = vadd.f32 %v204, %v218
  %v276 = vadd.f32 %v205, %v218
  %v277 = vadd.f32 %v206, %v218
  %v278 = vadd.f32 %v207, %v218
  %v279 = vadd.f32 %v208, %v218
  %v280 = vadd.f32 %v209, %v218
  %v281 = vadd.f32 %v210, %v218
  %v282 = vadd.f32 %v211, %v218
  %v283 = vadd.f32 %v212, %v218
  %vm284 = vcmp.gt.f32.partialorder %v220, 0.0
  %vm285 = vcmp.gt.f32.partialorder %v221, 0.0
  %vm286 = vcmp.gt.f32.partialorder %v222, 0.0
  %vm287 = vcmp.gt.f32.partialorder %v223, 0.0
  %vm288 = vcmp.gt.f32.partialorder %v224, 0.0
  %vm289 = vcmp.gt.f32.partialorder %v225, 0.0
  %vm290 = vcmp.gt.f32.partialorder %v226, 0.0
  %vm291 = vcmp.gt.f32.partialorder %v227, 0.0
  %vm292 = vcmp.gt.f32.partialorder %v228, 0.0
  %vm293 = vcmp.gt.f32.partialorder %v229, 0.0
  %vm294 = vcmp.gt.f32.partialorder %v230, 0.0
  %vm295 = vcmp.gt.f32.partialorder %v231, 0.0
  %vm296 = vcmp.gt.f32.partialorder %v232, 0.0
  %vm297 = vcmp.gt.f32.partialorder %v233, 0.0
  %vm298 = vcmp.gt.f32.partialorder %v234, 0.0
  %vm299 = vcmp.gt.f32.partialorder %v235, 0.0
  %vm300 = vcmp.gt.f32.partialorder %v236, 0.0
  %vm301 = vcmp.gt.f32.partialorder %v237, 0.0
  %vm302 = vcmp.gt.f32.partialorder %v238, 0.0
  %vm303 = vcmp.gt.f32.partialorder %v239, 0.0
  %vm304 = vcmp.gt.f32.partialorder %v240, 0.0
  %vm305 = vcmp.gt.f32.partialorder %v241, 0.0
  %vm306 = vcmp.gt.f32.partialorder %v242, 0.0
  %vm307 = vcmp.gt.f32.partialorder %v243, 0.0
  %vm308 = vcmp.gt.f32.partialorder %v244, 0.0
  %vm309 = vcmp.gt.f32.partialorder %v245, 0.0
  %vm310 = vcmp.gt.f32.partialorder %v246, 0.0
  %vm311 = vcmp.gt.f32.partialorder %v247, 0.0
  %vm312 = vcmp.gt.f32.partialorder %v248, 0.0
  %vm313 = vcmp.gt.f32.partialorder %v249, 0.0
  %vm314 = vcmp.gt.f32.partialorder %v250, 0.0
  %vm315 = vcmp.gt.f32.partialorder %v251, 0.0
  %vm316 = vcmp.gt.f32.partialorder %v252, 0.0
  %vm317 = vcmp.gt.f32.partialorder %v253, 0.0
  %vm318 = vcmp.gt.f32.partialorder %v254, 0.0
  %vm319 = vcmp.gt.f32.partialorder %v255, 0.0
  %vm320 = vcmp.gt.f32.partialorder %v256, 0.0
  %vm321 = vcmp.gt.f32.partialorder %v257, 0.0
  %vm322 = vcmp.gt.f32.partialorder %v258, 0.0
  %vm323 = vcmp.gt.f32.partialorder %v259, 0.0
  %vm324 = vcmp.gt.f32.partialorder %v260, 0.0
  %vm325 = vcmp.gt.f32.partialorder %v261, 0.0
  %vm326 = vcmp.gt.f32.partialorder %v262, 0.0
  %vm327 = vcmp.gt.f32.partialorder %v263, 0.0
  %vm328 = vcmp.gt.f32.partialorder %v264, 0.0
  %vm329 = vcmp.gt.f32.partialorder %v265, 0.0
  %vm330 = vcmp.gt.f32.partialorder %v266, 0.0
  %vm331 = vcmp.gt.f32.partialorder %v267, 0.0
  %vm332 = vcmp.gt.f32.partialorder %v268, 0.0
  %vm333 = vcmp.gt.f32.partialorder %v269, 0.0
  %vm334 = vcmp.gt.f32.partialorder %v270, 0.0
  %vm335 = vcmp.gt.f32.partialorder %v271, 0.0
  %vm336 = vcmp.gt.f32.partialorder %v272, 0.0
  %vm337 = vcmp.gt.f32.partialorder %v273, 0.0
  %vm338 = vcmp.gt.f32.partialorder %v274, 0.0
  %vm339 = vcmp.gt.f32.partialorder %v275, 0.0
  %vm340 = vcmp.gt.f32.partialorder %v276, 0.0
  %vm341 = vcmp.gt.f32.partialorder %v277, 0.0
  %vm342 = vcmp.gt.f32.partialorder %v278, 0.0
  %vm343 = vcmp.gt.f32.partialorder %v279, 0.0
  %vm344 = vcmp.gt.f32.partialorder %v280, 0.0
  %vm345 = vcmp.gt.f32.partialorder %v281, 0.0
  %vm346 = vcmp.gt.f32.partialorder %v282, 0.0
  %vm347 = vcmp.gt.f32.partialorder %v283, 0.0
  %v348 = vmul.f32 %v220, 0.2
  %v349 = vmul.f32 %v221, 0.2
  %v350 = vmul.f32 %v222, 0.2
  %v351 = vmul.f32 %v223, 0.2
  %v352 = vmul.f32 %v224, 0.2
  %v353 = vmul.f32 %v225, 0.2
  %v354 = vmul.f32 %v226, 0.2
  %v355 = vmul.f32 %v227, 0.2
  %v356 = vmul.f32 %v228, 0.2
  %v357 = vmul.f32 %v229, 0.2
  %v358 = vmul.f32 %v230, 0.2
  %v359 = vmul.f32 %v231, 0.2
  %v360 = vmul.f32 %v232, 0.2
  %v361 = vmul.f32 %v233, 0.2
  %v362 = vmul.f32 %v234, 0.2
  %v363 = vmul.f32 %v235, 0.2
  %v364 = vmul.f32 %v236, 0.2
  %v365 = vmul.f32 %v237, 0.2
  %v366 = vmul.f32 %v238, 0.2
  %v367 = vmul.f32 %v239, 0.2
  %v368 = vmul.f32 %v240, 0.2
  %v369 = vmul.f32 %v241, 0.2
  %v370 = vmul.f32 %v242, 0.2
  %v371 = vmul.f32 %v243, 0.2
  %v372 = vmul.f32 %v244, 0.2
  %v373 = vmul.f32 %v245, 0.2
  %v374 = vmul.f32 %v246, 0.2
  %v375 = vmul.f32 %v247, 0.2
  %v376 = vmul.f32 %v248, 0.2
  %v377 = vmul.f32 %v249, 0.2
  %v378 = vmul.f32 %v250, 0.2
  %v379 = vmul.f32 %v251, 0.2
  %v380 = vmul.f32 %v252, 0.2
  %v381 = vmul.f32 %v253, 0.2
  %v382 = vmul.f32 %v254, 0.2
  %v383 = vmul.f32 %v255, 0.2
  %v384 = vmul.f32 %v256, 0.2
  %v385 = vmul.f32 %v257, 0.2
  %v386 = vmul.f32 %v258, 0.2
  %v387 = vmul.f32 %v259, 0.2
  %v388 = vmul.f32 %v260, 0.2
  %v389 = vmul.f32 %v261, 0.2
  %v390 = vmul.f32 %v262, 0.2
  %v391 = vmul.f32 %v263, 0.2
  %v392 = vmul.f32 %v264, 0.2
  %v393 = vmul.f32 %v265, 0.2
  %v394 = vmul.f32 %v266, 0.2
  %v395 = vmul.f32 %v267, 0.2
  %v396 = vmul.f32 %v268, 0.2
  %v397 = vmul.f32 %v269, 0.2
  %v398 = vmul.f32 %v270, 0.2
  %v399 = vmul.f32 %v271, 0.2
  %v400 = vmul.f32 %v272, 0.2
  %v401 = vmul.f32 %v273, 0.2
  %v402 = vmul.f32 %v274, 0.2
  %v403 = vmul.f32 %v275, 0.2
  %v404 = vmul.f32 %v276, 0.2
  %v405 = vmul.f32 %v277, 0.2
  %v406 = vmul.f32 %v278, 0.2
  %v407 = vmul.f32 %v279, 0.2
  %v408 = vmul.f32 %v280, 0.2
  %v409 = vmul.f32 %v281, 0.2
  %v410 = vmul.f32 %v282, 0.2
  %v411 = vmul.f32 %v283, 0.2
  %v412 = vsel %vm284, %v220, %v348
  %v413 = vsel %vm285, %v221, %v349
  %v414 = vsel %vm286, %v222, %v350
  %v415 = vsel %vm287, %v223, %v351
  %v416 = vsel %vm288, %v224, %v352
  %v417 = vsel %vm289, %v225, %v353
  %v418 = vsel %vm290, %v226, %v354
  %v419 = vsel %vm291, %v227, %v355
  %v420 = vsel %vm292, %v228, %v356
  %v421 = vsel %vm293, %v229, %v357
  %v422 = vsel %vm294, %v230, %v358
  %v423 = vsel %vm295, %v231, %v359
  %v424 = vsel %vm296, %v232, %v360
  %v425 = vsel %vm297, %v233, %v361
  %v426 = vsel %vm298, %v234, %v362
  %v427 = vsel %vm299, %v235, %v363
  %v428 = vsel %vm300, %v236, %v364
  %v429 = vsel %vm301, %v237, %v365
  %v430 = vsel %vm302, %v238, %v366
  %v431 = vsel %vm303, %v239, %v367
  %v432 = vsel %vm304, %v240, %v368
  %v433 = vsel %vm305, %v241, %v369
  %v434 = vsel %vm306, %v242, %v370
  %v435 = vsel %vm307, %v243, %v371
  %v436 = vsel %vm308, %v244, %v372
  %v437 = vsel %vm309, %v245, %v373
  %v438 = vsel %vm310, %v246, %v374
  %v439 = vsel %vm311, %v247, %v375
  %v440 = vsel %vm312, %v248, %v376
  %v441 = vsel %vm313, %v249, %v377
  %v442 = vsel %vm314, %v250, %v378
  %v443 = vsel %vm315, %v251, %v379
  %v444 = vsel %vm316, %v252, %v380
  %v445 = vsel %vm317, %v253, %v381
  %v446 = vsel %vm318, %v254, %v382
  %v447 = vsel %vm319, %v255, %v383
  %v448 = vsel %vm320, %v256, %v384
  %v449 = vsel %vm321, %v257, %v385
  %v450 = vsel %vm322, %v258, %v386
  %v451 = vsel %vm323, %v259, %v387
  %v452 = vsel %vm324, %v260, %v388
  %v453 = vsel %vm325, %v261, %v389
  %v454 = vsel %vm326, %v262, %v390
  %v455 = vsel %vm327, %v263, %v391
  %v456 = vsel %vm328, %v264, %v392
  %v457 = vsel %vm329, %v265, %v393
  %v458 = vsel %vm330, %v266, %v394
  %v459 = vsel %vm331, %v267, %v395
  %v460 = vsel %vm332, %v268, %v396
  %v461 = vsel %vm333, %v269, %v397
  %v462 = vsel %vm334, %v270, %v398
  %v463 = vsel %vm335, %v271, %v399
  %v464 = vsel %vm336, %v272, %v400
  %v465 = vsel %vm337, %v273, %v401
  %v466 = vsel %vm338, %v274, %v402
  %v467 = vsel %vm339, %v275, %v403
  %v468 = vsel %vm340, %v276, %v404
  %v469 = vsel %vm341, %v277, %v405
  %v470 = vsel %vm342, %v278, %v406
  %v471 = vsel %vm343, %v279, %v407
  %v472 = vsel %vm344, %v280, %v408
  %v473 = vsel %vm345, %v281, %v409
  %v474 = vsel %vm346, %v282, %v410
  %v475 = vsel %vm347, %v283, %v411
  %v476 = vpack.c.bf16 %v413, %v412
  %v477 = vpack.c.bf16 %v415, %v414
  %v478 = vpack.c.bf16 %v417, %v416
  %v479 = vpack.c.bf16 %v419, %v418
  %v480 = vpack.c.bf16 %v421, %v420
  %v481 = vpack.c.bf16 %v423, %v422
  %v482 = vpack.c.bf16 %v425, %v424
  %v483 = vpack.c.bf16 %v427, %v426
  %v484 = vpack.c.bf16 %v429, %v428
  %v485 = vpack.c.bf16 %v431, %v430
  %v486 = vpack.c.bf16 %v433, %v432
  %v487 = vpack.c.bf16 %v435, %v434
  %v488 = vpack.c.bf16 %v437, %v436
  %v489 = vpack.c.bf16 %v439, %v438
  %v490 = vpack.c.bf16 %v441, %v440
  %v491 = vpack.c.bf16 %v443, %v442
  %v492 = vpack.c.bf16 %v445, %v444
  %v493 = vpack.c.bf16 %v447, %v446
  %v494 = vpack.c.bf16 %v449, %v448
  %v495 = vpack.c.bf16 %v451, %v450
  %v496 = vpack.c.bf16 %v453, %v452
  %v497 = vpack.c.bf16 %v455, %v454
  %v498 = vpack.c.bf16 %v457, %v456
  %v499 = vpack.c.bf16 %v459, %v458
  %v500 = vpack.c.bf16 %v461, %v460
  %v501 = vpack.c.bf16 %v463, %v462
  %v502 = vpack.c.bf16 %v465, %v464
  %v503 = vpack.c.bf16 %v467, %v466
  %v504 = vpack.c.bf16 %v469, %v468
  %v505 = vpack.c.bf16 %v471, %v470
  %v506 = vpack.c.bf16 %v473, %v472
  %v507 = vpack.c.bf16 %v475, %v474
  %v540 = vunpack.c.l.b16 %v476
  %v541 = vunpack.c.h.b16 %v476
  %v542 = vunpack.c.l.b16 %v477
  %v543 = vunpack.c.h.b16 %v477
  %v544 = vunpack.c.l.b16 %v478
  %v545 = vunpack.c.h.b16 %v478
  %v546 = vunpack.c.l.b16 %v479
  %v547 = vunpack.c.h.b16 %v479
  %v548 = vunpack.c.l.b16 %v480
  %v549 = vunpack.c.h.b16 %v480
  %v550 = vunpack.c.l.b16 %v481
  %v551 = vunpack.c.h.b16 %v481
  %v552 = vunpack.c.l.b16 %v482
  %v553 = vunpack.c.h.b16 %v482
  %v554 = vunpack.c.l.b16 %v483
  %v555 = vunpack.c.h.b16 %v483
  %v556 = vunpack.c.l.b16 %v484
  %v557 = vunpack.c.h.b16 %v484
  %v558 = vunpack.c.l.b16 %v485
  %v559 = vunpack.c.h.b16 %v485
  %v560 = vunpack.c.l.b16 %v486
  %v561 = vunpack.c.h.b16 %v486
  %v562 = vunpack.c.l.b16 %v487
  %v563 = vunpack.c.h.b16 %v487
  %v564 = vunpack.c.l.b16 %v488
  %v565 = vunpack.c.h.b16 %v488
  %v566 = vunpack.c.l.b16 %v489
  %v567 = vunpack.c.h.b16 %v489
  %v568 = vunpack.c.l.b16 %v490
  %v569 = vunpack.c.h.b16 %v490
  %v570 = vunpack.c.l.b16 %v491
  %v571 = vunpack.c.h.b16 %v491
  %v572 = vunpack.c.l.b16 %v492
  %v573 = vunpack.c.h.b16 %v492
  %v574 = vunpack.c.l.b16 %v493
  %v575 = vunpack.c.h.b16 %v493
  %v576 = vunpack.c.l.b16 %v494
  %v577 = vunpack.c.h.b16 %v494
  %v578 = vunpack.c.l.b16 %v495
  %v579 = vunpack.c.h.b16 %v495
  %v580 = vunpack.c.l.b16 %v496
  %v581 = vunpack.c.h.b16 %v496
  %v582 = vunpack.c.l.b16 %v497
  %v583 = vunpack.c.h.b16 %v497
  %v584 = vunpack.c.l.b16 %v498
  %v585 = vunpack.c.h.b16 %v498
  %v586 = vunpack.c.l.b16 %v499
  %v587 = vunpack.c.h.b16 %v499
  %v588 = vunpack.c.l.b16 %v500
  %v589 = vunpack.c.h.b16 %v500
  %v590 = vunpack.c.l.b16 %v501
  %v591 = vunpack.c.h.b16 %v501
  %v592 = vunpack.c.l.b16 %v502
  %v593 = vunpack.c.h.b16 %v502
  %v594 = vunpack.c.l.b16 %v503
  %v595 = vunpack.c.h.b16 %v503
  %v596 = vunpack.c.l.b16 %v504
  %v597 = vunpack.c.h.b16 %v504
  %v598 = vunpack.c.l.b16 %v505
  %v599 = vunpack.c.h.b16 %v505
  %v600 = vunpack.c.l.b16 %v506
  %v601 = vunpack.c.h.b16 %v506
  %v602 = vunpack.c.l.b16 %v507
  %v603 = vunpack.c.h.b16 %v507
  %v604 = vpack.c.b16 %v540, %v540
  %v605 = vpack.c.b16 %v541, %v541
  %v606 = vpack.c.b16 %v542, %v542
  %v607 = vpack.c.b16 %v543, %v543
  %v608 = vpack.c.b16 %v544, %v544
  %v609 = vpack.c.b16 %v545, %v545
  %v610 = vpack.c.b16 %v546, %v546
  %v611 = vpack.c.b16 %v547, %v547
  %v612 = vpack.c.b16 %v548, %v548
  %v613 = vpack.c.b16 %v549, %v549
  %v614 = vpack.c.b16 %v550, %v550
  %v615 = vpack.c.b16 %v551, %v551
  %v616 = vpack.c.b16 %v552, %v552
  %v617 = vpack.c.b16 %v553, %v553
  %v618 = vpack.c.b16 %v554, %v554
  %v619 = vpack.c.b16 %v555, %v555
  %v620 = vpack.c.b16 %v556, %v556
  %v621 = vpack.c.b16 %v557, %v557
  %v622 = vpack.c.b16 %v558, %v558
  %v623 = vpack.c.b16 %v559, %v559
  %v624 = vpack.c.b16 %v560, %v560
  %v625 = vpack.c.b16 %v561, %v561
  %v626 = vpack.c.b16 %v562, %v562
  %v627 = vpack.c.b16 %v563, %v563
  %v628 = vpack.c.b16 %v564, %v564
  %v629 = vpack.c.b16 %v565, %v565
  %v630 = vpack.c.b16 %v566, %v566
  %v631 = vpack.c.b16 %v567, %v567
  %v632 = vpack.c.b16 %v568, %v568
  %v633 = vpack.c.b16 %v569, %v569
  %v634 = vpack.c.b16 %v570, %v570
  %v635 = vpack.c.b16 %v571, %v571
  %v636 = vpack.c.b16 %v572, %v572
  %v637 = vpack.c.b16 %v573, %v573
  %v638 = vpack.c.b16 %v574, %v574
  %v639 = vpack.c.b16 %v575, %v575
  %v640 = vpack.c.b16 %v576, %v576
  %v641 = vpack.c.b16 %v577, %v577
  %v642 = vpack.c.b16 %v578, %v578
  %v643 = vpack.c.b16 %v579, %v579
  %v644 = vpack.c.b16 %v580, %v580
  %v645 = vpack.c.b16 %v581, %v581
  %v646 = vpack.c.b16 %v582, %v582
  %v647 = vpack.c.b16 %v583, %v583
  %v648 = vpack.c.b16 %v584, %v584
  %v649 = vpack.c.b16 %v585, %v585
  %v650 = vpack.c.b16 %v586, %v586
  %v651 = vpack.c.b16 %v587, %v587
  %v652 = vpack.c.b16 %v588, %v588
  %v653 = vpack.c.b16 %v589, %v589
  %v654 = vpack.c.b16 %v590, %v590
  %v655 = vpack.c.b16 %v591, %v591
  %v656 = vpack.c.b16 %v592, %v592
  %v657 = vpack.c.b16 %v593, %v593
  %v658 = vpack.c.b16 %v594, %v594
  %v659 = vpack.c.b16 %v595, %v595
  %v660 = vpack.c.b16 %v596, %v596
  %v661 = vpack.c.b16 %v597, %v597
  %v662 = vpack.c.b16 %v598, %v598
  %v663 = vpack.c.b16 %v599, %v599
  %v664 = vpack.c.b16 %v600, %v600
  %v665 = vpack.c.b16 %v601, %v601
  %v666 = vpack.c.b16 %v602, %v602
  %v667 = vpack.c.b16 %v603, %v603
  %vm732 = vcmask 125952
  %733 = vst.msk [vmem:[%s3] sm:$0xf] %vm732, %v604
  %734 = vst.msk [vmem:[%s3 + $0x4] sm:$0xf] %vm732, %v605
  %735 = vst.msk [vmem:[%s3 + $0x8] sm:$0xf] %vm732, %v606
  %736 = vst.msk [vmem:[%s3 + $0xc] sm:$0xf] %vm732, %v607
  %737 = vst.msk [vmem:[%s3 + $0x10] sm:$0xf] %vm732, %v608
  %738 = vst.msk [vmem:[%s3 + $0x14] sm:$0xf] %vm732, %v609
  %739 = vst.msk [vmem:[%s3 + $0x18] sm:$0xf] %vm732, %v610
  %740 = vst.msk [vmem:[%s3 + $0x1c] sm:$0xf] %vm732, %v611
  %741 = vst.msk [vmem:[%s3 + $0x20] sm:$0xf] %vm732, %v612
  %742 = vst.msk [vmem:[%s3 + $0x24] sm:$0xf] %vm732, %v613
  %743 = vst.msk [vmem:[%s3 + $0x28] sm:$0xf] %vm732, %v614
  %744 = vst.msk [vmem:[%s3 + $0x2c] sm:$0xf] %vm732, %v615
  %745 = vst.msk [vmem:[%s3 + $0x30] sm:$0xf] %vm732, %v616
  %746 = vst.msk [vmem:[%s3 + $0x34] sm:$0xf] %vm732, %v617
  %747 = vst.msk [vmem:[%s3 + $0x38] sm:$0xf] %vm732, %v618
  %748 = vst.msk [vmem:[%s3 + $0x3c] sm:$0xf] %vm732, %v619
  %749 = vst.msk [vmem:[%s3 + $0x40] sm:$0xf] %vm732, %v620
  %750 = vst.msk [vmem:[%s3 + $0x44] sm:$0xf] %vm732, %v621
  %751 = vst.msk [vmem:[%s3 + $0x48] sm:$0xf] %vm732, %v622
  %752 = vst.msk [vmem:[%s3 + $0x4c] sm:$0xf] %vm732, %v623
  %753 = vst.msk [vmem:[%s3 + $0x50] sm:$0xf] %vm732, %v624
  %754 = vst.msk [vmem:[%s3 + $0x54] sm:$0xf] %vm732, %v625
  %755 = vst.msk [vmem:[%s3 + $0x58] sm:$0xf] %vm732, %v626
  %756 = vst.msk [vmem:[%s3 + $0x5c] sm:$0xf] %vm732, %v627
  %757 = vst.msk [vmem:[%s3 + $0x60] sm:$0xf] %vm732, %v628
  %758 = vst.msk [vmem:[%s3 + $0x64] sm:$0xf] %vm732, %v629
  %759 = vst.msk [vmem:[%s3 + $0x68] sm:$0xf] %vm732, %v630
  %760 = vst.msk [vmem:[%s3 + $0x6c] sm:$0xf] %vm732, %v631
  %761 = vst.msk [vmem:[%s3 + $0x70] sm:$0xf] %vm732, %v632
  %762 = vst.msk [vmem:[%s3 + $0x74] sm:$0xf] %vm732, %v633
  %763 = vst.msk [vmem:[%s3 + $0x78] sm:$0xf] %vm732, %v634
  %764 = vst.msk [vmem:[%s3 + $0x7c] sm:$0xf] %vm732, %v635
  %765 = vst.msk [vmem:[%s3 + $0x80] sm:$0xf] %vm732, %v636
  %766 = vst.msk [vmem:[%s3 + $0x84] sm:$0xf] %vm732, %v637
  %767 = vst.msk [vmem:[%s3 + $0x88] sm:$0xf] %vm732, %v638
  %768 = vst.msk [vmem:[%s3 + $0x8c] sm:$0xf] %vm732, %v639
  %769 = vst.msk [vmem:[%s3 + $0x90] sm:$0xf] %vm732, %v640
  %770 = vst.msk [vmem:[%s3 + $0x94] sm:$0xf] %vm732, %v641
  %771 = vst.msk [vmem:[%s3 + $0x98] sm:$0xf] %vm732, %v642
  %772 = vst.msk [vmem:[%s3 + $0x9c] sm:$0xf] %vm732, %v643
  %773 = vst.msk [vmem:[%s3 + $0xa0] sm:$0xf] %vm732, %v644
  %774 = vst.msk [vmem:[%s3 + $0xa4] sm:$0xf] %vm732, %v645
  %775 = vst.msk [vmem:[%s3 + $0xa8] sm:$0xf] %vm732, %v646
  %776 = vst.msk [vmem:[%s3 + $0xac] sm:$0xf] %vm732, %v647
  %777 = vst.msk [vmem:[%s3 + $0xb0] sm:$0xf] %vm732, %v648
  %778 = vst.msk [vmem:[%s3 + $0xb4] sm:$0xf] %vm732, %v649
  %779 = vst.msk [vmem:[%s3 + $0xb8] sm:$0xf] %vm732, %v650
  %780 = vst.msk [vmem:[%s3 + $0xbc] sm:$0xf] %vm732, %v651
  %781 = vst.msk [vmem:[%s3 + $0xc0] sm:$0xf] %vm732, %v652
  %782 = vst.msk [vmem:[%s3 + $0xc4] sm:$0xf] %vm732, %v653
  %783 = vst.msk [vmem:[%s3 + $0xc8] sm:$0xf] %vm732, %v654
  %784 = vst.msk [vmem:[%s3 + $0xcc] sm:$0xf] %vm732, %v655
  %785 = vst.msk [vmem:[%s3 + $0xd0] sm:$0xf] %vm732, %v656
  %786 = vst.msk [vmem:[%s3 + $0xd4] sm:$0xf] %vm732, %v657
  %787 = vst.msk [vmem:[%s3 + $0xd8] sm:$0xf] %vm732, %v658
  %788 = vst.msk [vmem:[%s3 + $0xdc] sm:$0xf] %vm732, %v659
  %789 = vst.msk [vmem:[%s3 + $0xe0] sm:$0xf] %vm732, %v660
  %790 = vst.msk [vmem:[%s3 + $0xe4] sm:$0xf] %vm732, %v661
  %791 = vst.msk [vmem:[%s3 + $0xe8] sm:$0xf] %vm732, %v662
  %792 = vst.msk [vmem:[%s3 + $0xec] sm:$0xf] %vm732, %v663
  %793 = vst.msk [vmem:[%s3 + $0xf0] sm:$0xf] %vm732, %v664
  %794 = vst.msk [vmem:[%s3 + $0xf4] sm:$0xf] %vm732, %v665
  %795 = vst.msk [vmem:[%s3 + $0xf8] sm:$0xf] %vm732, %v666
  %796 = vst.msk [vmem:[%s3 + $0xfc] sm:$0xf] %vm732, %v667
  // Predicated region
  $region14: #{netD_forward.10} parent=0 // pred_check
    _
  $region15: #{netD_forward.10} parent=0 // pred_check_branch
    %798 = sbr.rel (0) target = $region17
  $region16: #{netD_forward.10} parent=0 // pred_region
    _
  $region17: #{netD_forward.10} parent=0 // pred_fallthru
    _
  // Predicated region
  $region18: #{netD_forward.10} parent=0 // pred_check
    _
  $region19: #{netD_forward.10} parent=0 // pred_check_branch
    %800 = sbr.rel (0) target = $region21
  $region20: #{netD_forward.10} parent=0 // pred_region
    _
  $region21: #{netD_forward.10} parent=0 // pred_fallthru
    _

// kernel: netD_forward.12
$region0: #{netD_forward.12}
  #allocation0 [shape = 'u32[]', space=smem, size = 0x4, offset = 0x4, fixed_abs, tag = 'smem constant byte address 0x4 - core index']
  #allocation1 [shape = 'u32[144,128]{1,0:T(1,128)}', space=vmem, size = 0x12000, scoped, tag = 'internal scratch']
  %s0 = inlined_call_operand.vmem [shape: bf16[128,32], index: 0, kind: input, shape index: {}]
  %s1 = inlined_call_operand.vmem [shape: f32[1,32], index: 1, kind: input, shape index: {}]
  %s2 = inlined_call_operand.vmem [shape: f32[1,32], index: 2, kind: input, shape index: {}]
  %s3 = inlined_call_operand.vmem [shape: bf16[128,32], index: 3, kind: output, shape index: {}]
  %s4 = sld [smem:[#allocation0]]
  $region22: #{netD_forward.12} parent=0
    _
  %s6 = ssub.s32 1, %s4
  %s7 = scalar_select 0, %s6, %s4
  // Predicated region
  $region2: #{netD_forward.12} parent=0 // pred_check
    _
  $region3: #{netD_forward.12} parent=0 // pred_check_branch
    %9 = sbr.rel (0) target = $region5
  $region4: #{netD_forward.12} parent=0 // pred_region
    _
  $region5: #{netD_forward.12} parent=0 // pred_fallthru
    _
  // Predicated region
  $region6: #{netD_forward.12} parent=0 // pred_check
    _
  $region7: #{netD_forward.12} parent=0 // pred_check_branch
    %11 = sbr.rel (0) target = $region9
  $region8: #{netD_forward.12} parent=0 // pred_region
    _
  $region9: #{netD_forward.12} parent=0 // pred_fallthru
    _
  // Predicated region
  $region10: #{netD_forward.12} parent=0 // pred_check
    _
  $region11: #{netD_forward.12} parent=0 // pred_check_branch
    %13 = sbr.rel (0) target = $region13
  $region12: #{netD_forward.12} parent=0 // pred_region
    _
  $region13: #{netD_forward.12} parent=0 // pred_fallthru
    _
  %v14 = vld [vmem:[%s0] sm:$0xf]
  %v15 = vld [vmem:[%s0 + $0x4] sm:$0xf]
  %v16 = vld [vmem:[%s0 + $0x8] sm:$0xf]
  %v17 = vld [vmem:[%s0 + $0xc] sm:$0xf]
  %v18 = vld [vmem:[%s0 + $0x10] sm:$0xf]
  %v19 = vld [vmem:[%s0 + $0x14] sm:$0xf]
  %v20 = vld [vmem:[%s0 + $0x18] sm:$0xf]
  %v21 = vld [vmem:[%s0 + $0x1c] sm:$0xf]
  %v22 = vld [vmem:[%s0 + $0x20] sm:$0xf]
  %v23 = vld [vmem:[%s0 + $0x24] sm:$0xf]
  %v24 = vld [vmem:[%s0 + $0x28] sm:$0xf]
  %v25 = vld [vmem:[%s0 + $0x2c] sm:$0xf]
  %v26 = vld [vmem:[%s0 + $0x30] sm:$0xf]
  %v27 = vld [vmem:[%s0 + $0x34] sm:$0xf]
  %v28 = vld [vmem:[%s0 + $0x38] sm:$0xf]
  %v29 = vld [vmem:[%s0 + $0x3c] sm:$0xf]
  %v30 = vunpack.c.l.bf16 %v14
  %v31 = vunpack.c.l.bf16 %v15
  %v32 = vunpack.c.l.bf16 %v16
  %v33 = vunpack.c.l.bf16 %v17
  %v34 = vunpack.c.l.bf16 %v18
  %v35 = vunpack.c.l.bf16 %v19
  %v36 = vunpack.c.l.bf16 %v20
  %v37 = vunpack.c.l.bf16 %v21
  %v38 = vunpack.c.l.bf16 %v22
  %v39 = vunpack.c.l.bf16 %v23
  %v40 = vunpack.c.l.bf16 %v24
  %v41 = vunpack.c.l.bf16 %v25
  %v42 = vunpack.c.l.bf16 %v26
  %v43 = vunpack.c.l.bf16 %v27
  %v44 = vunpack.c.l.bf16 %v28
  %v45 = vunpack.c.l.bf16 %v29
  %v46 = vld [vmem:[%s1] sm:$0x1]
  %v48 = vlaneseq
  %v49 = vshrl.u32 %v48, 7
  %v50 = vsub.s32 0, %v49
  %v51 = vrot.slane %v46, %v50
  %v53 = vmul.f32 %v30, %v51
  %v54 = vmul.f32 %v31, %v51
  %v55 = vmul.f32 %v32, %v51
  %v56 = vmul.f32 %v33, %v51
  %v57 = vmul.f32 %v34, %v51
  %v58 = vmul.f32 %v35, %v51
  %v59 = vmul.f32 %v36, %v51
  %v60 = vmul.f32 %v37, %v51
  %v61 = vmul.f32 %v38, %v51
  %v62 = vmul.f32 %v39, %v51
  %v63 = vmul.f32 %v40, %v51
  %v64 = vmul.f32 %v41, %v51
  %v65 = vmul.f32 %v42, %v51
  %v66 = vmul.f32 %v43, %v51
  %v67 = vmul.f32 %v44, %v51
  %v68 = vmul.f32 %v45, %v51
  %v69 = vld [vmem:[%s2] sm:$0x1]
  %v71 = vlaneseq
  %v72 = vshrl.u32 %v71, 7
  %v73 = vsub.s32 0, %v72
  %v74 = vrot.slane %v69, %v73
  %v76 = vadd.f32 %v53, %v74
  %v77 = vadd.f32 %v54, %v74
  %v78 = vadd.f32 %v55, %v74
  %v79 = vadd.f32 %v56, %v74
  %v80 = vadd.f32 %v57, %v74
  %v81 = vadd.f32 %v58, %v74
  %v82 = vadd.f32 %v59, %v74
  %v83 = vadd.f32 %v60, %v74
  %v84 = vadd.f32 %v61, %v74
  %v85 = vadd.f32 %v62, %v74
  %v86 = vadd.f32 %v63, %v74
  %v87 = vadd.f32 %v64, %v74
  %v88 = vadd.f32 %v65, %v74
  %v89 = vadd.f32 %v66, %v74
  %v90 = vadd.f32 %v67, %v74
  %v91 = vadd.f32 %v68, %v74
  %vm92 = vcmp.gt.f32.partialorder %v76, 0.0
  %vm93 = vcmp.gt.f32.partialorder %v77, 0.0
  %vm94 = vcmp.gt.f32.partialorder %v78, 0.0
  %vm95 = vcmp.gt.f32.partialorder %v79, 0.0
  %vm96 = vcmp.gt.f32.partialorder %v80, 0.0
  %vm97 = vcmp.gt.f32.partialorder %v81, 0.0
  %vm98 = vcmp.gt.f32.partialorder %v82, 0.0
  %vm99 = vcmp.gt.f32.partialorder %v83, 0.0
  %vm100 = vcmp.gt.f32.partialorder %v84, 0.0
  %vm101 = vcmp.gt.f32.partialorder %v85, 0.0
  %vm102 = vcmp.gt.f32.partialorder %v86, 0.0
  %vm103 = vcmp.gt.f32.partialorder %v87, 0.0
  %vm104 = vcmp.gt.f32.partialorder %v88, 0.0
  %vm105 = vcmp.gt.f32.partialorder %v89, 0.0
  %vm106 = vcmp.gt.f32.partialorder %v90, 0.0
  %vm107 = vcmp.gt.f32.partialorder %v91, 0.0
  %v108 = vmul.f32 %v76, 0.2
  %v109 = vmul.f32 %v77, 0.2
  %v110 = vmul.f32 %v78, 0.2
  %v111 = vmul.f32 %v79, 0.2
  %v112 = vmul.f32 %v80, 0.2
  %v113 = vmul.f32 %v81, 0.2
  %v114 = vmul.f32 %v82, 0.2
  %v115 = vmul.f32 %v83, 0.2
  %v116 = vmul.f32 %v84, 0.2
  %v117 = vmul.f32 %v85, 0.2
  %v118 = vmul.f32 %v86, 0.2
  %v119 = vmul.f32 %v87, 0.2
  %v120 = vmul.f32 %v88, 0.2
  %v121 = vmul.f32 %v89, 0.2
  %v122 = vmul.f32 %v90, 0.2
  %v123 = vmul.f32 %v91, 0.2
  %v124 = vsel %vm92, %v76, %v108
  %v125 = vsel %vm93, %v77, %v109
  %v126 = vsel %vm94, %v78, %v110
  %v127 = vsel %vm95, %v79, %v111
  %v128 = vsel %vm96, %v80, %v112
  %v129 = vsel %vm97, %v81, %v113
  %v130 = vsel %vm98, %v82, %v114
  %v131 = vsel %vm99, %v83, %v115
  %v132 = vsel %vm100, %v84, %v116
  %v133 = vsel %vm101, %v85, %v117
  %v134 = vsel %vm102, %v86, %v118
  %v135 = vsel %vm103, %v87, %v119
  %v136 = vsel %vm104, %v88, %v120
  %v137 = vsel %vm105, %v89, %v121
  %v138 = vsel %vm106, %v90, %v122
  %v139 = vsel %vm107, %v91, %v123
  %v140 = vpack.c.bf16 %v125, %v124
  %v141 = vpack.c.bf16 %v127, %v126
  %v142 = vpack.c.bf16 %v129, %v128
  %v143 = vpack.c.bf16 %v131, %v130
  %v144 = vpack.c.bf16 %v133, %v132
  %v145 = vpack.c.bf16 %v135, %v134
  %v146 = vpack.c.bf16 %v137, %v136
  %v147 = vpack.c.bf16 %v139, %v138
  %v156 = vunpack.c.l.b16 %v140
  %v157 = vunpack.c.h.b16 %v140
  %v158 = vunpack.c.l.b16 %v141
  %v159 = vunpack.c.h.b16 %v141
  %v160 = vunpack.c.l.b16 %v142
  %v161 = vunpack.c.h.b16 %v142
  %v162 = vunpack.c.l.b16 %v143
  %v163 = vunpack.c.h.b16 %v143
  %v164 = vunpack.c.l.b16 %v144
  %v165 = vunpack.c.h.b16 %v144
  %v166 = vunpack.c.l.b16 %v145
  %v167 = vunpack.c.h.b16 %v145
  %v168 = vunpack.c.l.b16 %v146
  %v169 = vunpack.c.h.b16 %v146
  %v170 = vunpack.c.l.b16 %v147
  %v171 = vunpack.c.h.b16 %v147
  %v172 = vpack.c.b16 %v156, %v156
  %v173 = vpack.c.b16 %v157, %v157
  %v174 = vpack.c.b16 %v158, %v158
  %v175 = vpack.c.b16 %v159, %v159
  %v176 = vpack.c.b16 %v160, %v160
  %v177 = vpack.c.b16 %v161, %v161
  %v178 = vpack.c.b16 %v162, %v162
  %v179 = vpack.c.b16 %v163, %v163
  %v180 = vpack.c.b16 %v164, %v164
  %v181 = vpack.c.b16 %v165, %v165
  %v182 = vpack.c.b16 %v166, %v166
  %v183 = vpack.c.b16 %v167, %v167
  %v184 = vpack.c.b16 %v168, %v168
  %v185 = vpack.c.b16 %v169, %v169
  %v186 = vpack.c.b16 %v170, %v170
  %v187 = vpack.c.b16 %v171, %v171
  %vm204 = vcmask 257024
  %205 = vst.msk [vmem:[%s3] sm:$0xf] %vm204, %v172
  %206 = vst.msk [vmem:[%s3 + $0x4] sm:$0xf] %vm204, %v173
  %207 = vst.msk [vmem:[%s3 + $0x8] sm:$0xf] %vm204, %v174
  %208 = vst.msk [vmem:[%s3 + $0xc] sm:$0xf] %vm204, %v175
  %209 = vst.msk [vmem:[%s3 + $0x10] sm:$0xf] %vm204, %v176
  %210 = vst.msk [vmem:[%s3 + $0x14] sm:$0xf] %vm204, %v177
  %211 = vst.msk [vmem:[%s3 + $0x18] sm:$0xf] %vm204, %v178
  %212 = vst.msk [vmem:[%s3 + $0x1c] sm:$0xf] %vm204, %v179
  %213 = vst.msk [vmem:[%s3 + $0x20] sm:$0xf] %vm204, %v180
  %214 = vst.msk [vmem:[%s3 + $0x24] sm:$0xf] %vm204, %v181
  %215 = vst.msk [vmem:[%s3 + $0x28] sm:$0xf] %vm204, %v182
  %216 = vst.msk [vmem:[%s3 + $0x2c] sm:$0xf] %vm204, %v183
  %217 = vst.msk [vmem:[%s3 + $0x30] sm:$0xf] %vm204, %v184
  %218 = vst.msk [vmem:[%s3 + $0x34] sm:$0xf] %vm204, %v185
  %219 = vst.msk [vmem:[%s3 + $0x38] sm:$0xf] %vm204, %v186
  %220 = vst.msk [vmem:[%s3 + $0x3c] sm:$0xf] %vm204, %v187
  // Predicated region
  $region14: #{netD_forward.12} parent=0 // pred_check
    _
  $region15: #{netD_forward.12} parent=0 // pred_check_branch
    %222 = sbr.rel (0) target = $region17
  $region16: #{netD_forward.12} parent=0 // pred_region
    _
  $region17: #{netD_forward.12} parent=0 // pred_fallthru
    _
  // Predicated region
  $region18: #{netD_forward.12} parent=0 // pred_check
    _
  $region19: #{netD_forward.12} parent=0 // pred_check_branch
    %224 = sbr.rel (0) target = $region21
  $region20: #{netD_forward.12} parent=0 // pred_region
    _
  $region21: #{netD_forward.12} parent=0 // pred_fallthru
    _

// kernel: netD_forward.11
$region0: #{netD_forward.11}
  #allocation0 [shape = 'u32[]', space=smem, size = 0x4, offset = 0x4, fixed_abs, tag = 'smem constant byte address 0x4 - core index']
  #allocation1 [shape = 'u32[144,128]{1,0:T(1,128)}', space=vmem, size = 0x12000, scoped, tag = 'internal scratch']
  %s0 = inlined_call_operand.vmem [shape: bf16[128,256], index: 0, kind: input, shape index: {}]
  %s1 = inlined_call_operand.vmem [shape: bf16[256,32], index: 1, kind: input, shape index: {}]
  %s2 = inlined_call_operand.vmem [shape: bf16[128,32], index: 2, kind: output, shape index: {0}]
  %s3 = inlined_call_operand.vmem [shape: f32[1,2,32], index: 3, kind: output, shape index: {1}]
  %4 = xla_tuple %s2, %s3
  %s5 = sld [smem:[#allocation0]]
  $region26: #{netD_forward.11} parent=0
    _
  %s7 = ssub.s32 1, %s5
  %s8 = scalar_select 0, %s7, %s5
  // Predicated region
  $region2: #{netD_forward.11} parent=0 // pred_check
    _
  $region3: #{netD_forward.11} parent=0 // pred_check_branch
    %10 = sbr.rel (0) target = $region5
  $region4: #{netD_forward.11} parent=0 // pred_region
    _
  $region5: #{netD_forward.11} parent=0 // pred_fallthru
    _
  // Predicated region
  $region6: #{netD_forward.11} parent=0 // pred_check
    _
  $region7: #{netD_forward.11} parent=0 // pred_check_branch
    %12 = sbr.rel (0) target = $region9
  $region8: #{netD_forward.11} parent=0 // pred_region
    _
  $region9: #{netD_forward.11} parent=0 // pred_fallthru
    _
  %v14 = vld [vmem:[%s0] sm:$0xff]
  %v15 = vld [vmem:[%s0 + $0x8] sm:$0xff]
  %v16 = vld [vmem:[%s0 + $0x10] sm:$0xff]
  %v17 = vld [vmem:[%s0 + $0x18] sm:$0xff]
  %v18 = vld [vmem:[%s0 + $0x20] sm:$0xff]
  %v19 = vld [vmem:[%s0 + $0x28] sm:$0xff]
  %v20 = vld [vmem:[%s0 + $0x30] sm:$0xff]
  %v21 = vld [vmem:[%s0 + $0x38] sm:$0xff]
  %v22 = vld [vmem:[%s0 + $0x40] sm:$0xff]
  %v23 = vld [vmem:[%s0 + $0x48] sm:$0xff]
  %v24 = vld [vmem:[%s0 + $0x50] sm:$0xff]
  %v25 = vld [vmem:[%s0 + $0x58] sm:$0xff]
  %v26 = vld [vmem:[%s0 + $0x60] sm:$0xff]
  %v27 = vld [vmem:[%s0 + $0x68] sm:$0xff]
  %v28 = vld [vmem:[%s0 + $0x70] sm:$0xff]
  %v29 = vld [vmem:[%s0 + $0x78] sm:$0xff]
  %v30 = vld [vmem:[%s1] sm:$0xf]
  %v31 = vld [vmem:[%s1 + $0x4] sm:$0xf]
  %v32 = vld [vmem:[%s1 + $0x8] sm:$0xf]
  %v33 = vld [vmem:[%s1 + $0xc] sm:$0xf]
  %v34 = vld [vmem:[%s1 + $0x10] sm:$0xf]
  %v35 = vld [vmem:[%s1 + $0x14] sm:$0xf]
  %v36 = vld [vmem:[%s1 + $0x18] sm:$0xf]
  %v37 = vld [vmem:[%s1 + $0x1c] sm:$0xf]
  %v38 = vld [vmem:[%s1 + $0x20] sm:$0xf]
  %v39 = vld [vmem:[%s1 + $0x24] sm:$0xf]
  %v40 = vld [vmem:[%s1 + $0x28] sm:$0xf]
  %v41 = vld [vmem:[%s1 + $0x2c] sm:$0xf]
  %v42 = vld [vmem:[%s1 + $0x30] sm:$0xf]
  %v43 = vld [vmem:[%s1 + $0x34] sm:$0xf]
  %v44 = vld [vmem:[%s1 + $0x38] sm:$0xf]
  %v45 = vld [vmem:[%s1 + $0x3c] sm:$0xf]
  %v46 = vld [vmem:[%s1 + $0x40] sm:$0xf]
  %v47 = vld [vmem:[%s1 + $0x44] sm:$0xf]
  %v48 = vld [vmem:[%s1 + $0x48] sm:$0xf]
  %v49 = vld [vmem:[%s1 + $0x4c] sm:$0xf]
  %v50 = vld [vmem:[%s1 + $0x50] sm:$0xf]
  %v51 = vld [vmem:[%s1 + $0x54] sm:$0xf]
  %v52 = vld [vmem:[%s1 + $0x58] sm:$0xf]
  %v53 = vld [vmem:[%s1 + $0x5c] sm:$0xf]
  %v54 = vld [vmem:[%s1 + $0x60] sm:$0xf]
  %v55 = vld [vmem:[%s1 + $0x64] sm:$0xf]
  %v56 = vld [vmem:[%s1 + $0x68] sm:$0xf]
  %v57 = vld [vmem:[%s1 + $0x6c] sm:$0xf]
  %v58 = vld [vmem:[%s1 + $0x70] sm:$0xf]
  %v59 = vld [vmem:[%s1 + $0x74] sm:$0xf]
  %v60 = vld [vmem:[%s1 + $0x78] sm:$0xf]
  %v61 = vld [vmem:[%s1 + $0x7c] sm:$0xf]
  %v78 = vunpack.c.l.b16 %v14
  %v79 = vunpack.c.h.b16 %v14
  %v80 = vunpack.c.l.b16 %v15
  %v81 = vunpack.c.h.b16 %v15
  %v82 = vunpack.c.l.b16 %v16
  %v83 = vunpack.c.h.b16 %v16
  %v84 = vunpack.c.l.b16 %v17
  %v85 = vunpack.c.h.b16 %v17
  %v86 = vunpack.c.l.b16 %v18
  %v87 = vunpack.c.h.b16 %v18
  %v88 = vunpack.c.l.b16 %v19
  %v89 = vunpack.c.h.b16 %v19
  %v90 = vunpack.c.l.b16 %v20
  %v91 = vunpack.c.h.b16 %v20
  %v92 = vunpack.c.l.b16 %v21
  %v93 = vunpack.c.h.b16 %v21
  %v94 = vunpack.c.l.b16 %v22
  %v95 = vunpack.c.h.b16 %v22
  %v96 = vunpack.c.l.b16 %v23
  %v97 = vunpack.c.h.b16 %v23
  %v98 = vunpack.c.l.b16 %v24
  %v99 = vunpack.c.h.b16 %v24
  %v100 = vunpack.c.l.b16 %v25
  %v101 = vunpack.c.h.b16 %v25
  %v102 = vunpack.c.l.b16 %v26
  %v103 = vunpack.c.h.b16 %v26
  %v104 = vunpack.c.l.b16 %v27
  %v105 = vunpack.c.h.b16 %v27
  %v106 = vunpack.c.l.b16 %v28
  %v107 = vunpack.c.h.b16 %v28
  %v108 = vunpack.c.l.b16 %v29
  %v109 = vunpack.c.h.b16 %v29
  %v110 = vpack.c.b16 %v80, %v78
  %v111 = vpack.c.b16 %v81, %v79
  %v112 = vpack.c.b16 %v84, %v82
  %v113 = vpack.c.b16 %v85, %v83
  %v114 = vpack.c.b16 %v88, %v86
  %v115 = vpack.c.b16 %v89, %v87
  %v116 = vpack.c.b16 %v92, %v90
  %v117 = vpack.c.b16 %v93, %v91
  %v118 = vpack.c.b16 %v96, %v94
  %v119 = vpack.c.b16 %v97, %v95
  %v120 = vpack.c.b16 %v100, %v98
  %v121 = vpack.c.b16 %v101, %v99
  %v122 = vpack.c.b16 %v104, %v102
  %v123 = vpack.c.b16 %v105, %v103
  %v124 = vpack.c.b16 %v108, %v106
  %v125 = vpack.c.b16 %v109, %v107
  %v174 = vunpack.c.l.b16 %v30
  %v175 = vunpack.c.l.b16 %v31
  %v176 = vunpack.c.l.b16 %v32
  %v177 = vunpack.c.l.b16 %v33
  %v178 = vunpack.c.l.b16 %v34
  %v179 = vunpack.c.l.b16 %v35
  %v180 = vunpack.c.l.b16 %v36
  %v181 = vunpack.c.l.b16 %v37
  %v182 = vunpack.c.l.b16 %v38
  %v183 = vunpack.c.l.b16 %v39
  %v184 = vunpack.c.l.b16 %v40
  %v185 = vunpack.c.l.b16 %v41
  %v186 = vunpack.c.l.b16 %v42
  %v187 = vunpack.c.l.b16 %v43
  %v188 = vunpack.c.l.b16 %v44
  %v189 = vunpack.c.l.b16 %v45
  %v190 = vunpack.c.l.b16 %v46
  %v191 = vunpack.c.l.b16 %v47
  %v192 = vunpack.c.l.b16 %v48
  %v193 = vunpack.c.l.b16 %v49
  %v194 = vunpack.c.l.b16 %v50
  %v195 = vunpack.c.l.b16 %v51
  %v196 = vunpack.c.l.b16 %v52
  %v197 = vunpack.c.l.b16 %v53
  %v198 = vunpack.c.l.b16 %v54
  %v199 = vunpack.c.l.b16 %v55
  %v200 = vunpack.c.l.b16 %v56
  %v201 = vunpack.c.l.b16 %v57
  %v202 = vunpack.c.l.b16 %v58
  %v203 = vunpack.c.l.b16 %v59
  %v204 = vunpack.c.l.b16 %v60
  %v205 = vunpack.c.l.b16 %v61
  %v206 = vpack.c.b16 %v175, %v174
  %v207 = vpack.c.b16 %v177, %v176
  %v208 = vpack.c.b16 %v179, %v178
  %v209 = vpack.c.b16 %v181, %v180
  %v210 = vpack.c.b16 %v183, %v182
  %v211 = vpack.c.b16 %v185, %v184
  %v212 = vpack.c.b16 %v187, %v186
  %v213 = vpack.c.b16 %v189, %v188
  %v214 = vpack.c.b16 %v191, %v190
  %v215 = vpack.c.b16 %v193, %v192
  %v216 = vpack.c.b16 %v195, %v194
  %v217 = vpack.c.b16 %v197, %v196
  %v218 = vpack.c.b16 %v199, %v198
  %v219 = vpack.c.b16 %v201, %v200
  %v220 = vpack.c.b16 %v203, %v202
  %v221 = vpack.c.b16 %v205, %v204
  %238 = vmatprep.subr.bf16.mxu0 0
  %239 = vmatpush1.bf16.msra.mxu0 %v213
  %240 = vmatprep.subr.bf16.mxu0 0
  %241 = vmatpush1.bf16.msra.mxu0 %v212
  %242 = vmatprep.subr.bf16.mxu0 0
  %243 = vmatpush1.bf16.msra.mxu0 %v211
  %244 = vmatprep.subr.bf16.mxu0 0
  %245 = vmatpush1.bf16.msra.mxu0 %v210
  %246 = vmatprep.subr.bf16.mxu0 0
  %247 = vmatpush1.bf16.msra.mxu0 %v209
  %248 = vmatprep.subr.bf16.mxu0 0
  %249 = vmatpush1.bf16.msra.mxu0 %v208
  %250 = vmatprep.subr.bf16.mxu0 0
  %251 = vmatpush1.bf16.msra.mxu0 %v207
  %252 = vmatprep.subr.bf16.mxu0 0
  %253 = vmatpush1.bf16.msra.mxu0 %v206
  %254 = vmatprep.subr.bf16.mxu0 0
  %255 = vmatpush2.bf16.msra.mxu0 %v221
  %256 = vmatprep.subr.bf16.mxu0 0
  %257 = vmatpush2.bf16.msra.mxu0 %v220
  %258 = vmatprep.subr.bf16.mxu0 0
  %259 = vmatpush2.bf16.msra.mxu0 %v219
  %260 = vmatprep.subr.bf16.mxu0 0
  %261 = vmatpush2.bf16.msra.mxu0 %v218
  %262 = vmatprep.subr.bf16.mxu0 0
  %263 = vmatpush2.bf16.msra.mxu0 %v217
  %264 = vmatprep.subr.bf16.mxu0 0
  %265 = vmatpush2.bf16.msra.mxu0 %v216
  %266 = vmatprep.subr.bf16.mxu0 0
  %267 = vmatpush2.bf16.msra.mxu0 %v215
  %268 = vmatprep.subr.bf16.mxu0 0
  %269 = vmatpush2.bf16.msra.mxu0 %v214
  %270 = vmatprep.mubr.bf16.mxu0 %v111
  %271 = vmatmul.mubr.bf16.gmra.mxu0 %v110
  %v272 = vpop.f32.mrf.mxu0
  %v273 = vadd.f32 0.0, %v272
  %v274 = vpop.f32.mrf.mxu0
  %v275 = vpop.f32.mrf.mxu0
  %v276 = vadd.f32 0.0, %v275
  %v277 = vpop.f32.mrf.mxu0
  %278 = vmatprep.mubr.bf16.mxu0 %v113
  %279 = vmatmul.mubr.bf16.gmra.mxu0 %v112
  %v280 = vpop.f32.mrf.mxu0
  %v281 = vadd.f32 0.0, %v280
  %v282 = vpop.f32.mrf.mxu0
  %v283 = vpop.f32.mrf.mxu0
  %v284 = vadd.f32 0.0, %v283
  %v285 = vpop.f32.mrf.mxu0
  %286 = vmatprep.mubr.bf16.mxu0 %v115
  %287 = vmatmul.mubr.bf16.gmra.mxu0 %v114
  %v288 = vpop.f32.mrf.mxu0
  %v289 = vadd.f32 0.0, %v288
  %v290 = vpop.f32.mrf.mxu0
  %v291 = vpop.f32.mrf.mxu0
  %v292 = vadd.f32 0.0, %v291
  %v293 = vpop.f32.mrf.mxu0
  %294 = vmatprep.mubr.bf16.mxu0 %v117
  %295 = vmatmul.mubr.bf16.gmra.mxu0 %v116
  %v296 = vpop.f32.mrf.mxu0
  %v297 = vadd.f32 0.0, %v296
  %v298 = vpop.f32.mrf.mxu0
  %v299 = vpop.f32.mrf.mxu0
  %v300 = vadd.f32 0.0, %v299
  %v301 = vpop.f32.mrf.mxu0
  %302 = vmatprep.mubr.bf16.mxu0 %v119
  %303 = vmatmul.mubr.bf16.gmra.mxu0 %v118
  %v304 = vpop.f32.mrf.mxu0
  %v305 = vadd.f32 0.0, %v304
  %v306 = vpop.f32.mrf.mxu0
  %v307 = vpop.f32.mrf.mxu0
  %v308 = vadd.f32 0.0, %v307
  %v309 = vpop.f32.mrf.mxu0
  %310 = vmatprep.mubr.bf16.mxu0 %v121
  %311 = vmatmul.mubr.bf16.gmra.mxu0 %v120
  %v312 = vpop.f32.mrf.mxu0
  %v313 = vadd.f32 0.0, %v312
  %v314 = vpop.f32.mrf.mxu0
  %v315 = vpop.f32.mrf.mxu0
  %v316 = vadd.f32 0.0, %v315
  %v317 = vpop.f32.mrf.mxu0
  %318 = vmatprep.mubr.bf16.mxu0 %v123
  %319 = vmatmul.mubr.bf16.gmra.mxu0 %v122
  %v320 = vpop.f32.mrf.mxu0
  %v321 = vadd.f32 0.0, %v320
  %v322 = vpop.f32.mrf.mxu0
  %v323 = vpop.f32.mrf.mxu0
  %v324 = vadd.f32 0.0, %v323
  %v325 = vpop.f32.mrf.mxu0
  %326 = vmatprep.mubr.bf16.mxu0 %v125
  %327 = vmatmul.mubr.bf16.gmra.mxu0 %v124
  %v328 = vpop.f32.mrf.mxu0
  %v329 = vadd.f32 0.0, %v328
  %v330 = vpop.f32.mrf.mxu0
  %v331 = vpop.f32.mrf.mxu0
  %v332 = vadd.f32 0.0, %v331
  %v333 = vpop.f32.mrf.mxu0
  %334 = vdwg.mxu0
  %v335 = vpack.c.bf16 %v276, %v273
  %v336 = vpack.c.bf16 %v284, %v281
  %v337 = vpack.c.bf16 %v292, %v289
  %v338 = vpack.c.bf16 %v300, %v297
  %v339 = vpack.c.bf16 %v308, %v305
  %v340 = vpack.c.bf16 %v316, %v313
  %v341 = vpack.c.bf16 %v324, %v321
  %v342 = vpack.c.bf16 %v332, %v329
  %v351 = vunpack.c.l.b16 %v335
  %v352 = vunpack.c.h.b16 %v335
  %v353 = vunpack.c.l.b16 %v336
  %v354 = vunpack.c.h.b16 %v336
  %v355 = vunpack.c.l.b16 %v337
  %v356 = vunpack.c.h.b16 %v337
  %v357 = vunpack.c.l.b16 %v338
  %v358 = vunpack.c.h.b16 %v338
  %v359 = vunpack.c.l.b16 %v339
  %v360 = vunpack.c.h.b16 %v339
  %v361 = vunpack.c.l.b16 %v340
  %v362 = vunpack.c.h.b16 %v340
  %v363 = vunpack.c.l.b16 %v341
  %v364 = vunpack.c.h.b16 %v341
  %v365 = vunpack.c.l.b16 %v342
  %v366 = vunpack.c.h.b16 %v342
  %v367 = vpack.c.b16 %v351, %v351
  %v368 = vpack.c.b16 %v352, %v352
  %v369 = vpack.c.b16 %v353, %v353
  %v370 = vpack.c.b16 %v354, %v354
  %v371 = vpack.c.b16 %v355, %v355
  %v372 = vpack.c.b16 %v356, %v356
  %v373 = vpack.c.b16 %v357, %v357
  %v374 = vpack.c.b16 %v358, %v358
  %v375 = vpack.c.b16 %v359, %v359
  %v376 = vpack.c.b16 %v360, %v360
  %v377 = vpack.c.b16 %v361, %v361
  %v378 = vpack.c.b16 %v362, %v362
  %v379 = vpack.c.b16 %v363, %v363
  %v380 = vpack.c.b16 %v364, %v364
  %v381 = vpack.c.b16 %v365, %v365
  %v382 = vpack.c.b16 %v366, %v366
  %vm399 = vcmask 257024
  %400 = vst.msk [vmem:[%s2] sm:$0xf] %vm399, %v367
  %401 = vst.msk [vmem:[%s2 + $0x4] sm:$0xf] %vm399, %v368
  %402 = vst.msk [vmem:[%s2 + $0x8] sm:$0xf] %vm399, %v369
  %403 = vst.msk [vmem:[%s2 + $0xc] sm:$0xf] %vm399, %v370
  %404 = vst.msk [vmem:[%s2 + $0x10] sm:$0xf] %vm399, %v371
  %405 = vst.msk [vmem:[%s2 + $0x14] sm:$0xf] %vm399, %v372
  %406 = vst.msk [vmem:[%s2 + $0x18] sm:$0xf] %vm399, %v373
  %407 = vst.msk [vmem:[%s2 + $0x1c] sm:$0xf] %vm399, %v374
  %408 = vst.msk [vmem:[%s2 + $0x20] sm:$0xf] %vm399, %v375
  %409 = vst.msk [vmem:[%s2 + $0x24] sm:$0xf] %vm399, %v376
  %410 = vst.msk [vmem:[%s2 + $0x28] sm:$0xf] %vm399, %v377
  %411 = vst.msk [vmem:[%s2 + $0x2c] sm:$0xf] %vm399, %v378
  %412 = vst.msk [vmem:[%s2 + $0x30] sm:$0xf] %vm399, %v379
  %413 = vst.msk [vmem:[%s2 + $0x34] sm:$0xf] %vm399, %v380
  %414 = vst.msk [vmem:[%s2 + $0x38] sm:$0xf] %vm399, %v381
  %415 = vst.msk [vmem:[%s2 + $0x3c] sm:$0xf] %vm399, %v382
  %vm416 = vcmask 261120
  %v417 = vsel %vm416, %v273, 0.0
  %v418 = vsel %vm416, %v276, 0.0
  %v419 = vadd.f32 %v417, %v418
  %v420 = vsel %vm416, %v281, 0.0
  %v421 = vadd.f32 %v419, %v420
  %v422 = vsel %vm416, %v284, 0.0
  %v423 = vadd.f32 %v421, %v422
  %v424 = vsel %vm416, %v289, 0.0
  %v425 = vadd.f32 %v423, %v424
  %v426 = vsel %vm416, %v292, 0.0
  %v427 = vadd.f32 %v425, %v426
  %v428 = vsel %vm416, %v297, 0.0
  %v429 = vadd.f32 %v427, %v428
  %v430 = vsel %vm416, %v300, 0.0
  %v431 = vadd.f32 %v429, %v430
  %v432 = vsel %vm416, %v305, 0.0
  %v433 = vadd.f32 %v431, %v432
  %v434 = vsel %vm416, %v308, 0.0
  %v435 = vadd.f32 %v433, %v434
  %v436 = vsel %vm416, %v313, 0.0
  %v437 = vadd.f32 %v435, %v436
  %v438 = vsel %vm416, %v316, 0.0
  %v439 = vadd.f32 %v437, %v438
  %v440 = vsel %vm416, %v321, 0.0
  %v441 = vadd.f32 %v439, %v440
  %v442 = vsel %vm416, %v324, 0.0
  %v443 = vadd.f32 %v441, %v442
  %v444 = vsel %vm416, %v329, 0.0
  %v445 = vadd.f32 %v443, %v444
  %v446 = vsel %vm416, %v332, 0.0
  %v447 = vadd.f32 %v445, %v446
  %v448 = vrot.slane %v447, 4
  %v449 = vadd.f32 %v447, %v448
  %v450 = vrot.slane %v449, 2
  %v451 = vadd.f32 %v449, %v450
  %v452 = vrot.slane %v451, 1
  %v453 = vadd.f32 %v451, %v452
  %v454 = vmul.f32 %v273, %v273
  %v455 = vmul.f32 %v276, %v276
  %v456 = vmul.f32 %v281, %v281
  %v457 = vmul.f32 %v284, %v284
  %v458 = vmul.f32 %v289, %v289
  %v459 = vmul.f32 %v292, %v292
  %v460 = vmul.f32 %v297, %v297
  %v461 = vmul.f32 %v300, %v300
  %v462 = vmul.f32 %v305, %v305
  %v463 = vmul.f32 %v308, %v308
  %v464 = vmul.f32 %v313, %v313
  %v465 = vmul.f32 %v316, %v316
  %v466 = vmul.f32 %v321, %v321
  %v467 = vmul.f32 %v324, %v324
  %v468 = vmul.f32 %v329, %v329
  %v469 = vmul.f32 %v332, %v332
  %v470 = vsel %vm416, %v454, 0.0
  %v471 = vsel %vm416, %v455, 0.0
  %v472 = vadd.f32 %v470, %v471
  %v473 = vsel %vm416, %v456, 0.0
  %v474 = vadd.f32 %v472, %v473
  %v475 = vsel %vm416, %v457, 0.0
  %v476 = vadd.f32 %v474, %v475
  %v477 = vsel %vm416, %v458, 0.0
  %v478 = vadd.f32 %v476, %v477
  %v479 = vsel %vm416, %v459, 0.0
  %v480 = vadd.f32 %v478, %v479
  %v481 = vsel %vm416, %v460, 0.0
  %v482 = vadd.f32 %v480, %v481
  %v483 = vsel %vm416, %v461, 0.0
  %v484 = vadd.f32 %v482, %v483
  %v485 = vsel %vm416, %v462, 0.0
  %v486 = vadd.f32 %v484, %v485
  %v487 = vsel %vm416, %v463, 0.0
  %v488 = vadd.f32 %v486, %v487
  %v489 = vsel %vm416, %v464, 0.0
  %v490 = vadd.f32 %v488, %v489
  %v491 = vsel %vm416, %v465, 0.0
  %v492 = vadd.f32 %v490, %v491
  %v493 = vsel %vm416, %v466, 0.0
  %v494 = vadd.f32 %v492, %v493
  %v495 = vsel %vm416, %v467, 0.0
  %v496 = vadd.f32 %v494, %v495
  %v497 = vsel %vm416, %v468, 0.0
  %v498 = vadd.f32 %v496, %v497
  %v499 = vsel %vm416, %v469, 0.0
  %v500 = vadd.f32 %v498, %v499
  %v501 = vrot.slane %v500, 4
  %v502 = vadd.f32 %v500, %v501
  %v503 = vrot.slane %v502, 2
  %v504 = vadd.f32 %v502, %v503
  %v505 = vrot.slane %v504, 1
  %v506 = vadd.f32 %v504, %v505
  %vm507 = vcmask 1040384
  %v508 = vsel %vm507, %v453, %v506
  %vm509 = vcmask 254976
  %510 = vst.msk [vmem:[%s3] sm:$0x3] %vm509, %v508
  // Predicated region
  $region10: #{netD_forward.11} parent=0 // pred_check
    _
  $region11: #{netD_forward.11} parent=0 // pred_check_branch
    %512 = sbr.rel (0) target = $region13
  $region12: #{netD_forward.11} parent=0 // pred_region
    _
  $region13: #{netD_forward.11} parent=0 // pred_fallthru
    _
  // Predicated region
  $region14: #{netD_forward.11} parent=0 // pred_check
    _
  $region15: #{netD_forward.11} parent=0 // pred_check_branch
    %514 = sbr.rel (0) target = $region17
  $region16: #{netD_forward.11} parent=0 // pred_region
    _
  $region17: #{netD_forward.11} parent=0 // pred_fallthru
    _
  // Predicated region
  $region18: #{netD_forward.11} parent=0 // pred_check
    _
  $region19: #{netD_forward.11} parent=0 // pred_check_branch
    %516 = sbr.rel (0) target = $region21
  $region20: #{netD_forward.11} parent=0 // pred_region
    _
  $region21: #{netD_forward.11} parent=0 // pred_fallthru
    _
  // Predicated region
  $region22: #{netD_forward.11} parent=0 // pred_check
    _
  $region23: #{netD_forward.11} parent=0 // pred_check_branch
    %518 = sbr.rel (0) target = $region25
  $region24: #{netD_forward.11} parent=0 // pred_region
    _
  $region25: #{netD_forward.11} parent=0 // pred_fallthru
    _

// kernel: netD_forward.13
$region0: #{netD_forward.13}
  #allocation0 [shape = 'u32[]', space=smem, size = 0x4, offset = 0x4, fixed_abs, tag = 'smem constant byte address 0x4 - core index']
  #allocation1 [shape = 'u32[144,128]{1,0:T(1,128)}', space=vmem, size = 0x12000, scoped, tag = 'internal scratch']
  %s0 = inlined_call_operand.vmem [shape: bf16[32,512], index: 0, kind: input, shape index: {}]
  %s1 = inlined_call_operand.vmem [shape: bf16[512,64], index: 1, kind: input, shape index: {}]
  %s2 = inlined_call_operand.vmem [shape: bf16[32,64], index: 2, kind: output, shape index: {0}]
  %s3 = inlined_call_operand.vmem [shape: f32[1,2,64], index: 3, kind: output, shape index: {1}]
  %4 = xla_tuple %s2, %s3
  %s5 = sld [smem:[#allocation0]]
  $region26: #{netD_forward.13} parent=0
    _
  %s7 = ssub.s32 1, %s5
  %s8 = scalar_select 0, %s7, %s5
  // Predicated region
  $region2: #{netD_forward.13} parent=0 // pred_check
    _
  $region3: #{netD_forward.13} parent=0 // pred_check_branch
    %10 = sbr.rel (0) target = $region5
  $region4: #{netD_forward.13} parent=0 // pred_region
    _
  $region5: #{netD_forward.13} parent=0 // pred_fallthru
    _
  // Predicated region
  $region6: #{netD_forward.13} parent=0 // pred_check
    _
  $region7: #{netD_forward.13} parent=0 // pred_check_branch
    %12 = sbr.rel (0) target = $region9
  $region8: #{netD_forward.13} parent=0 // pred_region
    _
  $region9: #{netD_forward.13} parent=0 // pred_fallthru
    _
  %v14 = vld [vmem:[%s0] sm:$0xff]
  %v15 = vld [vmem:[%s0 + $0x8] sm:$0xff]
  %v16 = vld [vmem:[%s0 + $0x10] sm:$0xff]
  %v17 = vld [vmem:[%s0 + $0x18] sm:$0xff]
  %v18 = vld [vmem:[%s0 + $0x20] sm:$0xff]
  %v19 = vld [vmem:[%s0 + $0x28] sm:$0xff]
  %v20 = vld [vmem:[%s0 + $0x30] sm:$0xff]
  %v21 = vld [vmem:[%s0 + $0x38] sm:$0xff]
  %v22 = vld [vmem:[%s1] sm:$0xf]
  %v23 = vld [vmem:[%s1 + $0x4] sm:$0xf]
  %v24 = vld [vmem:[%s1 + $0x8] sm:$0xf]
  %v25 = vld [vmem:[%s1 + $0xc] sm:$0xf]
  %v26 = vld [vmem:[%s1 + $0x10] sm:$0xf]
  %v27 = vld [vmem:[%s1 + $0x14] sm:$0xf]
  %v28 = vld [vmem:[%s1 + $0x18] sm:$0xf]
  %v29 = vld [vmem:[%s1 + $0x1c] sm:$0xf]
  %v30 = vld [vmem:[%s1 + $0x20] sm:$0xf]
  %v31 = vld [vmem:[%s1 + $0x24] sm:$0xf]
  %v32 = vld [vmem:[%s1 + $0x28] sm:$0xf]
  %v33 = vld [vmem:[%s1 + $0x2c] sm:$0xf]
  %v34 = vld [vmem:[%s1 + $0x30] sm:$0xf]
  %v35 = vld [vmem:[%s1 + $0x34] sm:$0xf]
  %v36 = vld [vmem:[%s1 + $0x38] sm:$0xf]
  %v37 = vld [vmem:[%s1 + $0x3c] sm:$0xf]
  %v38 = vld [vmem:[%s1 + $0x40] sm:$0xf]
  %v39 = vld [vmem:[%s1 + $0x44] sm:$0xf]
  %v40 = vld [vmem:[%s1 + $0x48] sm:$0xf]
  %v41 = vld [vmem:[%s1 + $0x4c] sm:$0xf]
  %v42 = vld [vmem:[%s1 + $0x50] sm:$0xf]
  %v43 = vld [vmem:[%s1 + $0x54] sm:$0xf]
  %v44 = vld [vmem:[%s1 + $0x58] sm:$0xf]
  %v45 = vld [vmem:[%s1 + $0x5c] sm:$0xf]
  %v46 = vld [vmem:[%s1 + $0x60] sm:$0xf]
  %v47 = vld [vmem:[%s1 + $0x64] sm:$0xf]
  %v48 = vld [vmem:[%s1 + $0x68] sm:$0xf]
  %v49 = vld [vmem:[%s1 + $0x6c] sm:$0xf]
  %v50 = vld [vmem:[%s1 + $0x70] sm:$0xf]
  %v51 = vld [vmem:[%s1 + $0x74] sm:$0xf]
  %v52 = vld [vmem:[%s1 + $0x78] sm:$0xf]
  %v53 = vld [vmem:[%s1 + $0x7c] sm:$0xf]
  %v54 = vld [vmem:[%s1 + $0x80] sm:$0xf]
  %v55 = vld [vmem:[%s1 + $0x84] sm:$0xf]
  %v56 = vld [vmem:[%s1 + $0x88] sm:$0xf]
  %v57 = vld [vmem:[%s1 + $0x8c] sm:$0xf]
  %v58 = vld [vmem:[%s1 + $0x90] sm:$0xf]
  %v59 = vld [vmem:[%s1 + $0x94] sm:$0xf]
  %v60 = vld [vmem:[%s1 + $0x98] sm:$0xf]
  %v61 = vld [vmem:[%s1 + $0x9c] sm:$0xf]
  %v62 = vld [vmem:[%s1 + $0xa0] sm:$0xf]
  %v63 = vld [vmem:[%s1 + $0xa4] sm:$0xf]
  %v64 = vld [vmem:[%s1 + $0xa8] sm:$0xf]
  %v65 = vld [vmem:[%s1 + $0xac] sm:$0xf]
  %v66 = vld [vmem:[%s1 + $0xb0] sm:$0xf]
  %v67 = vld [vmem:[%s1 + $0xb4] sm:$0xf]
  %v68 = vld [vmem:[%s1 + $0xb8] sm:$0xf]
  %v69 = vld [vmem:[%s1 + $0xbc] sm:$0xf]
  %v70 = vld [vmem:[%s1 + $0xc0] sm:$0xf]
  %v71 = vld [vmem:[%s1 + $0xc4] sm:$0xf]
  %v72 = vld [vmem:[%s1 + $0xc8] sm:$0xf]
  %v73 = vld [vmem:[%s1 + $0xcc] sm:$0xf]
  %v74 = vld [vmem:[%s1 + $0xd0] sm:$0xf]
  %v75 = vld [vmem:[%s1 + $0xd4] sm:$0xf]
  %v76 = vld [vmem:[%s1 + $0xd8] sm:$0xf]
  %v77 = vld [vmem:[%s1 + $0xdc] sm:$0xf]
  %v78 = vld [vmem:[%s1 + $0xe0] sm:$0xf]
  %v79 = vld [vmem:[%s1 + $0xe4] sm:$0xf]
  %v80 = vld [vmem:[%s1 + $0xe8] sm:$0xf]
  %v81 = vld [vmem:[%s1 + $0xec] sm:$0xf]
  %v82 = vld [vmem:[%s1 + $0xf0] sm:$0xf]
  %v83 = vld [vmem:[%s1 + $0xf4] sm:$0xf]
  %v84 = vld [vmem:[%s1 + $0xf8] sm:$0xf]
  %v85 = vld [vmem:[%s1 + $0xfc] sm:$0xf]
  %v94 = vunpack.c.l.b16 %v14
  %v95 = vunpack.c.h.b16 %v14
  %v96 = vunpack.c.l.b16 %v15
  %v97 = vunpack.c.h.b16 %v15
  %v98 = vunpack.c.l.b16 %v16
  %v99 = vunpack.c.h.b16 %v16
  %v100 = vunpack.c.l.b16 %v17
  %v101 = vunpack.c.h.b16 %v17
  %v102 = vunpack.c.l.b16 %v18
  %v103 = vunpack.c.h.b16 %v18
  %v104 = vunpack.c.l.b16 %v19
  %v105 = vunpack.c.h.b16 %v19
  %v106 = vunpack.c.l.b16 %v20
  %v107 = vunpack.c.h.b16 %v20
  %v108 = vunpack.c.l.b16 %v21
  %v109 = vunpack.c.h.b16 %v21
  %v110 = vpack.c.b16 %v98, %v94
  %v111 = vpack.c.b16 %v99, %v95
  %v112 = vpack.c.b16 %v100, %v96
  %v113 = vpack.c.b16 %v101, %v97
  %v114 = vpack.c.b16 %v106, %v102
  %v115 = vpack.c.b16 %v107, %v103
  %v116 = vpack.c.b16 %v108, %v104
  %v117 = vpack.c.b16 %v109, %v105
  %v190 = vunpack.c.l.b16 %v22
  %v191 = vunpack.c.l.b16 %v23
  %v192 = vunpack.c.l.b16 %v24
  %v193 = vunpack.c.l.b16 %v25
  %v194 = vunpack.c.l.b16 %v26
  %v195 = vunpack.c.l.b16 %v27
  %v196 = vunpack.c.l.b16 %v28
  %v197 = vunpack.c.l.b16 %v29
  %v198 = vunpack.c.l.b16 %v30
  %v199 = vunpack.c.l.b16 %v31
  %v200 = vunpack.c.l.b16 %v32
  %v201 = vunpack.c.l.b16 %v33
  %v202 = vunpack.c.l.b16 %v34
  %v203 = vunpack.c.l.b16 %v35
  %v204 = vunpack.c.l.b16 %v36
  %v205 = vunpack.c.l.b16 %v37
  %v206 = vunpack.c.l.b16 %v38
  %v207 = vunpack.c.l.b16 %v39
  %v208 = vunpack.c.l.b16 %v40
  %v209 = vunpack.c.l.b16 %v41
  %v210 = vunpack.c.l.b16 %v42
  %v211 = vunpack.c.l.b16 %v43
  %v212 = vunpack.c.l.b16 %v44
  %v213 = vunpack.c.l.b16 %v45
  %v214 = vunpack.c.l.b16 %v46
  %v215 = vunpack.c.l.b16 %v47
  %v216 = vunpack.c.l.b16 %v48
  %v217 = vunpack.c.l.b16 %v49
  %v218 = vunpack.c.l.b16 %v50
  %v219 = vunpack.c.l.b16 %v51
  %v220 = vunpack.c.l.b16 %v52
  %v221 = vunpack.c.l.b16 %v53
  %v222 = vunpack.c.l.b16 %v54
  %v223 = vunpack.c.l.b16 %v55
  %v224 = vunpack.c.l.b16 %v56
  %v225 = vunpack.c.l.b16 %v57
  %v226 = vunpack.c.l.b16 %v58
  %v227 = vunpack.c.l.b16 %v59
  %v228 = vunpack.c.l.b16 %v60
  %v229 = vunpack.c.l.b16 %v61
  %v230 = vunpack.c.l.b16 %v62
  %v231 = vunpack.c.l.b16 %v63
  %v232 = vunpack.c.l.b16 %v64
  %v233 = vunpack.c.l.b16 %v65
  %v234 = vunpack.c.l.b16 %v66
  %v235 = vunpack.c.l.b16 %v67
  %v236 = vunpack.c.l.b16 %v68
  %v237 = vunpack.c.l.b16 %v69
  %v238 = vunpack.c.l.b16 %v70
  %v239 = vunpack.c.l.b16 %v71
  %v240 = vunpack.c.l.b16 %v72
  %v241 = vunpack.c.l.b16 %v73
  %v242 = vunpack.c.l.b16 %v74
  %v243 = vunpack.c.l.b16 %v75
  %v244 = vunpack.c.l.b16 %v76
  %v245 = vunpack.c.l.b16 %v77
  %v246 = vunpack.c.l.b16 %v78
  %v247 = vunpack.c.l.b16 %v79
  %v248 = vunpack.c.l.b16 %v80
  %v249 = vunpack.c.l.b16 %v81
  %v250 = vunpack.c.l.b16 %v82
  %v251 = vunpack.c.l.b16 %v83
  %v252 = vunpack.c.l.b16 %v84
  %v253 = vunpack.c.l.b16 %v85
  %v254 = vpack.c.b16 %v191, %v190
  %v255 = vpack.c.b16 %v193, %v192
  %v256 = vpack.c.b16 %v195, %v194
  %v257 = vpack.c.b16 %v197, %v196
  %v258 = vpack.c.b16 %v199, %v198
  %v259 = vpack.c.b16 %v201, %v200
  %v260 = vpack.c.b16 %v203, %v202
  %v261 = vpack.c.b16 %v205, %v204
  %v262 = vpack.c.b16 %v207, %v206
  %v263 = vpack.c.b16 %v209, %v208
  %v264 = vpack.c.b16 %v211, %v210
  %v265 = vpack.c.b16 %v213, %v212
  %v266 = vpack.c.b16 %v215, %v214
  %v267 = vpack.c.b16 %v217, %v216
  %v268 = vpack.c.b16 %v219, %v218
  %v269 = vpack.c.b16 %v221, %v220
  %v270 = vpack.c.b16 %v223, %v222
  %v271 = vpack.c.b16 %v225, %v224
  %v272 = vpack.c.b16 %v227, %v226
  %v273 = vpack.c.b16 %v229, %v228
  %v274 = vpack.c.b16 %v231, %v230
  %v275 = vpack.c.b16 %v233, %v232
  %v276 = vpack.c.b16 %v235, %v234
  %v277 = vpack.c.b16 %v237, %v236
  %v278 = vpack.c.b16 %v239, %v238
  %v279 = vpack.c.b16 %v241, %v240
  %v280 = vpack.c.b16 %v243, %v242
  %v281 = vpack.c.b16 %v245, %v244
  %v282 = vpack.c.b16 %v247, %v246
  %v283 = vpack.c.b16 %v249, %v248
  %v284 = vpack.c.b16 %v251, %v250
  %v285 = vpack.c.b16 %v253, %v252
  %318 = vmatprep.subr.bf16.mxu0 0
  %319 = vmatpush1.bf16.msra.mxu0 %v261
  %320 = vmatprep.subr.bf16.mxu0 0
  %321 = vmatpush1.bf16.msra.mxu0 %v260
  %322 = vmatprep.subr.bf16.mxu0 0
  %323 = vmatpush1.bf16.msra.mxu0 %v259
  %324 = vmatprep.subr.bf16.mxu0 0
  %325 = vmatpush1.bf16.msra.mxu0 %v258
  %326 = vmatprep.subr.bf16.mxu0 0
  %327 = vmatpush1.bf16.msra.mxu0 %v257
  %328 = vmatprep.subr.bf16.mxu0 0
  %329 = vmatpush1.bf16.msra.mxu0 %v256
  %330 = vmatprep.subr.bf16.mxu0 0
  %331 = vmatpush1.bf16.msra.mxu0 %v255
  %332 = vmatprep.subr.bf16.mxu0 0
  %333 = vmatpush1.bf16.msra.mxu0 %v254
  %334 = vmatprep.subr.bf16.mxu0 0
  %335 = vmatpush2.bf16.msra.mxu0 %v269
  %336 = vmatprep.subr.bf16.mxu0 0
  %337 = vmatpush2.bf16.msra.mxu0 %v268
  %338 = vmatprep.subr.bf16.mxu0 0
  %339 = vmatpush2.bf16.msra.mxu0 %v267
  %340 = vmatprep.subr.bf16.mxu0 0
  %341 = vmatpush2.bf16.msra.mxu0 %v266
  %342 = vmatprep.subr.bf16.mxu0 0
  %343 = vmatpush2.bf16.msra.mxu0 %v265
  %344 = vmatprep.subr.bf16.mxu0 0
  %345 = vmatpush2.bf16.msra.mxu0 %v264
  %346 = vmatprep.subr.bf16.mxu0 0
  %347 = vmatpush2.bf16.msra.mxu0 %v263
  %348 = vmatprep.subr.bf16.mxu0 0
  %349 = vmatpush2.bf16.msra.mxu0 %v262
  %350 = vmatprep.mubr.bf16.mxu0 %v111
  %351 = vmatmul.mubr.bf16.gmra.mxu0 %v110
  %v352 = vpop.f32.mrf.mxu0
  %v353 = vadd.f32 0.0, %v352
  %v354 = vpop.f32.mrf.mxu0
  %v355 = vpop.f32.mrf.mxu0
  %v356 = vadd.f32 0.0, %v355
  %v357 = vpop.f32.mrf.mxu0
  %358 = vmatprep.mubr.bf16.mxu0 %v115
  %359 = vmatmul.mubr.bf16.gmra.mxu0 %v114
  %v360 = vpop.f32.mrf.mxu0
  %v361 = vadd.f32 0.0, %v360
  %v362 = vpop.f32.mrf.mxu0
  %v363 = vpop.f32.mrf.mxu0
  %v364 = vadd.f32 0.0, %v363
  %v365 = vpop.f32.mrf.mxu0
  %366 = vdwg.mxu0
  %367 = vmatprep.subr.bf16.mxu0 0
  %368 = vmatpush1.bf16.msra.mxu0 %v277
  %369 = vmatprep.subr.bf16.mxu0 0
  %370 = vmatpush1.bf16.msra.mxu0 %v276
  %371 = vmatprep.subr.bf16.mxu0 0
  %372 = vmatpush1.bf16.msra.mxu0 %v275
  %373 = vmatprep.subr.bf16.mxu0 0
  %374 = vmatpush1.bf16.msra.mxu0 %v274
  %375 = vmatprep.subr.bf16.mxu0 0
  %376 = vmatpush1.bf16.msra.mxu0 %v273
  %377 = vmatprep.subr.bf16.mxu0 0
  %378 = vmatpush1.bf16.msra.mxu0 %v272
  %379 = vmatprep.subr.bf16.mxu0 0
  %380 = vmatpush1.bf16.msra.mxu0 %v271
  %381 = vmatprep.subr.bf16.mxu0 0
  %382 = vmatpush1.bf16.msra.mxu0 %v270
  %383 = vmatprep.subr.bf16.mxu0 0
  %384 = vmatpush2.bf16.msra.mxu0 %v285
  %385 = vmatprep.subr.bf16.mxu0 0
  %386 = vmatpush2.bf16.msra.mxu0 %v284
  %387 = vmatprep.subr.bf16.mxu0 0
  %388 = vmatpush2.bf16.msra.mxu0 %v283
  %389 = vmatprep.subr.bf16.mxu0 0
  %390 = vmatpush2.bf16.msra.mxu0 %v282
  %391 = vmatprep.subr.bf16.mxu0 0
  %392 = vmatpush2.bf16.msra.mxu0 %v281
  %393 = vmatprep.subr.bf16.mxu0 0
  %394 = vmatpush2.bf16.msra.mxu0 %v280
  %395 = vmatprep.subr.bf16.mxu0 0
  %396 = vmatpush2.bf16.msra.mxu0 %v279
  %397 = vmatprep.subr.bf16.mxu0 0
  %398 = vmatpush2.bf16.msra.mxu0 %v278
  %399 = vmatprep.mubr.bf16.mxu0 %v113
  %400 = vmatmul.mubr.bf16.gmra.mxu0 %v112
  %v401 = vpop.f32.mrf.mxu0
  %v402 = vadd.f32 %v353, %v401
  %v403 = vpop.f32.mrf.mxu0
  %v404 = vpop.f32.mrf.mxu0
  %v405 = vadd.f32 %v356, %v404
  %v406 = vpop.f32.mrf.mxu0
  %407 = vmatprep.mubr.bf16.mxu0 %v117
  %408 = vmatmul.mubr.bf16.gmra.mxu0 %v116
  %v409 = vpop.f32.mrf.mxu0
  %v410 = vadd.f32 %v361, %v409
  %v411 = vpop.f32.mrf.mxu0
  %v412 = vpop.f32.mrf.mxu0
  %v413 = vadd.f32 %v364, %v412
  %v414 = vpop.f32.mrf.mxu0
  %415 = vdwg.mxu0
  %v416 = vpack.c.bf16 %v405, %v402
  %v417 = vpack.c.bf16 %v413, %v410
  %v420 = vunpack.c.l.b16 %v416
  %v421 = vunpack.c.h.b16 %v416
  %v422 = vunpack.c.l.b16 %v417
  %v423 = vunpack.c.h.b16 %v417
  %v424 = vpack.c.b16 %v420, %v420
  %v425 = vpack.c.b16 %v421, %v421
  %v426 = vpack.c.b16 %v422, %v422
  %v427 = vpack.c.b16 %v423, %v423
  %vm432 = vcmask 519168
  %433 = vst.msk [vmem:[%s2] sm:$0xf] %vm432, %v424
  %434 = vst.msk [vmem:[%s2 + $0x4] sm:$0xf] %vm432, %v425
  %435 = vst.msk [vmem:[%s2 + $0x8] sm:$0xf] %vm432, %v426
  %436 = vst.msk [vmem:[%s2 + $0xc] sm:$0xf] %vm432, %v427
  %vm437 = vcmask 523264
  %v438 = vsel %vm437, %v402, 0.0
  %v439 = vsel %vm437, %v405, 0.0
  %v440 = vadd.f32 %v438, %v439
  %v441 = vsel %vm437, %v410, 0.0
  %v442 = vadd.f32 %v440, %v441
  %v443 = vsel %vm437, %v413, 0.0
  %v444 = vadd.f32 %v442, %v443
  %v445 = vrot.slane %v444, 4
  %v446 = vadd.f32 %v444, %v445
  %v447 = vrot.slane %v446, 2
  %v448 = vadd.f32 %v446, %v447
  %v449 = vrot.slane %v448, 1
  %v450 = vadd.f32 %v448, %v449
  %v451 = vmul.f32 %v402, %v402
  %v452 = vmul.f32 %v405, %v405
  %v453 = vmul.f32 %v410, %v410
  %v454 = vmul.f32 %v413, %v413
  %v455 = vsel %vm437, %v451, 0.0
  %v456 = vsel %vm437, %v452, 0.0
  %v457 = vadd.f32 %v455, %v456
  %v458 = vsel %vm437, %v453, 0.0
  %v459 = vadd.f32 %v457, %v458
  %v460 = vsel %vm437, %v454, 0.0
  %v461 = vadd.f32 %v459, %v460
  %v462 = vrot.slane %v461, 4
  %v463 = vadd.f32 %v461, %v462
  %v464 = vrot.slane %v463, 2
  %v465 = vadd.f32 %v463, %v464
  %v466 = vrot.slane %v465, 1
  %v467 = vadd.f32 %v465, %v466
  %vm468 = vcmask 1040384
  %v469 = vsel %vm468, %v450, %v467
  %vm470 = vcmask 517120
  %471 = vst.msk [vmem:[%s3] sm:$0x3] %vm470, %v469
  // Predicated region
  $region10: #{netD_forward.13} parent=0 // pred_check
    _
  $region11: #{netD_forward.13} parent=0 // pred_check_branch
    %473 = sbr.rel (0) target = $region13
  $region12: #{netD_forward.13} parent=0 // pred_region
    _
  $region13: #{netD_forward.13} parent=0 // pred_fallthru
    _
  // Predicated region
  $region14: #{netD_forward.13} parent=0 // pred_check
    _
  $region15: #{netD_forward.13} parent=0 // pred_check_branch
    %475 = sbr.rel (0) target = $region17
  $region16: #{netD_forward.13} parent=0 // pred_region
    _
  $region17: #{netD_forward.13} parent=0 // pred_fallthru
    _
  // Predicated region
  $region18: #{netD_forward.13} parent=0 // pred_check
    _
  $region19: #{netD_forward.13} parent=0 // pred_check_branch
    %477 = sbr.rel (0) target = $region21
  $region20: #{netD_forward.13} parent=0 // pred_region
    _
  $region21: #{netD_forward.13} parent=0 // pred_fallthru
    _
  // Predicated region
  $region22: #{netD_forward.13} parent=0 // pred_check
    _
  $region23: #{netD_forward.13} parent=0 // pred_check_branch
    %479 = sbr.rel (0) target = $region25
  $region24: #{netD_forward.13} parent=0 // pred_region
    _
  $region25: #{netD_forward.13} parent=0 // pred_fallthru
    _

// kernel: netD_forward.14
$region0: #{netD_forward.14}
  #allocation0 [shape = 'u32[]', space=smem, size = 0x4, offset = 0x4, fixed_abs, tag = 'smem constant byte address 0x4 - core index']
  #allocation1 [shape = 'u32[144,128]{1,0:T(1,128)}', space=vmem, size = 0x12000, scoped, tag = 'internal scratch']
  %s0 = inlined_call_operand.vmem [shape: bf16[32,64], index: 0, kind: input, shape index: {}]
  %s1 = inlined_call_operand.vmem [shape: f32[1,64], index: 1, kind: input, shape index: {}]
  %s2 = inlined_call_operand.vmem [shape: f32[1,64], index: 2, kind: input, shape index: {}]
  %s3 = inlined_call_operand.vmem [shape: bf16[32,64], index: 3, kind: output, shape index: {}]
  %s4 = sld [smem:[#allocation0]]
  $region22: #{netD_forward.14} parent=0
    _
  %s6 = ssub.s32 1, %s4
  %s7 = scalar_select 0, %s6, %s4
  // Predicated region
  $region2: #{netD_forward.14} parent=0 // pred_check
    _
  $region3: #{netD_forward.14} parent=0 // pred_check_branch
    %9 = sbr.rel (0) target = $region5
  $region4: #{netD_forward.14} parent=0 // pred_region
    _
  $region5: #{netD_forward.14} parent=0 // pred_fallthru
    _
  // Predicated region
  $region6: #{netD_forward.14} parent=0 // pred_check
    _
  $region7: #{netD_forward.14} parent=0 // pred_check_branch
    %11 = sbr.rel (0) target = $region9
  $region8: #{netD_forward.14} parent=0 // pred_region
    _
  $region9: #{netD_forward.14} parent=0 // pred_fallthru
    _
  // Predicated region
  $region10: #{netD_forward.14} parent=0 // pred_check
    _
  $region11: #{netD_forward.14} parent=0 // pred_check_branch
    %13 = sbr.rel (0) target = $region13
  $region12: #{netD_forward.14} parent=0 // pred_region
    _
  $region13: #{netD_forward.14} parent=0 // pred_fallthru
    _
  %v14 = vld [vmem:[%s0] sm:$0xf]
  %v15 = vld [vmem:[%s0 + $0x4] sm:$0xf]
  %v16 = vld [vmem:[%s0 + $0x8] sm:$0xf]
  %v17 = vld [vmem:[%s0 + $0xc] sm:$0xf]
  %v18 = vunpack.c.l.bf16 %v14
  %v19 = vunpack.c.l.bf16 %v15
  %v20 = vunpack.c.l.bf16 %v16
  %v21 = vunpack.c.l.bf16 %v17
  %v22 = vld [vmem:[%s1] sm:$0x1]
  %v24 = vlaneseq
  %v25 = vshrl.u32 %v24, 7
  %v26 = vsub.s32 0, %v25
  %v27 = vrot.slane %v22, %v26
  %v29 = vmul.f32 %v18, %v27
  %v30 = vmul.f32 %v19, %v27
  %v31 = vmul.f32 %v20, %v27
  %v32 = vmul.f32 %v21, %v27
  %v33 = vld [vmem:[%s2] sm:$0x1]
  %v35 = vlaneseq
  %v36 = vshrl.u32 %v35, 7
  %v37 = vsub.s32 0, %v36
  %v38 = vrot.slane %v33, %v37
  %v40 = vadd.f32 %v29, %v38
  %v41 = vadd.f32 %v30, %v38
  %v42 = vadd.f32 %v31, %v38
  %v43 = vadd.f32 %v32, %v38
  %vm44 = vcmp.gt.f32.partialorder %v40, 0.0
  %vm45 = vcmp.gt.f32.partialorder %v41, 0.0
  %vm46 = vcmp.gt.f32.partialorder %v42, 0.0
  %vm47 = vcmp.gt.f32.partialorder %v43, 0.0
  %v48 = vmul.f32 %v40, 0.2
  %v49 = vmul.f32 %v41, 0.2
  %v50 = vmul.f32 %v42, 0.2
  %v51 = vmul.f32 %v43, 0.2
  %v52 = vsel %vm44, %v40, %v48
  %v53 = vsel %vm45, %v41, %v49
  %v54 = vsel %vm46, %v42, %v50
  %v55 = vsel %vm47, %v43, %v51
  %v56 = vpack.c.bf16 %v53, %v52
  %v57 = vpack.c.bf16 %v55, %v54
  %v60 = vunpack.c.l.b16 %v56
  %v61 = vunpack.c.h.b16 %v56
  %v62 = vunpack.c.l.b16 %v57
  %v63 = vunpack.c.h.b16 %v57
  %v64 = vpack.c.b16 %v60, %v60
  %v65 = vpack.c.b16 %v61, %v61
  %v66 = vpack.c.b16 %v62, %v62
  %v67 = vpack.c.b16 %v63, %v63
  %vm72 = vcmask 519168
  %73 = vst.msk [vmem:[%s3] sm:$0xf] %vm72, %v64
  %74 = vst.msk [vmem:[%s3 + $0x4] sm:$0xf] %vm72, %v65
  %75 = vst.msk [vmem:[%s3 + $0x8] sm:$0xf] %vm72, %v66
  %76 = vst.msk [vmem:[%s3 + $0xc] sm:$0xf] %vm72, %v67
  // Predicated region
  $region14: #{netD_forward.14} parent=0 // pred_check
    _
  $region15: #{netD_forward.14} parent=0 // pred_check_branch
    %78 = sbr.rel (0) target = $region17
  $region16: #{netD_forward.14} parent=0 // pred_region
    _
  $region17: #{netD_forward.14} parent=0 // pred_fallthru
    _
  // Predicated region
  $region18: #{netD_forward.14} parent=0 // pred_check
    _
  $region19: #{netD_forward.14} parent=0 // pred_check_branch
    %80 = sbr.rel (0) target = $region21
  $region20: #{netD_forward.14} parent=0 // pred_region
    _
  $region21: #{netD_forward.14} parent=0 // pred_fallthru
    _

// kernel: netD_forward.15
$region0: #{netD_forward.15}
  #allocation0 [shape = 'u32[]', space=smem, size = 0x4, offset = 0x4, fixed_abs, tag = 'smem constant byte address 0x4 - core index']
  #allocation1 [shape = 'u32[144,128]{1,0:T(1,128)}', space=vmem, size = 0x12000, scoped, tag = 'internal scratch']
  %s0 = inlined_call_operand.vmem [shape: bf16[8,1024], index: 0, kind: input, shape index: {}]
  %s1 = inlined_call_operand.vmem [shape: bf16[1024,128], index: 1, kind: input, shape index: {}]
  %s2 = inlined_call_operand.vmem [shape: f32[1,128], index: 2, kind: input, shape index: {}]
  %s3 = inlined_call_operand.vmem [shape: f32[8,128], index: 3, kind: output, shape index: {}]
  %s4 = sld [smem:[#allocation0]]
  $region22: #{netD_forward.15} parent=0
    _
  %s6 = ssub.s32 1, %s4
  %s7 = scalar_select 0, %s6, %s4
  // Predicated region
  $region2: #{netD_forward.15} parent=0 // pred_check
    _
  $region3: #{netD_forward.15} parent=0 // pred_check_branch
    %9 = sbr.rel (0) target = $region5
  $region4: #{netD_forward.15} parent=0 // pred_region
    _
  $region5: #{netD_forward.15} parent=0 // pred_fallthru
    _
  // Predicated region
  $region6: #{netD_forward.15} parent=0 // pred_check
    _
  $region7: #{netD_forward.15} parent=0 // pred_check_branch
    %11 = sbr.rel (0) target = $region9
  $region8: #{netD_forward.15} parent=0 // pred_region
    _
  $region9: #{netD_forward.15} parent=0 // pred_fallthru
    _
  // Predicated region
  $region10: #{netD_forward.15} parent=0 // pred_check
    _
  $region11: #{netD_forward.15} parent=0 // pred_check_branch
    %13 = sbr.rel (0) target = $region13
  $region12: #{netD_forward.15} parent=0 // pred_region
    _
  $region13: #{netD_forward.15} parent=0 // pred_fallthru
    _
  %v15 = vld [vmem:[%s0] sm:$0xff]
  %v16 = vld [vmem:[%s0 + $0x8] sm:$0xff]
  %v17 = vld [vmem:[%s0 + $0x10] sm:$0xff]
  %v18 = vld [vmem:[%s0 + $0x18] sm:$0xff]
  %v19 = vld [vmem:[%s1] sm:$0xf]
  %v20 = vld [vmem:[%s1 + $0x4] sm:$0xf]
  %v21 = vld [vmem:[%s1 + $0x8] sm:$0xf]
  %v22 = vld [vmem:[%s1 + $0xc] sm:$0xf]
  %v23 = vld [vmem:[%s1 + $0x10] sm:$0xf]
  %v24 = vld [vmem:[%s1 + $0x14] sm:$0xf]
  %v25 = vld [vmem:[%s1 + $0x18] sm:$0xf]
  %v26 = vld [vmem:[%s1 + $0x1c] sm:$0xf]
  %v27 = vld [vmem:[%s1 + $0x20] sm:$0xf]
  %v28 = vld [vmem:[%s1 + $0x24] sm:$0xf]
  %v29 = vld [vmem:[%s1 + $0x28] sm:$0xf]
  %v30 = vld [vmem:[%s1 + $0x2c] sm:$0xf]
  %v31 = vld [vmem:[%s1 + $0x30] sm:$0xf]
  %v32 = vld [vmem:[%s1 + $0x34] sm:$0xf]
  %v33 = vld [vmem:[%s1 + $0x38] sm:$0xf]
  %v34 = vld [vmem:[%s1 + $0x3c] sm:$0xf]
  %v35 = vld [vmem:[%s1 + $0x40] sm:$0xf]
  %v36 = vld [vmem:[%s1 + $0x44] sm:$0xf]
  %v37 = vld [vmem:[%s1 + $0x48] sm:$0xf]
  %v38 = vld [vmem:[%s1 + $0x4c] sm:$0xf]
  %v39 = vld [vmem:[%s1 + $0x50] sm:$0xf]
  %v40 = vld [vmem:[%s1 + $0x54] sm:$0xf]
  %v41 = vld [vmem:[%s1 + $0x58] sm:$0xf]
  %v42 = vld [vmem:[%s1 + $0x5c] sm:$0xf]
  %v43 = vld [vmem:[%s1 + $0x60] sm:$0xf]
  %v44 = vld [vmem:[%s1 + $0x64] sm:$0xf]
  %v45 = vld [vmem:[%s1 + $0x68] sm:$0xf]
  %v46 = vld [vmem:[%s1 + $0x6c] sm:$0xf]
  %v47 = vld [vmem:[%s1 + $0x70] sm:$0xf]
  %v48 = vld [vmem:[%s1 + $0x74] sm:$0xf]
  %v49 = vld [vmem:[%s1 + $0x78] sm:$0xf]
  %v50 = vld [vmem:[%s1 + $0x7c] sm:$0xf]
  %v51 = vld [vmem:[%s1 + $0x80] sm:$0xf]
  %v52 = vld [vmem:[%s1 + $0x84] sm:$0xf]
  %v53 = vld [vmem:[%s1 + $0x88] sm:$0xf]
  %v54 = vld [vmem:[%s1 + $0x8c] sm:$0xf]
  %v55 = vld [vmem:[%s1 + $0x90] sm:$0xf]
  %v56 = vld [vmem:[%s1 + $0x94] sm:$0xf]
  %v57 = vld [vmem:[%s1 + $0x98] sm:$0xf]
  %v58 = vld [vmem:[%s1 + $0x9c] sm:$0xf]
  %v59 = vld [vmem:[%s1 + $0xa0] sm:$0xf]
  %v60 = vld [vmem:[%s1 + $0xa4] sm:$0xf]
  %v61 = vld [vmem:[%s1 + $0xa8] sm:$0xf]
  %v62 = vld [vmem:[%s1 + $0xac] sm:$0xf]
  %v63 = vld [vmem:[%s1 + $0xb0] sm:$0xf]
  %v64 = vld [vmem:[%s1 + $0xb4] sm:$0xf]
  %v65 = vld [vmem:[%s1 + $0xb8] sm:$0xf]
  %v66 = vld [vmem:[%s1 + $0xbc] sm:$0xf]
  %v67 = vld [vmem:[%s1 + $0xc0] sm:$0xf]
  %v68 = vld [vmem:[%s1 + $0xc4] sm:$0xf]
  %v69 = vld [vmem:[%s1 + $0xc8] sm:$0xf]
  %v70 = vld [vmem:[%s1 + $0xcc] sm:$0xf]
  %v71 = vld [vmem:[%s1 + $0xd0] sm:$0xf]
  %v72 = vld [vmem:[%s1 + $0xd4] sm:$0xf]
  %v73 = vld [vmem:[%s1 + $0xd8] sm:$0xf]
  %v74 = vld [vmem:[%s1 + $0xdc] sm:$0xf]
  %v75 = vld [vmem:[%s1 + $0xe0] sm:$0xf]
  %v76 = vld [vmem:[%s1 + $0xe4] sm:$0xf]
  %v77 = vld [vmem:[%s1 + $0xe8] sm:$0xf]
  %v78 = vld [vmem:[%s1 + $0xec] sm:$0xf]
  %v79 = vld [vmem:[%s1 + $0xf0] sm:$0xf]
  %v80 = vld [vmem:[%s1 + $0xf4] sm:$0xf]
  %v81 = vld [vmem:[%s1 + $0xf8] sm:$0xf]
  %v82 = vld [vmem:[%s1 + $0xfc] sm:$0xf]
  %v83 = vld [vmem:[%s1 + $0x100] sm:$0xf]
  %v84 = vld [vmem:[%s1 + $0x104] sm:$0xf]
  %v85 = vld [vmem:[%s1 + $0x108] sm:$0xf]
  %v86 = vld [vmem:[%s1 + $0x10c] sm:$0xf]
  %v87 = vld [vmem:[%s1 + $0x110] sm:$0xf]
  %v88 = vld [vmem:[%s1 + $0x114] sm:$0xf]
  %v89 = vld [vmem:[%s1 + $0x118] sm:$0xf]
  %v90 = vld [vmem:[%s1 + $0x11c] sm:$0xf]
  %v91 = vld [vmem:[%s1 + $0x120] sm:$0xf]
  %v92 = vld [vmem:[%s1 + $0x124] sm:$0xf]
  %v93 = vld [vmem:[%s1 + $0x128] sm:$0xf]
  %v94 = vld [vmem:[%s1 + $0x12c] sm:$0xf]
  %v95 = vld [vmem:[%s1 + $0x130] sm:$0xf]
  %v96 = vld [vmem:[%s1 + $0x134] sm:$0xf]
  %v97 = vld [vmem:[%s1 + $0x138] sm:$0xf]
  %v98 = vld [vmem:[%s1 + $0x13c] sm:$0xf]
  %v99 = vld [vmem:[%s1 + $0x140] sm:$0xf]
  %v100 = vld [vmem:[%s1 + $0x144] sm:$0xf]
  %v101 = vld [vmem:[%s1 + $0x148] sm:$0xf]
  %v102 = vld [vmem:[%s1 + $0x14c] sm:$0xf]
  %v103 = vld [vmem:[%s1 + $0x150] sm:$0xf]
  %v104 = vld [vmem:[%s1 + $0x154] sm:$0xf]
  %v105 = vld [vmem:[%s1 + $0x158] sm:$0xf]
  %v106 = vld [vmem:[%s1 + $0x15c] sm:$0xf]
  %v107 = vld [vmem:[%s1 + $0x160] sm:$0xf]
  %v108 = vld [vmem:[%s1 + $0x164] sm:$0xf]
  %v109 = vld [vmem:[%s1 + $0x168] sm:$0xf]
  %v110 = vld [vmem:[%s1 + $0x16c] sm:$0xf]
  %v111 = vld [vmem:[%s1 + $0x170] sm:$0xf]
  %v112 = vld [vmem:[%s1 + $0x174] sm:$0xf]
  %v113 = vld [vmem:[%s1 + $0x178] sm:$0xf]
  %v114 = vld [vmem:[%s1 + $0x17c] sm:$0xf]
  %v115 = vld [vmem:[%s1 + $0x180] sm:$0xf]
  %v116 = vld [vmem:[%s1 + $0x184] sm:$0xf]
  %v117 = vld [vmem:[%s1 + $0x188] sm:$0xf]
  %v118 = vld [vmem:[%s1 + $0x18c] sm:$0xf]
  %v119 = vld [vmem:[%s1 + $0x190] sm:$0xf]
  %v120 = vld [vmem:[%s1 + $0x194] sm:$0xf]
  %v121 = vld [vmem:[%s1 + $0x198] sm:$0xf]
  %v122 = vld [vmem:[%s1 + $0x19c] sm:$0xf]
  %v123 = vld [vmem:[%s1 + $0x1a0] sm:$0xf]
  %v124 = vld [vmem:[%s1 + $0x1a4] sm:$0xf]
  %v125 = vld [vmem:[%s1 + $0x1a8] sm:$0xf]
  %v126 = vld [vmem:[%s1 + $0x1ac] sm:$0xf]
  %v127 = vld [vmem:[%s1 + $0x1b0] sm:$0xf]
  %v128 = vld [vmem:[%s1 + $0x1b4] sm:$0xf]
  %v129 = vld [vmem:[%s1 + $0x1b8] sm:$0xf]
  %v130 = vld [vmem:[%s1 + $0x1bc] sm:$0xf]
  %v131 = vld [vmem:[%s1 + $0x1c0] sm:$0xf]
  %v132 = vld [vmem:[%s1 + $0x1c4] sm:$0xf]
  %v133 = vld [vmem:[%s1 + $0x1c8] sm:$0xf]
  %v134 = vld [vmem:[%s1 + $0x1cc] sm:$0xf]
  %v135 = vld [vmem:[%s1 + $0x1d0] sm:$0xf]
  %v136 = vld [vmem:[%s1 + $0x1d4] sm:$0xf]
  %v137 = vld [vmem:[%s1 + $0x1d8] sm:$0xf]
  %v138 = vld [vmem:[%s1 + $0x1dc] sm:$0xf]
  %v139 = vld [vmem:[%s1 + $0x1e0] sm:$0xf]
  %v140 = vld [vmem:[%s1 + $0x1e4] sm:$0xf]
  %v141 = vld [vmem:[%s1 + $0x1e8] sm:$0xf]
  %v142 = vld [vmem:[%s1 + $0x1ec] sm:$0xf]
  %v143 = vld [vmem:[%s1 + $0x1f0] sm:$0xf]
  %v144 = vld [vmem:[%s1 + $0x1f4] sm:$0xf]
  %v145 = vld [vmem:[%s1 + $0x1f8] sm:$0xf]
  %v146 = vld [vmem:[%s1 + $0x1fc] sm:$0xf]
  %v147 = vld [vmem:[%s2] sm:$0x1]
  %v149 = vlaneseq
  %v150 = vshrl.u32 %v149, 7
  %v151 = vsub.s32 0, %v150
  %v152 = vrot.slane %v147, %v151
  %v158 = vunpack.c.l.b16 %v15
  %v159 = vunpack.c.h.b16 %v15
  %v160 = vunpack.c.l.b16 %v16
  %v161 = vunpack.c.h.b16 %v16
  %v162 = vunpack.c.l.b16 %v17
  %v163 = vunpack.c.h.b16 %v17
  %v164 = vunpack.c.l.b16 %v18
  %v165 = vunpack.c.h.b16 %v18
  %v166 = vpack.c.b16 %v158, %v158
  %v167 = vpack.c.b16 %v159, %v159
  %v168 = vpack.c.b16 %v160, %v160
  %v169 = vpack.c.b16 %v161, %v161
  %v170 = vpack.c.b16 %v162, %v162
  %v171 = vpack.c.b16 %v163, %v163
  %v172 = vpack.c.b16 %v164, %v164
  %v173 = vpack.c.b16 %v165, %v165
  %v310 = vunpack.c.l.b16 %v19
  %v311 = vunpack.c.l.b16 %v20
  %v312 = vunpack.c.l.b16 %v21
  %v313 = vunpack.c.l.b16 %v22
  %v314 = vunpack.c.l.b16 %v23
  %v315 = vunpack.c.l.b16 %v24
  %v316 = vunpack.c.l.b16 %v25
  %v317 = vunpack.c.l.b16 %v26
  %v318 = vunpack.c.l.b16 %v27
  %v319 = vunpack.c.l.b16 %v28
  %v320 = vunpack.c.l.b16 %v29
  %v321 = vunpack.c.l.b16 %v30
  %v322 = vunpack.c.l.b16 %v31
  %v323 = vunpack.c.l.b16 %v32
  %v324 = vunpack.c.l.b16 %v33
  %v325 = vunpack.c.l.b16 %v34
  %v326 = vunpack.c.l.b16 %v35
  %v327 = vunpack.c.l.b16 %v36
  %v328 = vunpack.c.l.b16 %v37
  %v329 = vunpack.c.l.b16 %v38
  %v330 = vunpack.c.l.b16 %v39
  %v331 = vunpack.c.l.b16 %v40
  %v332 = vunpack.c.l.b16 %v41
  %v333 = vunpack.c.l.b16 %v42
  %v334 = vunpack.c.l.b16 %v43
  %v335 = vunpack.c.l.b16 %v44
  %v336 = vunpack.c.l.b16 %v45
  %v337 = vunpack.c.l.b16 %v46
  %v338 = vunpack.c.l.b16 %v47
  %v339 = vunpack.c.l.b16 %v48
  %v340 = vunpack.c.l.b16 %v49
  %v341 = vunpack.c.l.b16 %v50
  %v342 = vunpack.c.l.b16 %v51
  %v343 = vunpack.c.l.b16 %v52
  %v344 = vunpack.c.l.b16 %v53
  %v345 = vunpack.c.l.b16 %v54
  %v346 = vunpack.c.l.b16 %v55
  %v347 = vunpack.c.l.b16 %v56
  %v348 = vunpack.c.l.b16 %v57
  %v349 = vunpack.c.l.b16 %v58
  %v350 = vunpack.c.l.b16 %v59
  %v351 = vunpack.c.l.b16 %v60
  %v352 = vunpack.c.l.b16 %v61
  %v353 = vunpack.c.l.b16 %v62
  %v354 = vunpack.c.l.b16 %v63
  %v355 = vunpack.c.l.b16 %v64
  %v356 = vunpack.c.l.b16 %v65
  %v357 = vunpack.c.l.b16 %v66
  %v358 = vunpack.c.l.b16 %v67
  %v359 = vunpack.c.l.b16 %v68
  %v360 = vunpack.c.l.b16 %v69
  %v361 = vunpack.c.l.b16 %v70
  %v362 = vunpack.c.l.b16 %v71
  %v363 = vunpack.c.l.b16 %v72
  %v364 = vunpack.c.l.b16 %v73
  %v365 = vunpack.c.l.b16 %v74
  %v366 = vunpack.c.l.b16 %v75
  %v367 = vunpack.c.l.b16 %v76
  %v368 = vunpack.c.l.b16 %v77
  %v369 = vunpack.c.l.b16 %v78
  %v370 = vunpack.c.l.b16 %v79
  %v371 = vunpack.c.l.b16 %v80
  %v372 = vunpack.c.l.b16 %v81
  %v373 = vunpack.c.l.b16 %v82
  %v374 = vunpack.c.l.b16 %v83
  %v375 = vunpack.c.l.b16 %v84
  %v376 = vunpack.c.l.b16 %v85
  %v377 = vunpack.c.l.b16 %v86
  %v378 = vunpack.c.l.b16 %v87
  %v379 = vunpack.c.l.b16 %v88
  %v380 = vunpack.c.l.b16 %v89
  %v381 = vunpack.c.l.b16 %v90
  %v382 = vunpack.c.l.b16 %v91
  %v383 = vunpack.c.l.b16 %v92
  %v384 = vunpack.c.l.b16 %v93
  %v385 = vunpack.c.l.b16 %v94
  %v386 = vunpack.c.l.b16 %v95
  %v387 = vunpack.c.l.b16 %v96
  %v388 = vunpack.c.l.b16 %v97
  %v389 = vunpack.c.l.b16 %v98
  %v390 = vunpack.c.l.b16 %v99
  %v391 = vunpack.c.l.b16 %v100
  %v392 = vunpack.c.l.b16 %v101
  %v393 = vunpack.c.l.b16 %v102
  %v394 = vunpack.c.l.b16 %v103
  %v395 = vunpack.c.l.b16 %v104
  %v396 = vunpack.c.l.b16 %v105
  %v397 = vunpack.c.l.b16 %v106
  %v398 = vunpack.c.l.b16 %v107
  %v399 = vunpack.c.l.b16 %v108
  %v400 = vunpack.c.l.b16 %v109
  %v401 = vunpack.c.l.b16 %v110
  %v402 = vunpack.c.l.b16 %v111
  %v403 = vunpack.c.l.b16 %v112
  %v404 = vunpack.c.l.b16 %v113
  %v405 = vunpack.c.l.b16 %v114
  %v406 = vunpack.c.l.b16 %v115
  %v407 = vunpack.c.l.b16 %v116
  %v408 = vunpack.c.l.b16 %v117
  %v409 = vunpack.c.l.b16 %v118
  %v410 = vunpack.c.l.b16 %v119
  %v411 = vunpack.c.l.b16 %v120
  %v412 = vunpack.c.l.b16 %v121
  %v413 = vunpack.c.l.b16 %v122
  %v414 = vunpack.c.l.b16 %v123
  %v415 = vunpack.c.l.b16 %v124
  %v416 = vunpack.c.l.b16 %v125
  %v417 = vunpack.c.l.b16 %v126
  %v418 = vunpack.c.l.b16 %v127
  %v419 = vunpack.c.l.b16 %v128
  %v420 = vunpack.c.l.b16 %v129
  %v421 = vunpack.c.l.b16 %v130
  %v422 = vunpack.c.l.b16 %v131
  %v423 = vunpack.c.l.b16 %v132
  %v424 = vunpack.c.l.b16 %v133
  %v425 = vunpack.c.l.b16 %v134
  %v426 = vunpack.c.l.b16 %v135
  %v427 = vunpack.c.l.b16 %v136
  %v428 = vunpack.c.l.b16 %v137
  %v429 = vunpack.c.l.b16 %v138
  %v430 = vunpack.c.l.b16 %v139
  %v431 = vunpack.c.l.b16 %v140
  %v432 = vunpack.c.l.b16 %v141
  %v433 = vunpack.c.l.b16 %v142
  %v434 = vunpack.c.l.b16 %v143
  %v435 = vunpack.c.l.b16 %v144
  %v436 = vunpack.c.l.b16 %v145
  %v437 = vunpack.c.l.b16 %v146
  %v438 = vpack.c.b16 %v311, %v310
  %v439 = vpack.c.b16 %v313, %v312
  %v440 = vpack.c.b16 %v315, %v314
  %v441 = vpack.c.b16 %v317, %v316
  %v442 = vpack.c.b16 %v319, %v318
  %v443 = vpack.c.b16 %v321, %v320
  %v444 = vpack.c.b16 %v323, %v322
  %v445 = vpack.c.b16 %v325, %v324
  %v446 = vpack.c.b16 %v327, %v326
  %v447 = vpack.c.b16 %v329, %v328
  %v448 = vpack.c.b16 %v331, %v330
  %v449 = vpack.c.b16 %v333, %v332
  %v450 = vpack.c.b16 %v335, %v334
  %v451 = vpack.c.b16 %v337, %v336
  %v452 = vpack.c.b16 %v339, %v338
  %v453 = vpack.c.b16 %v341, %v340
  %v454 = vpack.c.b16 %v343, %v342
  %v455 = vpack.c.b16 %v345, %v344
  %v456 = vpack.c.b16 %v347, %v346
  %v457 = vpack.c.b16 %v349, %v348
  %v458 = vpack.c.b16 %v351, %v350
  %v459 = vpack.c.b16 %v353, %v352
  %v460 = vpack.c.b16 %v355, %v354
  %v461 = vpack.c.b16 %v357, %v356
  %v462 = vpack.c.b16 %v359, %v358
  %v463 = vpack.c.b16 %v361, %v360
  %v464 = vpack.c.b16 %v363, %v362
  %v465 = vpack.c.b16 %v365, %v364
  %v466 = vpack.c.b16 %v367, %v366
  %v467 = vpack.c.b16 %v369, %v368
  %v468 = vpack.c.b16 %v371, %v370
  %v469 = vpack.c.b16 %v373, %v372
  %v470 = vpack.c.b16 %v375, %v374
  %v471 = vpack.c.b16 %v377, %v376
  %v472 = vpack.c.b16 %v379, %v378
  %v473 = vpack.c.b16 %v381, %v380
  %v474 = vpack.c.b16 %v383, %v382
  %v475 = vpack.c.b16 %v385, %v384
  %v476 = vpack.c.b16 %v387, %v386
  %v477 = vpack.c.b16 %v389, %v388
  %v478 = vpack.c.b16 %v391, %v390
  %v479 = vpack.c.b16 %v393, %v392
  %v480 = vpack.c.b16 %v395, %v394
  %v481 = vpack.c.b16 %v397, %v396
  %v482 = vpack.c.b16 %v399, %v398
  %v483 = vpack.c.b16 %v401, %v400
  %v484 = vpack.c.b16 %v403, %v402
  %v485 = vpack.c.b16 %v405, %v404
  %v486 = vpack.c.b16 %v407, %v406
  %v487 = vpack.c.b16 %v409, %v408
  %v488 = vpack.c.b16 %v411, %v410
  %v489 = vpack.c.b16 %v413, %v412
  %v490 = vpack.c.b16 %v415, %v414
  %v491 = vpack.c.b16 %v417, %v416
  %v492 = vpack.c.b16 %v419, %v418
  %v493 = vpack.c.b16 %v421, %v420
  %v494 = vpack.c.b16 %v423, %v422
  %v495 = vpack.c.b16 %v425, %v424
  %v496 = vpack.c.b16 %v427, %v426
  %v497 = vpack.c.b16 %v429, %v428
  %v498 = vpack.c.b16 %v431, %v430
  %v499 = vpack.c.b16 %v433, %v432
  %v500 = vpack.c.b16 %v435, %v434
  %v501 = vpack.c.b16 %v437, %v436
  %566 = vmatprep.subr.bf16.mxu0 0
  %567 = vmatpush1.bf16.msra.mxu0 %v445
  %568 = vmatprep.subr.bf16.mxu0 0
  %569 = vmatpush1.bf16.msra.mxu0 %v444
  %570 = vmatprep.subr.bf16.mxu0 0
  %571 = vmatpush1.bf16.msra.mxu0 %v443
  %572 = vmatprep.subr.bf16.mxu0 0
  %573 = vmatpush1.bf16.msra.mxu0 %v442
  %574 = vmatprep.subr.bf16.mxu0 0
  %575 = vmatpush1.bf16.msra.mxu0 %v441
  %576 = vmatprep.subr.bf16.mxu0 0
  %577 = vmatpush1.bf16.msra.mxu0 %v440
  %578 = vmatprep.subr.bf16.mxu0 0
  %579 = vmatpush1.bf16.msra.mxu0 %v439
  %580 = vmatprep.subr.bf16.mxu0 0
  %581 = vmatpush1.bf16.msra.mxu0 %v438
  %582 = vmatprep.subr.bf16.mxu0 0
  %583 = vmatpush2.bf16.msra.mxu0 %v453
  %584 = vmatprep.subr.bf16.mxu0 0
  %585 = vmatpush2.bf16.msra.mxu0 %v452
  %586 = vmatprep.subr.bf16.mxu0 0
  %587 = vmatpush2.bf16.msra.mxu0 %v451
  %588 = vmatprep.subr.bf16.mxu0 0
  %589 = vmatpush2.bf16.msra.mxu0 %v450
  %590 = vmatprep.subr.bf16.mxu0 0
  %591 = vmatpush2.bf16.msra.mxu0 %v449
  %592 = vmatprep.subr.bf16.mxu0 0
  %593 = vmatpush2.bf16.msra.mxu0 %v448
  %594 = vmatprep.subr.bf16.mxu0 0
  %595 = vmatpush2.bf16.msra.mxu0 %v447
  %596 = vmatprep.subr.bf16.mxu0 0
  %597 = vmatpush2.bf16.msra.mxu0 %v446
  %598 = vmatprep.mubr.bf16.mxu0 %v167
  %599 = vmatmul.mubr.bf16.gmra.mxu0 %v166
  %v600 = vpop.f32.mrf.mxu0
  %v601 = vadd.f32 %v152, %v600
  %v602 = vpop.f32.mrf.mxu0
  %v603 = vpop.f32.mrf.mxu0
  %v604 = vpop.f32.mrf.mxu0
  %605 = vdwg.mxu0
  %606 = vmatprep.subr.bf16.mxu0 0
  %607 = vmatpush1.bf16.msra.mxu0 %v461
  %608 = vmatprep.subr.bf16.mxu0 0
  %609 = vmatpush1.bf16.msra.mxu0 %v460
  %610 = vmatprep.subr.bf16.mxu0 0
  %611 = vmatpush1.bf16.msra.mxu0 %v459
  %612 = vmatprep.subr.bf16.mxu0 0
  %613 = vmatpush1.bf16.msra.mxu0 %v458
  %614 = vmatprep.subr.bf16.mxu0 0
  %615 = vmatpush1.bf16.msra.mxu0 %v457
  %616 = vmatprep.subr.bf16.mxu0 0
  %617 = vmatpush1.bf16.msra.mxu0 %v456
  %618 = vmatprep.subr.bf16.mxu0 0
  %619 = vmatpush1.bf16.msra.mxu0 %v455
  %620 = vmatprep.subr.bf16.mxu0 0
  %621 = vmatpush1.bf16.msra.mxu0 %v454
  %622 = vmatprep.subr.bf16.mxu0 0
  %623 = vmatpush2.bf16.msra.mxu0 %v469
  %624 = vmatprep.subr.bf16.mxu0 0
  %625 = vmatpush2.bf16.msra.mxu0 %v468
  %626 = vmatprep.subr.bf16.mxu0 0
  %627 = vmatpush2.bf16.msra.mxu0 %v467
  %628 = vmatprep.subr.bf16.mxu0 0
  %629 = vmatpush2.bf16.msra.mxu0 %v466
  %630 = vmatprep.subr.bf16.mxu0 0
  %631 = vmatpush2.bf16.msra.mxu0 %v465
  %632 = vmatprep.subr.bf16.mxu0 0
  %633 = vmatpush2.bf16.msra.mxu0 %v464
  %634 = vmatprep.subr.bf16.mxu0 0
  %635 = vmatpush2.bf16.msra.mxu0 %v463
  %636 = vmatprep.subr.bf16.mxu0 0
  %637 = vmatpush2.bf16.msra.mxu0 %v462
  %638 = vmatprep.mubr.bf16.mxu0 %v169
  %639 = vmatmul.mubr.bf16.gmra.mxu0 %v168
  %v640 = vpop.f32.mrf.mxu0
  %v641 = vadd.f32 %v601, %v640
  %v642 = vpop.f32.mrf.mxu0
  %v643 = vpop.f32.mrf.mxu0
  %v644 = vpop.f32.mrf.mxu0
  %645 = vdwg.mxu0
  %646 = vmatprep.subr.bf16.mxu0 0
  %647 = vmatpush1.bf16.msra.mxu0 %v477
  %648 = vmatprep.subr.bf16.mxu0 0
  %649 = vmatpush1.bf16.msra.mxu0 %v476
  %650 = vmatprep.subr.bf16.mxu0 0
  %651 = vmatpush1.bf16.msra.mxu0 %v475
  %652 = vmatprep.subr.bf16.mxu0 0
  %653 = vmatpush1.bf16.msra.mxu0 %v474
  %654 = vmatprep.subr.bf16.mxu0 0
  %655 = vmatpush1.bf16.msra.mxu0 %v473
  %656 = vmatprep.subr.bf16.mxu0 0
  %657 = vmatpush1.bf16.msra.mxu0 %v472
  %658 = vmatprep.subr.bf16.mxu0 0
  %659 = vmatpush1.bf16.msra.mxu0 %v471
  %660 = vmatprep.subr.bf16.mxu0 0
  %661 = vmatpush1.bf16.msra.mxu0 %v470
  %662 = vmatprep.subr.bf16.mxu0 0
  %663 = vmatpush2.bf16.msra.mxu0 %v485
  %664 = vmatprep.subr.bf16.mxu0 0
  %665 = vmatpush2.bf16.msra.mxu0 %v484
  %666 = vmatprep.subr.bf16.mxu0 0
  %667 = vmatpush2.bf16.msra.mxu0 %v483
  %668 = vmatprep.subr.bf16.mxu0 0
  %669 = vmatpush2.bf16.msra.mxu0 %v482
  %670 = vmatprep.subr.bf16.mxu0 0
  %671 = vmatpush2.bf16.msra.mxu0 %v481
  %672 = vmatprep.subr.bf16.mxu0 0
  %673 = vmatpush2.bf16.msra.mxu0 %v480
  %674 = vmatprep.subr.bf16.mxu0 0
  %675 = vmatpush2.bf16.msra.mxu0 %v479
  %676 = vmatprep.subr.bf16.mxu0 0
  %677 = vmatpush2.bf16.msra.mxu0 %v478
  %678 = vmatprep.mubr.bf16.mxu0 %v171
  %679 = vmatmul.mubr.bf16.gmra.mxu0 %v170
  %v680 = vpop.f32.mrf.mxu0
  %v681 = vadd.f32 %v641, %v680
  %v682 = vpop.f32.mrf.mxu0
  %v683 = vpop.f32.mrf.mxu0
  %v684 = vpop.f32.mrf.mxu0
  %685 = vdwg.mxu0
  %686 = vmatprep.subr.bf16.mxu0 0
  %687 = vmatpush1.bf16.msra.mxu0 %v493
  %688 = vmatprep.subr.bf16.mxu0 0
  %689 = vmatpush1.bf16.msra.mxu0 %v492
  %690 = vmatprep.subr.bf16.mxu0 0
  %691 = vmatpush1.bf16.msra.mxu0 %v491
  %692 = vmatprep.subr.bf16.mxu0 0
  %693 = vmatpush1.bf16.msra.mxu0 %v490
  %694 = vmatprep.subr.bf16.mxu0 0
  %695 = vmatpush1.bf16.msra.mxu0 %v489
  %696 = vmatprep.subr.bf16.mxu0 0
  %697 = vmatpush1.bf16.msra.mxu0 %v488
  %698 = vmatprep.subr.bf16.mxu0 0
  %699 = vmatpush1.bf16.msra.mxu0 %v487
  %700 = vmatprep.subr.bf16.mxu0 0
  %701 = vmatpush1.bf16.msra.mxu0 %v486
  %702 = vmatprep.subr.bf16.mxu0 0
  %703 = vmatpush2.bf16.msra.mxu0 %v501
  %704 = vmatprep.subr.bf16.mxu0 0
  %705 = vmatpush2.bf16.msra.mxu0 %v500
  %706 = vmatprep.subr.bf16.mxu0 0
  %707 = vmatpush2.bf16.msra.mxu0 %v499
  %708 = vmatprep.subr.bf16.mxu0 0
  %709 = vmatpush2.bf16.msra.mxu0 %v498
  %710 = vmatprep.subr.bf16.mxu0 0
  %711 = vmatpush2.bf16.msra.mxu0 %v497
  %712 = vmatprep.subr.bf16.mxu0 0
  %713 = vmatpush2.bf16.msra.mxu0 %v496
  %714 = vmatprep.subr.bf16.mxu0 0
  %715 = vmatpush2.bf16.msra.mxu0 %v495
  %716 = vmatprep.subr.bf16.mxu0 0
  %717 = vmatpush2.bf16.msra.mxu0 %v494
  %718 = vmatprep.mubr.bf16.mxu0 %v173
  %719 = vmatmul.mubr.bf16.gmra.mxu0 %v172
  %v720 = vpop.f32.mrf.mxu0
  %v721 = vadd.f32 %v681, %v720
  %v722 = vpop.f32.mrf.mxu0
  %v723 = vpop.f32.mrf.mxu0
  %v724 = vpop.f32.mrf.mxu0
  %725 = vdwg.mxu0
  %v726 = vand.u32 2147483647, %v721
  %v727 = vsub.f32 0.0, %v726
  %v728 = vmul.f32 %v727, 1.442695
  %v729 = vpow.pop %v728
  %vm730 = vcmp.ge.f32.partialorder %v721, 0.0
  %v731 = vadd.f32 %v729, 1.0
  %v732 = vrcp.pop %v731
  %v733 = vmul.f32 1.0, %v732
  %v734 = vmul.f32 %v729, %v732
  %v735 = vsel %vm730, %v733, %v734
  %736 = vst [vmem:[%s3] sm:$0xff] %v735
  // Predicated region
  $region14: #{netD_forward.15} parent=0 // pred_check
    _
  $region15: #{netD_forward.15} parent=0 // pred_check_branch
    %738 = sbr.rel (0) target = $region17
  $region16: #{netD_forward.15} parent=0 // pred_region
    _
  $region17: #{netD_forward.15} parent=0 // pred_fallthru
    _
  // Predicated region
  $region18: #{netD_forward.15} parent=0 // pred_check
    _
  $region19: #{netD_forward.15} parent=0 // pred_check_branch
    %740 = sbr.rel (0) target = $region21
  $region20: #{netD_forward.15} parent=0 // pred_region
    _
  $region21: #{netD_forward.15} parent=0 // pred_fallthru
    _

</llo_original>
